<compile_context>
chip_gen: v7x
topology: tpu7x:2x2x1
jax: 0.10.0
libtpu: 0.0.40
codegen_flags: <defaults>
</compile_context>

<pallas_src>
import jax
import jax.numpy as jnp
from jax.experimental import pallas as pl
from jax.experimental.pallas import tpu as pltpu

_CPAD = 8  # channel padding -> full sublane tiles for every im2col slab


# ----------------------------------------------------------------------------
# Precomputed (wrapper-side) pooling / upsampling operators on the flattened
# spatial axis.  pooled = x_flat @ pool_t ; upsampled = y_flat @ up_t.
# ----------------------------------------------------------------------------
def _pool_and_up_matrices(H, W, f):
    Hs, Ws = H // f, W // f
    idx = jnp.arange(H * W)
    r, c = idx // W, idx % W
    blk = (r // f) * Ws + (c // f)                               # (H*W,)
    onehot = (blk[:, None] == jnp.arange(Hs * Ws)[None, :]).astype(jnp.float32)
    # 1/f^2 in {0.25, 0.0625, ...} and 0/1 are exactly representable in bf16.
    pool_t = (onehot / float(f * f)).astype(jnp.bfloat16)        # (H*W, Hs*Ws)
    up_t = onehot.T.astype(jnp.bfloat16)                         # (Hs*Ws, H*W)
    return pool_t, up_t


# ----------------------------------------------------------------------------
# Fused kernel: all scales, pooling -> im2col conv + LeakyReLU -> upsample ->
# accumulate, for `bblk` batch elements per grid step.
# ----------------------------------------------------------------------------
def _make_fused_kernel(num_scales, bblk, Cout, k, H, W, neg_slope):
    p = (k - 1) // 2
    HW = H * W
    M2 = bblk * _CPAD

    def kernel(*refs):
        # refs = (x_ref, w_ref, b_ref, pool_1.., up_1.., o_ref)
        x_ref, w_ref, b_ref = refs[0], refs[1], refs[2]
        pool_refs = refs[3:3 + (num_scales - 1)]
        up_refs = refs[3 + (num_scales - 1):3 + 2 * (num_scales - 1)]
        o_ref = refs[-1]

        x2 = x_ref[...]                                          # (bblk*Cpad, HW) bf16
        accs = [jnp.zeros((Cout, HW), jnp.float32) for _ in range(bblk)]

        for s in range(num_scales):                              # unrolled (small)
            f = 2 ** s
            Hs, Ws = H // f, W // f
            Ns = Hs * Ws

            # --- mean pool by 2**s: one MXU matmul, batch stacked on M rows --
            if s == 0:
                xs = x2
            else:
                xs = jnp.dot(x2, pool_refs[s - 1][...],
                             preferred_element_type=jnp.float32
                             ).astype(jnp.bfloat16)              # (M2, Ns)

            # --- im2col: k*k shifted slabs on the flat axis -----------------
            # Zero-pad the flattened spatial axis so every tap is a static
            # lane slice; row over/underflow falls into the pad, column wrap
            # is removed with hoisted iota masks (computed once per scale).
            off = p * Ws + p
            zpad = jnp.zeros((M2, off), jnp.bfloat16)
            xp = jnp.concatenate([zpad, xs, zpad], axis=1)       # (M2, Ns+2*off)
            col = jax.lax.broadcasted_iota(jnp.int32, (1, Ns), 1) % Ws
            col_ok = {ox: (col + ox >= 0) & (col + ox < Ws)
                      for ox in range(-p, p + 1) if ox != 0}     # hoisted

            slabs = []
            for dy in range(k):
                for dx in range(k):
                    oy, ox = dy - p, dx - p
                    start = off + oy * Ws + ox                   # static, >= 0
                    slab = xp[:, start:start + Ns]               # (M2, Ns)
                    if ox != 0:
                        slab = jnp.where(col_ok[ox], slab, jnp.zeros_like(slab))
                    slabs.append(slab)

            # --- conv + bias + LeakyReLU + upsample, per batch element ------
            # Per-batch 2-D matmuls keep the lowering simple; the batch loop
            # is unrolled and the MXU still processes bblk*Ns columns/scale.
            w_s = w_ref[s]                                       # (Cout, k*k*Cpad) bf16
            b_s = b_ref[s]                                       # (Cout, 1) f32
            for b in range(bblk):
                lo = b * _CPAD
                patches = jnp.concatenate(
                    [sl[lo:lo + _CPAD, :] for sl in slabs], axis=0)  # (k*k*Cpad, Ns)
                y = jnp.dot(w_s, patches,
                            preferred_element_type=jnp.float32)  # (Cout, Ns)
                y = y + b_s
                y = jnp.where(y >= 0, y, neg_slope * y)
                if s == 0:
                    accs[b] = accs[b] + y
                else:
                    accs[b] = accs[b] + jnp.dot(
                        y.astype(jnp.bfloat16), up_refs[s - 1][...],
                        preferred_element_type=jnp.float32)      # (Cout, HW)

        o_ref[...] = jnp.concatenate(accs, axis=0).astype(o_ref.dtype)

    return kernel


# ----------------------------------------------------------------------------
# Wrapper: layout plumbing + one pallas_call.
# ----------------------------------------------------------------------------
def multi_scale_convolution(x, weights, biases, num_scales, kernel_size,
                            neg_slope=0.05, batch_block=None):
    B, C, H, W = x.shape
    Cout = weights[0].shape[0]
    k = kernel_size
    assert k % 2 == 1, "odd kernel_size required"
    assert C <= _CPAD
    assert H % (2 ** (num_scales - 1)) == 0 and W % (2 ** (num_scales - 1)) == 0
    HW = H * W
    kkC = k * k * _CPAD

    # Batch elements per grid step.  v5e/v6e (128 MiB VMEM) can take ~2x the
    # v7x (64 MiB) block size; at these toy shapes any choice fits easily.
    if batch_block is None:
        batch_block = next(bb for bb in (8, 4, 2, 1) if B % bb == 0)
    assert B % batch_block == 0

    inv = 1.0 / num_scales
    # Weights -> (S, Cout, k*k*Cpad) bf16 with row order (dy, dx, ci) matching
    # the im2col patch stacking, channels zero-padded to Cpad, and the final
    # 1/num_scales folded in (exact: LeakyReLU is positively homogeneous).
    w_list = []
    for w in weights:
        wt = jnp.transpose(w, (0, 2, 3, 1))                      # (Cout, k, k, C)
        wt = jnp.pad(wt, ((0, 0), (0, 0), (0, 0), (0, _CPAD - C)))
        w_list.append(wt.reshape(Cout, kkC))
    w_all = (inv * jnp.stack(w_list)).astype(jnp.bfloat16)       # (S, Cout, kkC)
    b_all = (inv * jnp.stack([b.reshape(Cout, 1) for b in biases])
             ).astype(jnp.float32)                               # (S, Cout, 1)

    pool_mats, up_mats = [], []
    for s in range(1, num_scales):
        pt, ut = _pool_and_up_matrices(H, W, 2 ** s)
        pool_mats.append(pt)
        up_mats.append(ut)

    # Lane-dense bf16 input: (B*Cpad, H*W), channel rows zero-padded.
    x_p = jnp.pad(x.reshape(B, C, HW), ((0, 0), (0, _CPAD - C), (0, 0)))
    x_p = x_p.reshape(B * _CPAD, HW).astype(jnp.bfloat16)

    kernel = _make_fused_kernel(num_scales, batch_block, Cout, k, H, W, neg_slope)
    grid = (B // batch_block,)

    # Rough cost hint for XLA's scheduler around the custom call.
    flops = 0
    for s in range(num_scales):
        Ns = HW // (4 ** s)
        if s > 0:
            flops += 2 * B * _CPAD * HW * Ns + 2 * B * Cout * Ns * HW
        flops += 2 * B * Cout * kkC * Ns
    bytes_accessed = (x_p.size * 2 + B * Cout * HW * 4 + w_all.size * 2 +
                      b_all.size * 4 + sum(m.size * 2 for m in pool_mats + up_mats))
    cost = pl.CostEstimate(flops=int(flops), transcendentals=0,
                           bytes_accessed=int(bytes_accessed))

    def _run(single_buffer_invariants):
        def inv_spec(arr):
            idx = (lambda i, _r=arr.ndim: (0,) * _r)
            if single_buffer_invariants:
                # Grid-invariant block: single-buffer it (no benefit from
                # double-buffering a block whose index never changes).
                return pl.BlockSpec(arr.shape, idx, pipeline_mode=pl.Buffered(1))
            return pl.BlockSpec(arr.shape, idx)

        in_specs = [pl.BlockSpec((batch_block * _CPAD, HW), lambda i: (i, 0)),
                    inv_spec(w_all), inv_spec(b_all)]
        for m in pool_mats + up_mats:
            in_specs.append(inv_spec(m))

        return pl.pallas_call(
            kernel,
            out_shape=jax.ShapeDtypeStruct((B * Cout, HW), x.dtype),
            grid=grid,
            in_specs=in_specs,
            out_specs=pl.BlockSpec((batch_block * Cout, HW), lambda i: (i, 0)),
            compiler_params=pltpu.CompilerParams(
                dimension_semantics=("parallel",),
                vmem_limit_bytes=32 * 1024 * 1024),
            cost_estimate=cost,
        )(x_p, w_all, b_all, *pool_mats, *up_mats)

    try:
        out_flat = _run(True)
    except Exception:
        # Fallback if this jax version rejects pl.Buffered(1) on a BlockSpec.
        out_flat = _run(False)

    return out_flat.reshape(B, Cout, H, W)


# ----------------------------------------------------------------------------
# Pure-JAX reference (mirrors the PyTorch module) for verification.
# ----------------------------------------------------------------------------
def reference_forward(x, weights, biases, num_scales, k, neg_slope=0.05):
    B, C, H, W = x.shape
    overshoot = (k - 1) // 2
    x_accum = None
    for scale in range(num_scales - 1, -1, -1):
        f = 2 ** scale
        y = x
        if scale > 0:
            Hs, Ws = H // f, W // f
            y = y.reshape(B, C, Hs, f, Ws, f).mean(axis=(3, 5))
        y = jax.lax.conv_general_dilated(
            y, weights[scale], window_strides=(1, 1),
            padding=[(k - 1, k - 1), (k - 1, k - 1)],
            dimension_numbers=("NCHW", "OIHW", "NCHW"),
        ) + biases[scale][None, :, None, None]
        y = jnp.where(y >= 0, y, neg_slope * y)
        y = y[:, :, overshoot:-overshoot, overshoot:-overshoot]
        x_accum = y if x_accum is None else x_accum + y
        if scale > 0:
            x_accum = jnp.repeat(jnp.repeat(x_accum, 2, axis=2), 2, axis=3)
    return x_accum / num_scales


if __name__ == "__main__":
    num_scales, in_channels, out_channels, kernel_size = 3, 4, 4, 3
    B, H, W = 2, 16, 16

    key = jax.random.PRNGKey(0)
    keys = jax.random.split(key, 1 + 2 * num_scales)
    x = jax.random.normal(keys[0], (B, in_channels, H, W), dtype=jnp.float32)
    weights = [
        0.1 * jax.random.normal(keys[1 + 2 * s],
                                (out_channels, in_channels, kernel_size, kernel_size),
                                dtype=jnp.float32)
        for s in range(num_scales)
    ]
    biases = [
        0.1 * jax.random.normal(keys[2 + 2 * s], (out_channels,), dtype=jnp.float32)
        for s in range(num_scales)
    ]

    out = multi_scale_convolution(x, weights, biases, num_scales, kernel_size)
    out = jax.block_until_ready(out)

    ref = reference_forward(x, weights, biases, num_scales, kernel_size)
    assert out.shape == (B, out_channels, H, W), out.shape
    # bf16 MXU operands (f32 accumulation) -> a few 1e-3 absolute error vs the
    # f32 reference; keep a comfortable margin.
    err = float(jnp.max(jnp.abs(out - ref)))
    assert jnp.allclose(out, ref, atol=3e-2, rtol=3e-2), err

    print("KERNEL_OK")
</pallas_src>

<mosaic_0001>
module attributes {stable_mosaic.version = 11 : i64} {
  func.func @kernel(%arg0: i32, %arg1: memref<16x256xbf16, #tpu.memory_space<vmem>>, %arg2: memref<3x4x72xbf16, #tpu.memory_space<vmem>>, %arg3: memref<3x4x1xf32, #tpu.memory_space<vmem>>, %arg4: memref<256x64xbf16, #tpu.memory_space<vmem>>, %arg5: memref<256x16xbf16, #tpu.memory_space<vmem>>, %arg6: memref<64x256xbf16, #tpu.memory_space<vmem>>, %arg7: memref<16x256xbf16, #tpu.memory_space<vmem>>, %arg8: memref<8x256xf32, #tpu.memory_space<vmem>>) attributes {dimension_semantics = [#tpu.dimension_semantics<parallel>], iteration_bounds = array<i64: 1>, scalar_prefetch = 0 : i64, scratch_operands = 0 : i64, tpu.core_type = #tpu.core_type<tc>, window_params = [{transform_indices = @transform_0, window_bounds = array<i64: 16, 256>}, {pipeline_mode = #tpu.pipeline_mode<synchronous>, transform_indices = @transform_1, window_bounds = array<i64: 3, 4, 72>}, {pipeline_mode = #tpu.pipeline_mode<synchronous>, transform_indices = @transform_2, window_bounds = array<i64: 3, 4, 1>}, {pipeline_mode = #tpu.pipeline_mode<synchronous>, transform_indices = @transform_3, window_bounds = array<i64: 256, 64>}, {pipeline_mode = #tpu.pipeline_mode<synchronous>, transform_indices = @transform_4, window_bounds = array<i64: 256, 16>}, {pipeline_mode = #tpu.pipeline_mode<synchronous>, transform_indices = @transform_5, window_bounds = array<i64: 64, 256>}, {pipeline_mode = #tpu.pipeline_mode<synchronous>, transform_indices = @transform_6, window_bounds = array<i64: 16, 256>}, {transform_indices = @transform_7, window_bounds = array<i64: 8, 256>}]} {
    %c0 = arith.constant 0 : index
    %c0_0 = arith.constant 0 : index
    %0 = vector.load %arg1[%c0, %c0_0] : memref<16x256xbf16, #tpu.memory_space<vmem>>, vector<16x256xbf16>
    %cst = arith.constant 0.000000e+00 : f32
    %1 = vector.broadcast %cst : f32 to vector<4x256xf32>
    %cst_1 = arith.constant 0.000000e+00 : f32
    %2 = vector.broadcast %cst_1 : f32 to vector<4x256xf32>
    %cst_2 = arith.constant 0.000000e+00 : bf16
    %3 = vector.broadcast %cst_2 : bf16 to vector<16x17xbf16>
    %4 = tpu.concatenate %3, %0, %3 in 1 : vector<16x17xbf16>, vector<16x256xbf16>, vector<16x17xbf16> -> vector<16x290xbf16>
    %5 = tpu.iota {dimensions = array<i32: 1>} : vector<1x256xi32>
    %c16_i32 = arith.constant 16 : i32
    %c0_i32 = arith.constant 0 : i32
    %6 = arith.cmpi eq, %c16_i32, %c0_i32 : i32
    %c1_i32 = arith.constant 1 : i32
    %7 = arith.select %6, %c1_i32, %c16_i32 : i32
    %8 = vector.broadcast %7 : i32 to vector<1x256xi32>
    %9 = arith.remsi %5, %8 : vector<1x256xi32>
    %c0_i32_3 = arith.constant 0 : i32
    %10 = vector.broadcast %c0_i32_3 : i32 to vector<1x256xi32>
    %11 = arith.cmpi ne, %9, %10 : vector<1x256xi32>
    %c0_i32_4 = arith.constant 0 : i32
    %12 = vector.broadcast %c0_i32_4 : i32 to vector<1x256xi32>
    %13 = arith.cmpi slt, %9, %12 : vector<1x256xi32>
    %c0_i32_5 = arith.constant 0 : i32
    %14 = arith.cmpi slt, %7, %c0_i32_5 : i32
    %15 = vector.broadcast %14 : i1 to vector<1x256xi1>
    %16 = vector.broadcast %15 : vector<1x256xi1> to vector<1x256xi1>
    %17 = arith.xori %13, %16 : vector<1x256xi1>
    %18 = arith.andi %17, %11 : vector<1x256xi1>
    %19 = vector.broadcast %7 : i32 to vector<1x256xi32>
    %20 = arith.addi %9, %19 : vector<1x256xi32>
    %21 = arith.select %18, %20, %9 : vector<1x256xi1>, vector<1x256xi32>
    %c-1_i32 = arith.constant -1 : i32
    %22 = vector.broadcast %c-1_i32 : i32 to vector<1x256xi32>
    %23 = arith.addi %21, %22 : vector<1x256xi32>
    %c0_i32_6 = arith.constant 0 : i32
    %24 = vector.broadcast %c0_i32_6 : i32 to vector<1x256xi32>
    %25 = arith.cmpi sge, %23, %24 : vector<1x256xi32>
    %c-1_i32_7 = arith.constant -1 : i32
    %26 = vector.broadcast %c-1_i32_7 : i32 to vector<1x256xi32>
    %27 = arith.addi %21, %26 : vector<1x256xi32>
    %c16_i32_8 = arith.constant 16 : i32
    %28 = vector.broadcast %c16_i32_8 : i32 to vector<1x256xi32>
    %29 = arith.cmpi slt, %27, %28 : vector<1x256xi32>
    %30 = arith.andi %25, %29 : vector<1x256xi1>
    %c1_i32_9 = arith.constant 1 : i32
    %31 = vector.broadcast %c1_i32_9 : i32 to vector<1x256xi32>
    %32 = arith.addi %21, %31 : vector<1x256xi32>
    %c0_i32_10 = arith.constant 0 : i32
    %33 = vector.broadcast %c0_i32_10 : i32 to vector<1x256xi32>
    %34 = arith.cmpi sge, %32, %33 : vector<1x256xi32>
    %c1_i32_11 = arith.constant 1 : i32
    %35 = vector.broadcast %c1_i32_11 : i32 to vector<1x256xi32>
    %36 = arith.addi %21, %35 : vector<1x256xi32>
    %c16_i32_12 = arith.constant 16 : i32
    %37 = vector.broadcast %c16_i32_12 : i32 to vector<1x256xi32>
    %38 = arith.cmpi slt, %36, %37 : vector<1x256xi32>
    %39 = arith.andi %34, %38 : vector<1x256xi1>
    %40 = vector.extract_strided_slice %4 {offsets = [0, 0], sizes = [16, 256], strides = [1, 1]} : vector<16x290xbf16> to vector<16x256xbf16>
    %cst_13 = arith.constant 0.000000e+00 : bf16
    %41 = vector.broadcast %cst_13 : bf16 to vector<16x256xbf16>
    %42 = vector.shape_cast %30 : vector<1x256xi1> to vector<1x256xi1>
    %43 = vector.broadcast %42 : vector<1x256xi1> to vector<16x256xi1>
    %44 = arith.select %43, %40, %41 : vector<16x256xi1>, vector<16x256xbf16>
    %45 = vector.extract_strided_slice %4 {offsets = [0, 1], sizes = [16, 256], strides = [1, 1]} : vector<16x290xbf16> to vector<16x256xbf16>
    %46 = vector.extract_strided_slice %4 {offsets = [0, 2], sizes = [16, 256], strides = [1, 1]} : vector<16x290xbf16> to vector<16x256xbf16>
    %cst_14 = arith.constant 0.000000e+00 : bf16
    %47 = vector.broadcast %cst_14 : bf16 to vector<16x256xbf16>
    %48 = vector.shape_cast %39 : vector<1x256xi1> to vector<1x256xi1>
    %49 = vector.broadcast %48 : vector<1x256xi1> to vector<16x256xi1>
    %50 = arith.select %49, %46, %47 : vector<16x256xi1>, vector<16x256xbf16>
    %51 = vector.extract_strided_slice %4 {offsets = [0, 16], sizes = [16, 256], strides = [1, 1]} : vector<16x290xbf16> to vector<16x256xbf16>
    %cst_15 = arith.constant 0.000000e+00 : bf16
    %52 = vector.broadcast %cst_15 : bf16 to vector<16x256xbf16>
    %53 = vector.shape_cast %30 : vector<1x256xi1> to vector<1x256xi1>
    %54 = vector.broadcast %53 : vector<1x256xi1> to vector<16x256xi1>
    %55 = arith.select %54, %51, %52 : vector<16x256xi1>, vector<16x256xbf16>
    %56 = vector.extract_strided_slice %4 {offsets = [0, 17], sizes = [16, 256], strides = [1, 1]} : vector<16x290xbf16> to vector<16x256xbf16>
    %57 = vector.extract_strided_slice %4 {offsets = [0, 18], sizes = [16, 256], strides = [1, 1]} : vector<16x290xbf16> to vector<16x256xbf16>
    %cst_16 = arith.constant 0.000000e+00 : bf16
    %58 = vector.broadcast %cst_16 : bf16 to vector<16x256xbf16>
    %59 = vector.shape_cast %39 : vector<1x256xi1> to vector<1x256xi1>
    %60 = vector.broadcast %59 : vector<1x256xi1> to vector<16x256xi1>
    %61 = arith.select %60, %57, %58 : vector<16x256xi1>, vector<16x256xbf16>
    %62 = vector.extract_strided_slice %4 {offsets = [0, 32], sizes = [16, 256], strides = [1, 1]} : vector<16x290xbf16> to vector<16x256xbf16>
    %cst_17 = arith.constant 0.000000e+00 : bf16
    %63 = vector.broadcast %cst_17 : bf16 to vector<16x256xbf16>
    %64 = vector.shape_cast %30 : vector<1x256xi1> to vector<1x256xi1>
    %65 = vector.broadcast %64 : vector<1x256xi1> to vector<16x256xi1>
    %66 = arith.select %65, %62, %63 : vector<16x256xi1>, vector<16x256xbf16>
    %67 = vector.extract_strided_slice %4 {offsets = [0, 33], sizes = [16, 256], strides = [1, 1]} : vector<16x290xbf16> to vector<16x256xbf16>
    %68 = vector.extract_strided_slice %4 {offsets = [0, 34], sizes = [16, 256], strides = [1, 1]} : vector<16x290xbf16> to vector<16x256xbf16>
    %cst_18 = arith.constant 0.000000e+00 : bf16
    %69 = vector.broadcast %cst_18 : bf16 to vector<16x256xbf16>
    %70 = vector.shape_cast %39 : vector<1x256xi1> to vector<1x256xi1>
    %71 = vector.broadcast %70 : vector<1x256xi1> to vector<16x256xi1>
    %72 = arith.select %71, %68, %69 : vector<16x256xi1>, vector<16x256xbf16>
    %c0_19 = arith.constant 0 : index
    %c0_20 = arith.constant 0 : index
    %c0_21 = arith.constant 0 : index
    %73 = vector.load %arg2[%c0_19, %c0_20, %c0_21] : memref<3x4x72xbf16, #tpu.memory_space<vmem>>, vector<1x4x72xbf16>
    %74 = vector.shape_cast %73 : vector<1x4x72xbf16> to vector<4x72xbf16>
    %c0_22 = arith.constant 0 : index
    %c0_23 = arith.constant 0 : index
    %c0_24 = arith.constant 0 : index
    %75 = vector.load %arg3[%c0_22, %c0_23, %c0_24] : memref<3x4x1xf32, #tpu.memory_space<vmem>>, vector<1x4x1xf32>
    %76 = vector.shape_cast %75 : vector<1x4x1xf32> to vector<4x1xf32>
    %77 = vector.extract_strided_slice %44 {offsets = [0, 0], sizes = [8, 256], strides = [1, 1]} : vector<16x256xbf16> to vector<8x256xbf16>
    %78 = vector.extract_strided_slice %45 {offsets = [0, 0], sizes = [8, 256], strides = [1, 1]} : vector<16x256xbf16> to vector<8x256xbf16>
    %79 = vector.extract_strided_slice %50 {offsets = [0, 0], sizes = [8, 256], strides = [1, 1]} : vector<16x256xbf16> to vector<8x256xbf16>
    %80 = vector.extract_strided_slice %55 {offsets = [0, 0], sizes = [8, 256], strides = [1, 1]} : vector<16x256xbf16> to vector<8x256xbf16>
    %81 = vector.extract_strided_slice %56 {offsets = [0, 0], sizes = [8, 256], strides = [1, 1]} : vector<16x256xbf16> to vector<8x256xbf16>
    %82 = vector.extract_strided_slice %61 {offsets = [0, 0], sizes = [8, 256], strides = [1, 1]} : vector<16x256xbf16> to vector<8x256xbf16>
    %83 = vector.extract_strided_slice %66 {offsets = [0, 0], sizes = [8, 256], strides = [1, 1]} : vector<16x256xbf16> to vector<8x256xbf16>
    %84 = vector.extract_strided_slice %67 {offsets = [0, 0], sizes = [8, 256], strides = [1, 1]} : vector<16x256xbf16> to vector<8x256xbf16>
    %85 = vector.extract_strided_slice %72 {offsets = [0, 0], sizes = [8, 256], strides = [1, 1]} : vector<16x256xbf16> to vector<8x256xbf16>
    %86 = tpu.concatenate %77, %78, %79, %80, %81, %82, %83, %84, %85 in 0 : vector<8x256xbf16>, vector<8x256xbf16>, vector<8x256xbf16>, vector<8x256xbf16>, vector<8x256xbf16>, vector<8x256xbf16>, vector<8x256xbf16>, vector<8x256xbf16>, vector<8x256xbf16> -> vector<72x256xbf16>
    %cst_25 = arith.constant dense<0.000000e+00> : vector<4x256xf32>
    %87 = tpu.matmul %74, %86, %cst_25 {dimension_numbers = #tpu.dot_dimension_numbers<[1], [0], [0], [1], [0, 0, 1, 1], [], []>} : vector<4x72xbf16>, vector<72x256xbf16>, vector<4x256xf32> -> vector<4x256xf32>
    %88 = vector.broadcast %76 : vector<4x1xf32> to vector<4x256xf32>
    %89 = arith.addf %87, %88 : vector<4x256xf32>
    %cst_26 = arith.constant 0.000000e+00 : f32
    %90 = vector.broadcast %cst_26 : f32 to vector<4x256xf32>
    %91 = arith.cmpf oge, %89, %90 : vector<4x256xf32>
    %cst_27 = arith.constant 5.000000e-02 : f32
    %92 = vector.broadcast %cst_27 : f32 to vector<4x256xf32>
    %93 = arith.mulf %92, %89 : vector<4x256xf32>
    %94 = arith.select %91, %89, %93 : vector<4x256xi1>, vector<4x256xf32>
    %95 = arith.addf %1, %94 : vector<4x256xf32>
    %96 = vector.extract_strided_slice %44 {offsets = [8, 0], sizes = [8, 256], strides = [1, 1]} : vector<16x256xbf16> to vector<8x256xbf16>
    %97 = vector.extract_strided_slice %45 {offsets = [8, 0], sizes = [8, 256], strides = [1, 1]} : vector<16x256xbf16> to vector<8x256xbf16>
    %98 = vector.extract_strided_slice %50 {offsets = [8, 0], sizes = [8, 256], strides = [1, 1]} : vector<16x256xbf16> to vector<8x256xbf16>
    %99 = vector.extract_strided_slice %55 {offsets = [8, 0], sizes = [8, 256], strides = [1, 1]} : vector<16x256xbf16> to vector<8x256xbf16>
    %100 = vector.extract_strided_slice %56 {offsets = [8, 0], sizes = [8, 256], strides = [1, 1]} : vector<16x256xbf16> to vector<8x256xbf16>
    %101 = vector.extract_strided_slice %61 {offsets = [8, 0], sizes = [8, 256], strides = [1, 1]} : vector<16x256xbf16> to vector<8x256xbf16>
    %102 = vector.extract_strided_slice %66 {offsets = [8, 0], sizes = [8, 256], strides = [1, 1]} : vector<16x256xbf16> to vector<8x256xbf16>
    %103 = vector.extract_strided_slice %67 {offsets = [8, 0], sizes = [8, 256], strides = [1, 1]} : vector<16x256xbf16> to vector<8x256xbf16>
    %104 = vector.extract_strided_slice %72 {offsets = [8, 0], sizes = [8, 256], strides = [1, 1]} : vector<16x256xbf16> to vector<8x256xbf16>
    %105 = tpu.concatenate %96, %97, %98, %99, %100, %101, %102, %103, %104 in 0 : vector<8x256xbf16>, vector<8x256xbf16>, vector<8x256xbf16>, vector<8x256xbf16>, vector<8x256xbf16>, vector<8x256xbf16>, vector<8x256xbf16>, vector<8x256xbf16>, vector<8x256xbf16> -> vector<72x256xbf16>
    %cst_28 = arith.constant dense<0.000000e+00> : vector<4x256xf32>
    %106 = tpu.matmul %74, %105, %cst_28 {dimension_numbers = #tpu.dot_dimension_numbers<[1], [0], [0], [1], [0, 0, 1, 1], [], []>} : vector<4x72xbf16>, vector<72x256xbf16>, vector<4x256xf32> -> vector<4x256xf32>
    %107 = vector.broadcast %76 : vector<4x1xf32> to vector<4x256xf32>
    %108 = arith.addf %106, %107 : vector<4x256xf32>
    %cst_29 = arith.constant 0.000000e+00 : f32
    %109 = vector.broadcast %cst_29 : f32 to vector<4x256xf32>
    %110 = arith.cmpf oge, %108, %109 : vector<4x256xf32>
    %cst_30 = arith.constant 5.000000e-02 : f32
    %111 = vector.broadcast %cst_30 : f32 to vector<4x256xf32>
    %112 = arith.mulf %111, %108 : vector<4x256xf32>
    %113 = arith.select %110, %108, %112 : vector<4x256xi1>, vector<4x256xf32>
    %114 = arith.addf %2, %113 : vector<4x256xf32>
    %c0_31 = arith.constant 0 : index
    %c0_32 = arith.constant 0 : index
    %115 = vector.load %arg4[%c0_31, %c0_32] : memref<256x64xbf16, #tpu.memory_space<vmem>>, vector<256x64xbf16>
    %cst_33 = arith.constant dense<0.000000e+00> : vector<16x64xf32>
    %116 = tpu.matmul %0, %115, %cst_33 {dimension_numbers = #tpu.dot_dimension_numbers<[1], [0], [0], [1], [0, 0, 1, 1], [], []>} : vector<16x256xbf16>, vector<256x64xbf16>, vector<16x64xf32> -> vector<16x64xf32>
    %117 = arith.truncf %116 : vector<16x64xf32> to vector<16x64xbf16>
    %cst_34 = arith.constant 0.000000e+00 : bf16
    %118 = vector.broadcast %cst_34 : bf16 to vector<16x9xbf16>
    %119 = tpu.concatenate %118, %117, %118 in 1 : vector<16x9xbf16>, vector<16x64xbf16>, vector<16x9xbf16> -> vector<16x82xbf16>
    %120 = tpu.iota {dimensions = array<i32: 1>} : vector<1x64xi32>
    %c8_i32 = arith.constant 8 : i32
    %c0_i32_35 = arith.constant 0 : i32
    %121 = arith.cmpi eq, %c8_i32, %c0_i32_35 : i32
    %c1_i32_36 = arith.constant 1 : i32
    %122 = arith.select %121, %c1_i32_36, %c8_i32 : i32
    %123 = vector.broadcast %122 : i32 to vector<1x64xi32>
    %124 = arith.remsi %120, %123 : vector<1x64xi32>
    %c0_i32_37 = arith.constant 0 : i32
    %125 = vector.broadcast %c0_i32_37 : i32 to vector<1x64xi32>
    %126 = arith.cmpi ne, %124, %125 : vector<1x64xi32>
    %c0_i32_38 = arith.constant 0 : i32
    %127 = vector.broadcast %c0_i32_38 : i32 to vector<1x64xi32>
    %128 = arith.cmpi slt, %124, %127 : vector<1x64xi32>
    %c0_i32_39 = arith.constant 0 : i32
    %129 = arith.cmpi slt, %122, %c0_i32_39 : i32
    %130 = vector.broadcast %129 : i1 to vector<1x64xi1>
    %131 = vector.broadcast %130 : vector<1x64xi1> to vector<1x64xi1>
    %132 = arith.xori %128, %131 : vector<1x64xi1>
    %133 = arith.andi %132, %126 : vector<1x64xi1>
    %134 = vector.broadcast %122 : i32 to vector<1x64xi32>
    %135 = arith.addi %124, %134 : vector<1x64xi32>
    %136 = arith.select %133, %135, %124 : vector<1x64xi1>, vector<1x64xi32>
    %c-1_i32_40 = arith.constant -1 : i32
    %137 = vector.broadcast %c-1_i32_40 : i32 to vector<1x64xi32>
    %138 = arith.addi %136, %137 : vector<1x64xi32>
    %c0_i32_41 = arith.constant 0 : i32
    %139 = vector.broadcast %c0_i32_41 : i32 to vector<1x64xi32>
    %140 = arith.cmpi sge, %138, %139 : vector<1x64xi32>
    %c-1_i32_42 = arith.constant -1 : i32
    %141 = vector.broadcast %c-1_i32_42 : i32 to vector<1x64xi32>
    %142 = arith.addi %136, %141 : vector<1x64xi32>
    %c8_i32_43 = arith.constant 8 : i32
    %143 = vector.broadcast %c8_i32_43 : i32 to vector<1x64xi32>
    %144 = arith.cmpi slt, %142, %143 : vector<1x64xi32>
    %145 = arith.andi %140, %144 : vector<1x64xi1>
    %c1_i32_44 = arith.constant 1 : i32
    %146 = vector.broadcast %c1_i32_44 : i32 to vector<1x64xi32>
    %147 = arith.addi %136, %146 : vector<1x64xi32>
    %c0_i32_45 = arith.constant 0 : i32
    %148 = vector.broadcast %c0_i32_45 : i32 to vector<1x64xi32>
    %149 = arith.cmpi sge, %147, %148 : vector<1x64xi32>
    %c1_i32_46 = arith.constant 1 : i32
    %150 = vector.broadcast %c1_i32_46 : i32 to vector<1x64xi32>
    %151 = arith.addi %136, %150 : vector<1x64xi32>
    %c8_i32_47 = arith.constant 8 : i32
    %152 = vector.broadcast %c8_i32_47 : i32 to vector<1x64xi32>
    %153 = arith.cmpi slt, %151, %152 : vector<1x64xi32>
    %154 = arith.andi %149, %153 : vector<1x64xi1>
    %155 = vector.extract_strided_slice %119 {offsets = [0, 0], sizes = [16, 64], strides = [1, 1]} : vector<16x82xbf16> to vector<16x64xbf16>
    %cst_48 = arith.constant 0.000000e+00 : bf16
    %156 = vector.broadcast %cst_48 : bf16 to vector<16x64xbf16>
    %157 = vector.shape_cast %145 : vector<1x64xi1> to vector<1x64xi1>
    %158 = vector.broadcast %157 : vector<1x64xi1> to vector<16x64xi1>
    %159 = arith.select %158, %155, %156 : vector<16x64xi1>, vector<16x64xbf16>
    %160 = vector.extract_strided_slice %119 {offsets = [0, 1], sizes = [16, 64], strides = [1, 1]} : vector<16x82xbf16> to vector<16x64xbf16>
    %161 = vector.extract_strided_slice %119 {offsets = [0, 2], sizes = [16, 64], strides = [1, 1]} : vector<16x82xbf16> to vector<16x64xbf16>
    %cst_49 = arith.constant 0.000000e+00 : bf16
    %162 = vector.broadcast %cst_49 : bf16 to vector<16x64xbf16>
    %163 = vector.shape_cast %154 : vector<1x64xi1> to vector<1x64xi1>
    %164 = vector.broadcast %163 : vector<1x64xi1> to vector<16x64xi1>
    %165 = arith.select %164, %161, %162 : vector<16x64xi1>, vector<16x64xbf16>
    %166 = vector.extract_strided_slice %119 {offsets = [0, 8], sizes = [16, 64], strides = [1, 1]} : vector<16x82xbf16> to vector<16x64xbf16>
    %cst_50 = arith.constant 0.000000e+00 : bf16
    %167 = vector.broadcast %cst_50 : bf16 to vector<16x64xbf16>
    %168 = vector.shape_cast %145 : vector<1x64xi1> to vector<1x64xi1>
    %169 = vector.broadcast %168 : vector<1x64xi1> to vector<16x64xi1>
    %170 = arith.select %169, %166, %167 : vector<16x64xi1>, vector<16x64xbf16>
    %171 = vector.extract_strided_slice %119 {offsets = [0, 9], sizes = [16, 64], strides = [1, 1]} : vector<16x82xbf16> to vector<16x64xbf16>
    %172 = vector.extract_strided_slice %119 {offsets = [0, 10], sizes = [16, 64], strides = [1, 1]} : vector<16x82xbf16> to vector<16x64xbf16>
    %cst_51 = arith.constant 0.000000e+00 : bf16
    %173 = vector.broadcast %cst_51 : bf16 to vector<16x64xbf16>
    %174 = vector.shape_cast %154 : vector<1x64xi1> to vector<1x64xi1>
    %175 = vector.broadcast %174 : vector<1x64xi1> to vector<16x64xi1>
    %176 = arith.select %175, %172, %173 : vector<16x64xi1>, vector<16x64xbf16>
    %177 = vector.extract_strided_slice %119 {offsets = [0, 16], sizes = [16, 64], strides = [1, 1]} : vector<16x82xbf16> to vector<16x64xbf16>
    %cst_52 = arith.constant 0.000000e+00 : bf16
    %178 = vector.broadcast %cst_52 : bf16 to vector<16x64xbf16>
    %179 = vector.shape_cast %145 : vector<1x64xi1> to vector<1x64xi1>
    %180 = vector.broadcast %179 : vector<1x64xi1> to vector<16x64xi1>
    %181 = arith.select %180, %177, %178 : vector<16x64xi1>, vector<16x64xbf16>
    %182 = vector.extract_strided_slice %119 {offsets = [0, 17], sizes = [16, 64], strides = [1, 1]} : vector<16x82xbf16> to vector<16x64xbf16>
    %183 = vector.extract_strided_slice %119 {offsets = [0, 18], sizes = [16, 64], strides = [1, 1]} : vector<16x82xbf16> to vector<16x64xbf16>
    %cst_53 = arith.constant 0.000000e+00 : bf16
    %184 = vector.broadcast %cst_53 : bf16 to vector<16x64xbf16>
    %185 = vector.shape_cast %154 : vector<1x64xi1> to vector<1x64xi1>
    %186 = vector.broadcast %185 : vector<1x64xi1> to vector<16x64xi1>
    %187 = arith.select %186, %183, %184 : vector<16x64xi1>, vector<16x64xbf16>
    %c1 = arith.constant 1 : index
    %c0_54 = arith.constant 0 : index
    %c0_55 = arith.constant 0 : index
    %188 = vector.load %arg2[%c1, %c0_54, %c0_55] : memref<3x4x72xbf16, #tpu.memory_space<vmem>>, vector<1x4x72xbf16>
    %189 = vector.shape_cast %188 : vector<1x4x72xbf16> to vector<4x72xbf16>
    %c1_56 = arith.constant 1 : index
    %c0_57 = arith.constant 0 : index
    %c0_58 = arith.constant 0 : index
    %190 = vector.load %arg3[%c1_56, %c0_57, %c0_58] : memref<3x4x1xf32, #tpu.memory_space<vmem>>, vector<1x4x1xf32>
    %191 = vector.shape_cast %190 : vector<1x4x1xf32> to vector<4x1xf32>
    %192 = vector.extract_strided_slice %159 {offsets = [0, 0], sizes = [8, 64], strides = [1, 1]} : vector<16x64xbf16> to vector<8x64xbf16>
    %193 = vector.extract_strided_slice %160 {offsets = [0, 0], sizes = [8, 64], strides = [1, 1]} : vector<16x64xbf16> to vector<8x64xbf16>
    %194 = vector.extract_strided_slice %165 {offsets = [0, 0], sizes = [8, 64], strides = [1, 1]} : vector<16x64xbf16> to vector<8x64xbf16>
    %195 = vector.extract_strided_slice %170 {offsets = [0, 0], sizes = [8, 64], strides = [1, 1]} : vector<16x64xbf16> to vector<8x64xbf16>
    %196 = vector.extract_strided_slice %171 {offsets = [0, 0], sizes = [8, 64], strides = [1, 1]} : vector<16x64xbf16> to vector<8x64xbf16>
    %197 = vector.extract_strided_slice %176 {offsets = [0, 0], sizes = [8, 64], strides = [1, 1]} : vector<16x64xbf16> to vector<8x64xbf16>
    %198 = vector.extract_strided_slice %181 {offsets = [0, 0], sizes = [8, 64], strides = [1, 1]} : vector<16x64xbf16> to vector<8x64xbf16>
    %199 = vector.extract_strided_slice %182 {offsets = [0, 0], sizes = [8, 64], strides = [1, 1]} : vector<16x64xbf16> to vector<8x64xbf16>
    %200 = vector.extract_strided_slice %187 {offsets = [0, 0], sizes = [8, 64], strides = [1, 1]} : vector<16x64xbf16> to vector<8x64xbf16>
    %201 = tpu.concatenate %192, %193, %194, %195, %196, %197, %198, %199, %200 in 0 : vector<8x64xbf16>, vector<8x64xbf16>, vector<8x64xbf16>, vector<8x64xbf16>, vector<8x64xbf16>, vector<8x64xbf16>, vector<8x64xbf16>, vector<8x64xbf16>, vector<8x64xbf16> -> vector<72x64xbf16>
    %cst_59 = arith.constant dense<0.000000e+00> : vector<4x64xf32>
    %202 = tpu.matmul %189, %201, %cst_59 {dimension_numbers = #tpu.dot_dimension_numbers<[1], [0], [0], [1], [0, 0, 1, 1], [], []>} : vector<4x72xbf16>, vector<72x64xbf16>, vector<4x64xf32> -> vector<4x64xf32>
    %203 = vector.broadcast %191 : vector<4x1xf32> to vector<4x64xf32>
    %204 = arith.addf %202, %203 : vector<4x64xf32>
    %cst_60 = arith.constant 0.000000e+00 : f32
    %205 = vector.broadcast %cst_60 : f32 to vector<4x64xf32>
    %206 = arith.cmpf oge, %204, %205 : vector<4x64xf32>
    %cst_61 = arith.constant 5.000000e-02 : f32
    %207 = vector.broadcast %cst_61 : f32 to vector<4x64xf32>
    %208 = arith.mulf %207, %204 : vector<4x64xf32>
    %209 = arith.select %206, %204, %208 : vector<4x64xi1>, vector<4x64xf32>
    %210 = arith.truncf %209 : vector<4x64xf32> to vector<4x64xbf16>
    %c0_62 = arith.constant 0 : index
    %c0_63 = arith.constant 0 : index
    %211 = vector.load %arg6[%c0_62, %c0_63] : memref<64x256xbf16, #tpu.memory_space<vmem>>, vector<64x256xbf16>
    %cst_64 = arith.constant dense<0.000000e+00> : vector<4x256xf32>
    %212 = tpu.matmul %210, %211, %cst_64 {dimension_numbers = #tpu.dot_dimension_numbers<[1], [0], [0], [1], [0, 0, 1, 1], [], []>} : vector<4x64xbf16>, vector<64x256xbf16>, vector<4x256xf32> -> vector<4x256xf32>
    %213 = arith.addf %95, %212 : vector<4x256xf32>
    %214 = vector.extract_strided_slice %159 {offsets = [8, 0], sizes = [8, 64], strides = [1, 1]} : vector<16x64xbf16> to vector<8x64xbf16>
    %215 = vector.extract_strided_slice %160 {offsets = [8, 0], sizes = [8, 64], strides = [1, 1]} : vector<16x64xbf16> to vector<8x64xbf16>
    %216 = vector.extract_strided_slice %165 {offsets = [8, 0], sizes = [8, 64], strides = [1, 1]} : vector<16x64xbf16> to vector<8x64xbf16>
    %217 = vector.extract_strided_slice %170 {offsets = [8, 0], sizes = [8, 64], strides = [1, 1]} : vector<16x64xbf16> to vector<8x64xbf16>
    %218 = vector.extract_strided_slice %171 {offsets = [8, 0], sizes = [8, 64], strides = [1, 1]} : vector<16x64xbf16> to vector<8x64xbf16>
    %219 = vector.extract_strided_slice %176 {offsets = [8, 0], sizes = [8, 64], strides = [1, 1]} : vector<16x64xbf16> to vector<8x64xbf16>
    %220 = vector.extract_strided_slice %181 {offsets = [8, 0], sizes = [8, 64], strides = [1, 1]} : vector<16x64xbf16> to vector<8x64xbf16>
    %221 = vector.extract_strided_slice %182 {offsets = [8, 0], sizes = [8, 64], strides = [1, 1]} : vector<16x64xbf16> to vector<8x64xbf16>
    %222 = vector.extract_strided_slice %187 {offsets = [8, 0], sizes = [8, 64], strides = [1, 1]} : vector<16x64xbf16> to vector<8x64xbf16>
    %223 = tpu.concatenate %214, %215, %216, %217, %218, %219, %220, %221, %222 in 0 : vector<8x64xbf16>, vector<8x64xbf16>, vector<8x64xbf16>, vector<8x64xbf16>, vector<8x64xbf16>, vector<8x64xbf16>, vector<8x64xbf16>, vector<8x64xbf16>, vector<8x64xbf16> -> vector<72x64xbf16>
    %cst_65 = arith.constant dense<0.000000e+00> : vector<4x64xf32>
    %224 = tpu.matmul %189, %223, %cst_65 {dimension_numbers = #tpu.dot_dimension_numbers<[1], [0], [0], [1], [0, 0, 1, 1], [], []>} : vector<4x72xbf16>, vector<72x64xbf16>, vector<4x64xf32> -> vector<4x64xf32>
    %225 = vector.broadcast %191 : vector<4x1xf32> to vector<4x64xf32>
    %226 = arith.addf %224, %225 : vector<4x64xf32>
    %cst_66 = arith.constant 0.000000e+00 : f32
    %227 = vector.broadcast %cst_66 : f32 to vector<4x64xf32>
    %228 = arith.cmpf oge, %226, %227 : vector<4x64xf32>
    %cst_67 = arith.constant 5.000000e-02 : f32
    %229 = vector.broadcast %cst_67 : f32 to vector<4x64xf32>
    %230 = arith.mulf %229, %226 : vector<4x64xf32>
    %231 = arith.select %228, %226, %230 : vector<4x64xi1>, vector<4x64xf32>
    %232 = arith.truncf %231 : vector<4x64xf32> to vector<4x64xbf16>
    %c0_68 = arith.constant 0 : index
    %c0_69 = arith.constant 0 : index
    %233 = vector.load %arg6[%c0_68, %c0_69] : memref<64x256xbf16, #tpu.memory_space<vmem>>, vector<64x256xbf16>
    %cst_70 = arith.constant dense<0.000000e+00> : vector<4x256xf32>
    %234 = tpu.matmul %232, %233, %cst_70 {dimension_numbers = #tpu.dot_dimension_numbers<[1], [0], [0], [1], [0, 0, 1, 1], [], []>} : vector<4x64xbf16>, vector<64x256xbf16>, vector<4x256xf32> -> vector<4x256xf32>
    %235 = arith.addf %114, %234 : vector<4x256xf32>
    %c0_71 = arith.constant 0 : index
    %c0_72 = arith.constant 0 : index
    %236 = vector.load %arg5[%c0_71, %c0_72] : memref<256x16xbf16, #tpu.memory_space<vmem>>, vector<256x16xbf16>
    %cst_73 = arith.constant dense<0.000000e+00> : vector<16x16xf32>
    %237 = tpu.matmul %0, %236, %cst_73 {dimension_numbers = #tpu.dot_dimension_numbers<[1], [0], [0], [1], [0, 0, 1, 1], [], []>} : vector<16x256xbf16>, vector<256x16xbf16>, vector<16x16xf32> -> vector<16x16xf32>
    %238 = arith.truncf %237 : vector<16x16xf32> to vector<16x16xbf16>
    %cst_74 = arith.constant 0.000000e+00 : bf16
    %239 = vector.broadcast %cst_74 : bf16 to vector<16x5xbf16>
    %240 = tpu.concatenate %239, %238, %239 in 1 : vector<16x5xbf16>, vector<16x16xbf16>, vector<16x5xbf16> -> vector<16x26xbf16>
    %241 = tpu.iota {dimensions = array<i32: 1>} : vector<1x16xi32>
    %c4_i32 = arith.constant 4 : i32
    %c0_i32_75 = arith.constant 0 : i32
    %242 = arith.cmpi eq, %c4_i32, %c0_i32_75 : i32
    %c1_i32_76 = arith.constant 1 : i32
    %243 = arith.select %242, %c1_i32_76, %c4_i32 : i32
    %244 = vector.broadcast %243 : i32 to vector<1x16xi32>
    %245 = arith.remsi %241, %244 : vector<1x16xi32>
    %c0_i32_77 = arith.constant 0 : i32
    %246 = vector.broadcast %c0_i32_77 : i32 to vector<1x16xi32>
    %247 = arith.cmpi ne, %245, %246 : vector<1x16xi32>
    %c0_i32_78 = arith.constant 0 : i32
    %248 = vector.broadcast %c0_i32_78 : i32 to vector<1x16xi32>
    %249 = arith.cmpi slt, %245, %248 : vector<1x16xi32>
    %c0_i32_79 = arith.constant 0 : i32
    %250 = arith.cmpi slt, %243, %c0_i32_79 : i32
    %251 = vector.broadcast %250 : i1 to vector<1x16xi1>
    %252 = vector.broadcast %251 : vector<1x16xi1> to vector<1x16xi1>
    %253 = arith.xori %249, %252 : vector<1x16xi1>
    %254 = arith.andi %253, %247 : vector<1x16xi1>
    %255 = vector.broadcast %243 : i32 to vector<1x16xi32>
    %256 = arith.addi %245, %255 : vector<1x16xi32>
    %257 = arith.select %254, %256, %245 : vector<1x16xi1>, vector<1x16xi32>
    %c-1_i32_80 = arith.constant -1 : i32
    %258 = vector.broadcast %c-1_i32_80 : i32 to vector<1x16xi32>
    %259 = arith.addi %257, %258 : vector<1x16xi32>
    %c0_i32_81 = arith.constant 0 : i32
    %260 = vector.broadcast %c0_i32_81 : i32 to vector<1x16xi32>
    %261 = arith.cmpi sge, %259, %260 : vector<1x16xi32>
    %c-1_i32_82 = arith.constant -1 : i32
    %262 = vector.broadcast %c-1_i32_82 : i32 to vector<1x16xi32>
    %263 = arith.addi %257, %262 : vector<1x16xi32>
    %c4_i32_83 = arith.constant 4 : i32
    %264 = vector.broadcast %c4_i32_83 : i32 to vector<1x16xi32>
    %265 = arith.cmpi slt, %263, %264 : vector<1x16xi32>
    %266 = arith.andi %261, %265 : vector<1x16xi1>
    %c1_i32_84 = arith.constant 1 : i32
    %267 = vector.broadcast %c1_i32_84 : i32 to vector<1x16xi32>
    %268 = arith.addi %257, %267 : vector<1x16xi32>
    %c0_i32_85 = arith.constant 0 : i32
    %269 = vector.broadcast %c0_i32_85 : i32 to vector<1x16xi32>
    %270 = arith.cmpi sge, %268, %269 : vector<1x16xi32>
    %c1_i32_86 = arith.constant 1 : i32
    %271 = vector.broadcast %c1_i32_86 : i32 to vector<1x16xi32>
    %272 = arith.addi %257, %271 : vector<1x16xi32>
    %c4_i32_87 = arith.constant 4 : i32
    %273 = vector.broadcast %c4_i32_87 : i32 to vector<1x16xi32>
    %274 = arith.cmpi slt, %272, %273 : vector<1x16xi32>
    %275 = arith.andi %270, %274 : vector<1x16xi1>
    %276 = vector.extract_strided_slice %240 {offsets = [0, 0], sizes = [16, 16], strides = [1, 1]} : vector<16x26xbf16> to vector<16x16xbf16>
    %cst_88 = arith.constant 0.000000e+00 : bf16
    %277 = vector.broadcast %cst_88 : bf16 to vector<16x16xbf16>
    %278 = vector.shape_cast %266 : vector<1x16xi1> to vector<1x16xi1>
    %279 = vector.broadcast %278 : vector<1x16xi1> to vector<16x16xi1>
    %280 = arith.select %279, %276, %277 : vector<16x16xi1>, vector<16x16xbf16>
    %281 = vector.extract_strided_slice %240 {offsets = [0, 1], sizes = [16, 16], strides = [1, 1]} : vector<16x26xbf16> to vector<16x16xbf16>
    %282 = vector.extract_strided_slice %240 {offsets = [0, 2], sizes = [16, 16], strides = [1, 1]} : vector<16x26xbf16> to vector<16x16xbf16>
    %cst_89 = arith.constant 0.000000e+00 : bf16
    %283 = vector.broadcast %cst_89 : bf16 to vector<16x16xbf16>
    %284 = vector.shape_cast %275 : vector<1x16xi1> to vector<1x16xi1>
    %285 = vector.broadcast %284 : vector<1x16xi1> to vector<16x16xi1>
    %286 = arith.select %285, %282, %283 : vector<16x16xi1>, vector<16x16xbf16>
    %287 = vector.extract_strided_slice %240 {offsets = [0, 4], sizes = [16, 16], strides = [1, 1]} : vector<16x26xbf16> to vector<16x16xbf16>
    %cst_90 = arith.constant 0.000000e+00 : bf16
    %288 = vector.broadcast %cst_90 : bf16 to vector<16x16xbf16>
    %289 = vector.shape_cast %266 : vector<1x16xi1> to vector<1x16xi1>
    %290 = vector.broadcast %289 : vector<1x16xi1> to vector<16x16xi1>
    %291 = arith.select %290, %287, %288 : vector<16x16xi1>, vector<16x16xbf16>
    %292 = vector.extract_strided_slice %240 {offsets = [0, 5], sizes = [16, 16], strides = [1, 1]} : vector<16x26xbf16> to vector<16x16xbf16>
    %293 = vector.extract_strided_slice %240 {offsets = [0, 6], sizes = [16, 16], strides = [1, 1]} : vector<16x26xbf16> to vector<16x16xbf16>
    %cst_91 = arith.constant 0.000000e+00 : bf16
    %294 = vector.broadcast %cst_91 : bf16 to vector<16x16xbf16>
    %295 = vector.shape_cast %275 : vector<1x16xi1> to vector<1x16xi1>
    %296 = vector.broadcast %295 : vector<1x16xi1> to vector<16x16xi1>
    %297 = arith.select %296, %293, %294 : vector<16x16xi1>, vector<16x16xbf16>
    %298 = vector.extract_strided_slice %240 {offsets = [0, 8], sizes = [16, 16], strides = [1, 1]} : vector<16x26xbf16> to vector<16x16xbf16>
    %cst_92 = arith.constant 0.000000e+00 : bf16
    %299 = vector.broadcast %cst_92 : bf16 to vector<16x16xbf16>
    %300 = vector.shape_cast %266 : vector<1x16xi1> to vector<1x16xi1>
    %301 = vector.broadcast %300 : vector<1x16xi1> to vector<16x16xi1>
    %302 = arith.select %301, %298, %299 : vector<16x16xi1>, vector<16x16xbf16>
    %303 = vector.extract_strided_slice %240 {offsets = [0, 9], sizes = [16, 16], strides = [1, 1]} : vector<16x26xbf16> to vector<16x16xbf16>
    %304 = vector.extract_strided_slice %240 {offsets = [0, 10], sizes = [16, 16], strides = [1, 1]} : vector<16x26xbf16> to vector<16x16xbf16>
    %cst_93 = arith.constant 0.000000e+00 : bf16
    %305 = vector.broadcast %cst_93 : bf16 to vector<16x16xbf16>
    %306 = vector.shape_cast %275 : vector<1x16xi1> to vector<1x16xi1>
    %307 = vector.broadcast %306 : vector<1x16xi1> to vector<16x16xi1>
    %308 = arith.select %307, %304, %305 : vector<16x16xi1>, vector<16x16xbf16>
    %c2 = arith.constant 2 : index
    %c0_94 = arith.constant 0 : index
    %c0_95 = arith.constant 0 : index
    %309 = vector.load %arg2[%c2, %c0_94, %c0_95] : memref<3x4x72xbf16, #tpu.memory_space<vmem>>, vector<1x4x72xbf16>
    %310 = vector.shape_cast %309 : vector<1x4x72xbf16> to vector<4x72xbf16>
    %c2_96 = arith.constant 2 : index
    %c0_97 = arith.constant 0 : index
    %c0_98 = arith.constant 0 : index
    %311 = vector.load %arg3[%c2_96, %c0_97, %c0_98] : memref<3x4x1xf32, #tpu.memory_space<vmem>>, vector<1x4x1xf32>
    %312 = vector.shape_cast %311 : vector<1x4x1xf32> to vector<4x1xf32>
    %313 = vector.extract_strided_slice %280 {offsets = [0, 0], sizes = [8, 16], strides = [1, 1]} : vector<16x16xbf16> to vector<8x16xbf16>
    %314 = vector.extract_strided_slice %281 {offsets = [0, 0], sizes = [8, 16], strides = [1, 1]} : vector<16x16xbf16> to vector<8x16xbf16>
    %315 = vector.extract_strided_slice %286 {offsets = [0, 0], sizes = [8, 16], strides = [1, 1]} : vector<16x16xbf16> to vector<8x16xbf16>
    %316 = vector.extract_strided_slice %291 {offsets = [0, 0], sizes = [8, 16], strides = [1, 1]} : vector<16x16xbf16> to vector<8x16xbf16>
    %317 = vector.extract_strided_slice %292 {offsets = [0, 0], sizes = [8, 16], strides = [1, 1]} : vector<16x16xbf16> to vector<8x16xbf16>
    %318 = vector.extract_strided_slice %297 {offsets = [0, 0], sizes = [8, 16], strides = [1, 1]} : vector<16x16xbf16> to vector<8x16xbf16>
    %319 = vector.extract_strided_slice %302 {offsets = [0, 0], sizes = [8, 16], strides = [1, 1]} : vector<16x16xbf16> to vector<8x16xbf16>
    %320 = vector.extract_strided_slice %303 {offsets = [0, 0], sizes = [8, 16], strides = [1, 1]} : vector<16x16xbf16> to vector<8x16xbf16>
    %321 = vector.extract_strided_slice %308 {offsets = [0, 0], sizes = [8, 16], strides = [1, 1]} : vector<16x16xbf16> to vector<8x16xbf16>
    %322 = tpu.concatenate %313, %314, %315, %316, %317, %318, %319, %320, %321 in 0 : vector<8x16xbf16>, vector<8x16xbf16>, vector<8x16xbf16>, vector<8x16xbf16>, vector<8x16xbf16>, vector<8x16xbf16>, vector<8x16xbf16>, vector<8x16xbf16>, vector<8x16xbf16> -> vector<72x16xbf16>
    %cst_99 = arith.constant dense<0.000000e+00> : vector<4x16xf32>
    %323 = tpu.matmul %310, %322, %cst_99 {dimension_numbers = #tpu.dot_dimension_numbers<[1], [0], [0], [1], [0, 0, 1, 1], [], []>} : vector<4x72xbf16>, vector<72x16xbf16>, vector<4x16xf32> -> vector<4x16xf32>
    %324 = vector.broadcast %312 : vector<4x1xf32> to vector<4x16xf32>
    %325 = arith.addf %323, %324 : vector<4x16xf32>
    %cst_100 = arith.constant 0.000000e+00 : f32
    %326 = vector.broadcast %cst_100 : f32 to vector<4x16xf32>
    %327 = arith.cmpf oge, %325, %326 : vector<4x16xf32>
    %cst_101 = arith.constant 5.000000e-02 : f32
    %328 = vector.broadcast %cst_101 : f32 to vector<4x16xf32>
    %329 = arith.mulf %328, %325 : vector<4x16xf32>
    %330 = arith.select %327, %325, %329 : vector<4x16xi1>, vector<4x16xf32>
    %331 = arith.truncf %330 : vector<4x16xf32> to vector<4x16xbf16>
    %c0_102 = arith.constant 0 : index
    %c0_103 = arith.constant 0 : index
    %332 = vector.load %arg7[%c0_102, %c0_103] : memref<16x256xbf16, #tpu.memory_space<vmem>>, vector<16x256xbf16>
    %cst_104 = arith.constant dense<0.000000e+00> : vector<4x256xf32>
    %333 = tpu.matmul %331, %332, %cst_104 {dimension_numbers = #tpu.dot_dimension_numbers<[1], [0], [0], [1], [0, 0, 1, 1], [], []>} : vector<4x16xbf16>, vector<16x256xbf16>, vector<4x256xf32> -> vector<4x256xf32>
    %334 = arith.addf %213, %333 : vector<4x256xf32>
    %335 = vector.extract_strided_slice %280 {offsets = [8, 0], sizes = [8, 16], strides = [1, 1]} : vector<16x16xbf16> to vector<8x16xbf16>
    %336 = vector.extract_strided_slice %281 {offsets = [8, 0], sizes = [8, 16], strides = [1, 1]} : vector<16x16xbf16> to vector<8x16xbf16>
    %337 = vector.extract_strided_slice %286 {offsets = [8, 0], sizes = [8, 16], strides = [1, 1]} : vector<16x16xbf16> to vector<8x16xbf16>
    %338 = vector.extract_strided_slice %291 {offsets = [8, 0], sizes = [8, 16], strides = [1, 1]} : vector<16x16xbf16> to vector<8x16xbf16>
    %339 = vector.extract_strided_slice %292 {offsets = [8, 0], sizes = [8, 16], strides = [1, 1]} : vector<16x16xbf16> to vector<8x16xbf16>
    %340 = vector.extract_strided_slice %297 {offsets = [8, 0], sizes = [8, 16], strides = [1, 1]} : vector<16x16xbf16> to vector<8x16xbf16>
    %341 = vector.extract_strided_slice %302 {offsets = [8, 0], sizes = [8, 16], strides = [1, 1]} : vector<16x16xbf16> to vector<8x16xbf16>
    %342 = vector.extract_strided_slice %303 {offsets = [8, 0], sizes = [8, 16], strides = [1, 1]} : vector<16x16xbf16> to vector<8x16xbf16>
    %343 = vector.extract_strided_slice %308 {offsets = [8, 0], sizes = [8, 16], strides = [1, 1]} : vector<16x16xbf16> to vector<8x16xbf16>
    %344 = tpu.concatenate %335, %336, %337, %338, %339, %340, %341, %342, %343 in 0 : vector<8x16xbf16>, vector<8x16xbf16>, vector<8x16xbf16>, vector<8x16xbf16>, vector<8x16xbf16>, vector<8x16xbf16>, vector<8x16xbf16>, vector<8x16xbf16>, vector<8x16xbf16> -> vector<72x16xbf16>
    %cst_105 = arith.constant dense<0.000000e+00> : vector<4x16xf32>
    %345 = tpu.matmul %310, %344, %cst_105 {dimension_numbers = #tpu.dot_dimension_numbers<[1], [0], [0], [1], [0, 0, 1, 1], [], []>} : vector<4x72xbf16>, vector<72x16xbf16>, vector<4x16xf32> -> vector<4x16xf32>
    %346 = vector.broadcast %312 : vector<4x1xf32> to vector<4x16xf32>
    %347 = arith.addf %345, %346 : vector<4x16xf32>
    %cst_106 = arith.constant 0.000000e+00 : f32
    %348 = vector.broadcast %cst_106 : f32 to vector<4x16xf32>
    %349 = arith.cmpf oge, %347, %348 : vector<4x16xf32>
    %cst_107 = arith.constant 5.000000e-02 : f32
    %350 = vector.broadcast %cst_107 : f32 to vector<4x16xf32>
    %351 = arith.mulf %350, %347 : vector<4x16xf32>
    %352 = arith.select %349, %347, %351 : vector<4x16xi1>, vector<4x16xf32>
    %353 = arith.truncf %352 : vector<4x16xf32> to vector<4x16xbf16>
    %c0_108 = arith.constant 0 : index
    %c0_109 = arith.constant 0 : index
    %354 = vector.load %arg7[%c0_108, %c0_109] : memref<16x256xbf16, #tpu.memory_space<vmem>>, vector<16x256xbf16>
    %cst_110 = arith.constant dense<0.000000e+00> : vector<4x256xf32>
    %355 = tpu.matmul %353, %354, %cst_110 {dimension_numbers = #tpu.dot_dimension_numbers<[1], [0], [0], [1], [0, 0, 1, 1], [], []>} : vector<4x16xbf16>, vector<16x256xbf16>, vector<4x256xf32> -> vector<4x256xf32>
    %356 = arith.addf %235, %355 : vector<4x256xf32>
    %357 = tpu.concatenate %334, %356 in 0 : vector<4x256xf32>, vector<4x256xf32> -> vector<8x256xf32>
    %c0_111 = arith.constant 0 : index
    %c0_112 = arith.constant 0 : index
    %358 = vector.load %arg8[%c0_111, %c0_112] : memref<8x256xf32, #tpu.memory_space<vmem>>, vector<8x256xf32>
    tpu.vector_store %arg8[%c0_111, %c0_112], %357 {strides = array<i32>} : memref<8x256xf32, #tpu.memory_space<vmem>>, vector<8x256xf32>,
    return
  }
  func.func @transform_0(%arg0: i32) -> (i32, i32) {
    %c0_i32 = arith.constant 0 : i32
    %c0_i32_0 = arith.constant 0 : i32
    return %arg0, %c0_i32 : i32, i32
  }
  func.func @transform_1(%arg0: i32) -> (i32, i32, i32) {
    %c0_i32 = arith.constant 0 : i32
    %c0_i32_0 = arith.constant 0 : i32
    %c0_i32_1 = arith.constant 0 : i32
    %c0_i32_2 = arith.constant 0 : i32
    return %c0_i32, %c0_i32_0, %c0_i32_1 : i32, i32, i32
  }
  func.func @transform_2(%arg0: i32) -> (i32, i32, i32) {
    %c0_i32 = arith.constant 0 : i32
    %c0_i32_0 = arith.constant 0 : i32
    %c0_i32_1 = arith.constant 0 : i32
    %c0_i32_2 = arith.constant 0 : i32
    return %c0_i32, %c0_i32_0, %c0_i32_1 : i32, i32, i32
  }
  func.func @transform_3(%arg0: i32) -> (i32, i32) {
    %c0_i32 = arith.constant 0 : i32
    %c0_i32_0 = arith.constant 0 : i32
    %c0_i32_1 = arith.constant 0 : i32
    return %c0_i32, %c0_i32_0 : i32, i32
  }
  func.func @transform_4(%arg0: i32) -> (i32, i32) {
    %c0_i32 = arith.constant 0 : i32
    %c0_i32_0 = arith.constant 0 : i32
    %c0_i32_1 = arith.constant 0 : i32
    return %c0_i32, %c0_i32_0 : i32, i32
  }
  func.func @transform_5(%arg0: i32) -> (i32, i32) {
    %c0_i32 = arith.constant 0 : i32
    %c0_i32_0 = arith.constant 0 : i32
    %c0_i32_1 = arith.constant 0 : i32
    return %c0_i32, %c0_i32_0 : i32, i32
  }
  func.func @transform_6(%arg0: i32) -> (i32, i32) {
    %c0_i32 = arith.constant 0 : i32
    %c0_i32_0 = arith.constant 0 : i32
    %c0_i32_1 = arith.constant 0 : i32
    return %c0_i32, %c0_i32_0 : i32, i32
  }
  func.func @transform_7(%arg0: i32) -> (i32, i32) {
    %c0_i32 = arith.constant 0 : i32
    %c0_i32_0 = arith.constant 0 : i32
    return %arg0, %c0_i32 : i32, i32
  }
}

module attributes {stable_mosaic.version = 11 : i64} {
  func.func @kernel(%arg0: i32, %arg1: memref<16x256xbf16, #tpu.memory_space<vmem>>, %arg2: memref<3x4x72xbf16, #tpu.memory_space<vmem>>, %arg3: memref<3x4x1xf32, #tpu.memory_space<vmem>>, %arg4: memref<256x64xbf16, #tpu.memory_space<vmem>>, %arg5: memref<256x16xbf16, #tpu.memory_space<vmem>>, %arg6: memref<64x256xbf16, #tpu.memory_space<vmem>>, %arg7: memref<16x256xbf16, #tpu.memory_space<vmem>>, %arg8: memref<8x256xf32, #tpu.memory_space<vmem>>) attributes {dimension_semantics = [#tpu.dimension_semantics<parallel>], iteration_bounds = array<i64: 1>, scalar_prefetch = 0 : i64, scratch_operands = 0 : i64, tpu.core_type = #tpu.core_type<tc>, window_params = [{transform_indices = @transform_0, window_bounds = array<i64: 16, 256>}, {pipeline_mode = #tpu.pipeline_mode<synchronous>, transform_indices = @transform_1, window_bounds = array<i64: 3, 4, 72>}, {pipeline_mode = #tpu.pipeline_mode<synchronous>, transform_indices = @transform_2, window_bounds = array<i64: 3, 4, 1>}, {pipeline_mode = #tpu.pipeline_mode<synchronous>, transform_indices = @transform_3, window_bounds = array<i64: 256, 64>}, {pipeline_mode = #tpu.pipeline_mode<synchronous>, transform_indices = @transform_4, window_bounds = array<i64: 256, 16>}, {pipeline_mode = #tpu.pipeline_mode<synchronous>, transform_indices = @transform_5, window_bounds = array<i64: 64, 256>}, {pipeline_mode = #tpu.pipeline_mode<synchronous>, transform_indices = @transform_6, window_bounds = array<i64: 16, 256>}, {transform_indices = @transform_7, window_bounds = array<i64: 8, 256>}]} {
    %c0 = arith.constant 0 : index
    %c0_0 = arith.constant 0 : index
    %0 = vector.load %arg1[%c0, %c0_0] : memref<16x256xbf16, #tpu.memory_space<vmem>>, vector<16x256xbf16>
    %cst = arith.constant 0.000000e+00 : f32
    %1 = vector.broadcast %cst : f32 to vector<4x256xf32>
    %cst_1 = arith.constant 0.000000e+00 : f32
    %2 = vector.broadcast %cst_1 : f32 to vector<4x256xf32>
    %cst_2 = arith.constant 0.000000e+00 : bf16
    %3 = vector.broadcast %cst_2 : bf16 to vector<16x17xbf16>
    %4 = tpu.concatenate %3, %0, %3 in 1 : vector<16x17xbf16>, vector<16x256xbf16>, vector<16x17xbf16> -> vector<16x290xbf16>
    %5 = tpu.iota {dimensions = array<i32: 1>} : vector<1x256xi32>
    %c16_i32 = arith.constant 16 : i32
    %c0_i32 = arith.constant 0 : i32
    %6 = arith.cmpi eq, %c16_i32, %c0_i32 : i32
    %c1_i32 = arith.constant 1 : i32
    %7 = arith.select %6, %c1_i32, %c16_i32 : i32
    %8 = vector.broadcast %7 : i32 to vector<1x256xi32>
    %9 = arith.remsi %5, %8 : vector<1x256xi32>
    %c0_i32_3 = arith.constant 0 : i32
    %10 = vector.broadcast %c0_i32_3 : i32 to vector<1x256xi32>
    %11 = arith.cmpi ne, %9, %10 : vector<1x256xi32>
    %c0_i32_4 = arith.constant 0 : i32
    %12 = vector.broadcast %c0_i32_4 : i32 to vector<1x256xi32>
    %13 = arith.cmpi slt, %9, %12 : vector<1x256xi32>
    %c0_i32_5 = arith.constant 0 : i32
    %14 = arith.cmpi slt, %7, %c0_i32_5 : i32
    %15 = vector.broadcast %14 : i1 to vector<1x256xi1>
    %16 = vector.broadcast %15 : vector<1x256xi1> to vector<1x256xi1>
    %17 = arith.xori %13, %16 : vector<1x256xi1>
    %18 = arith.andi %17, %11 : vector<1x256xi1>
    %19 = vector.broadcast %7 : i32 to vector<1x256xi32>
    %20 = arith.addi %9, %19 : vector<1x256xi32>
    %21 = arith.select %18, %20, %9 : vector<1x256xi1>, vector<1x256xi32>
    %c-1_i32 = arith.constant -1 : i32
    %22 = vector.broadcast %c-1_i32 : i32 to vector<1x256xi32>
    %23 = arith.addi %21, %22 : vector<1x256xi32>
    %c0_i32_6 = arith.constant 0 : i32
    %24 = vector.broadcast %c0_i32_6 : i32 to vector<1x256xi32>
    %25 = arith.cmpi sge, %23, %24 : vector<1x256xi32>
    %c-1_i32_7 = arith.constant -1 : i32
    %26 = vector.broadcast %c-1_i32_7 : i32 to vector<1x256xi32>
    %27 = arith.addi %21, %26 : vector<1x256xi32>
    %c16_i32_8 = arith.constant 16 : i32
    %28 = vector.broadcast %c16_i32_8 : i32 to vector<1x256xi32>
    %29 = arith.cmpi slt, %27, %28 : vector<1x256xi32>
    %30 = arith.andi %25, %29 : vector<1x256xi1>
    %c1_i32_9 = arith.constant 1 : i32
    %31 = vector.broadcast %c1_i32_9 : i32 to vector<1x256xi32>
    %32 = arith.addi %21, %31 : vector<1x256xi32>
    %c0_i32_10 = arith.constant 0 : i32
    %33 = vector.broadcast %c0_i32_10 : i32 to vector<1x256xi32>
    %34 = arith.cmpi sge, %32, %33 : vector<1x256xi32>
    %c1_i32_11 = arith.constant 1 : i32
    %35 = vector.broadcast %c1_i32_11 : i32 to vector<1x256xi32>
    %36 = arith.addi %21, %35 : vector<1x256xi32>
    %c16_i32_12 = arith.constant 16 : i32
    %37 = vector.broadcast %c16_i32_12 : i32 to vector<1x256xi32>
    %38 = arith.cmpi slt, %36, %37 : vector<1x256xi32>
    %39 = arith.andi %34, %38 : vector<1x256xi1>
    %40 = vector.extract_strided_slice %4 {offsets = [0, 0], sizes = [16, 256], strides = [1, 1]} : vector<16x290xbf16> to vector<16x256xbf16>
    %cst_13 = arith.constant 0.000000e+00 : bf16
    %41 = vector.broadcast %cst_13 : bf16 to vector<16x256xbf16>
    %42 = vector.shape_cast %30 : vector<1x256xi1> to vector<1x256xi1>
    %43 = vector.broadcast %42 : vector<1x256xi1> to vector<16x256xi1>
    %44 = arith.select %43, %40, %41 : vector<16x256xi1>, vector<16x256xbf16>
    %45 = vector.extract_strided_slice %4 {offsets = [0, 1], sizes = [16, 256], strides = [1, 1]} : vector<16x290xbf16> to vector<16x256xbf16>
    %46 = vector.extract_strided_slice %4 {offsets = [0, 2], sizes = [16, 256], strides = [1, 1]} : vector<16x290xbf16> to vector<16x256xbf16>
    %cst_14 = arith.constant 0.000000e+00 : bf16
    %47 = vector.broadcast %cst_14 : bf16 to vector<16x256xbf16>
    %48 = vector.shape_cast %39 : vector<1x256xi1> to vector<1x256xi1>
    %49 = vector.broadcast %48 : vector<1x256xi1> to vector<16x256xi1>
    %50 = arith.select %49, %46, %47 : vector<16x256xi1>, vector<16x256xbf16>
    %51 = vector.extract_strided_slice %4 {offsets = [0, 16], sizes = [16, 256], strides = [1, 1]} : vector<16x290xbf16> to vector<16x256xbf16>
    %cst_15 = arith.constant 0.000000e+00 : bf16
    %52 = vector.broadcast %cst_15 : bf16 to vector<16x256xbf16>
    %53 = vector.shape_cast %30 : vector<1x256xi1> to vector<1x256xi1>
    %54 = vector.broadcast %53 : vector<1x256xi1> to vector<16x256xi1>
    %55 = arith.select %54, %51, %52 : vector<16x256xi1>, vector<16x256xbf16>
    %56 = vector.extract_strided_slice %4 {offsets = [0, 17], sizes = [16, 256], strides = [1, 1]} : vector<16x290xbf16> to vector<16x256xbf16>
    %57 = vector.extract_strided_slice %4 {offsets = [0, 18], sizes = [16, 256], strides = [1, 1]} : vector<16x290xbf16> to vector<16x256xbf16>
    %cst_16 = arith.constant 0.000000e+00 : bf16
    %58 = vector.broadcast %cst_16 : bf16 to vector<16x256xbf16>
    %59 = vector.shape_cast %39 : vector<1x256xi1> to vector<1x256xi1>
    %60 = vector.broadcast %59 : vector<1x256xi1> to vector<16x256xi1>
    %61 = arith.select %60, %57, %58 : vector<16x256xi1>, vector<16x256xbf16>
    %62 = vector.extract_strided_slice %4 {offsets = [0, 32], sizes = [16, 256], strides = [1, 1]} : vector<16x290xbf16> to vector<16x256xbf16>
    %cst_17 = arith.constant 0.000000e+00 : bf16
    %63 = vector.broadcast %cst_17 : bf16 to vector<16x256xbf16>
    %64 = vector.shape_cast %30 : vector<1x256xi1> to vector<1x256xi1>
    %65 = vector.broadcast %64 : vector<1x256xi1> to vector<16x256xi1>
    %66 = arith.select %65, %62, %63 : vector<16x256xi1>, vector<16x256xbf16>
    %67 = vector.extract_strided_slice %4 {offsets = [0, 33], sizes = [16, 256], strides = [1, 1]} : vector<16x290xbf16> to vector<16x256xbf16>
    %68 = vector.extract_strided_slice %4 {offsets = [0, 34], sizes = [16, 256], strides = [1, 1]} : vector<16x290xbf16> to vector<16x256xbf16>
    %cst_18 = arith.constant 0.000000e+00 : bf16
    %69 = vector.broadcast %cst_18 : bf16 to vector<16x256xbf16>
    %70 = vector.shape_cast %39 : vector<1x256xi1> to vector<1x256xi1>
    %71 = vector.broadcast %70 : vector<1x256xi1> to vector<16x256xi1>
    %72 = arith.select %71, %68, %69 : vector<16x256xi1>, vector<16x256xbf16>
    %c0_19 = arith.constant 0 : index
    %c0_20 = arith.constant 0 : index
    %c0_21 = arith.constant 0 : index
    %73 = vector.load %arg2[%c0_19, %c0_20, %c0_21] : memref<3x4x72xbf16, #tpu.memory_space<vmem>>, vector<1x4x72xbf16>
    %74 = vector.shape_cast %73 : vector<1x4x72xbf16> to vector<4x72xbf16>
    %c0_22 = arith.constant 0 : index
    %c0_23 = arith.constant 0 : index
    %c0_24 = arith.constant 0 : index
    %75 = vector.load %arg3[%c0_22, %c0_23, %c0_24] : memref<3x4x1xf32, #tpu.memory_space<vmem>>, vector<1x4x1xf32>
    %76 = vector.shape_cast %75 : vector<1x4x1xf32> to vector<4x1xf32>
    %77 = vector.extract_strided_slice %44 {offsets = [0, 0], sizes = [8, 256], strides = [1, 1]} : vector<16x256xbf16> to vector<8x256xbf16>
    %78 = vector.extract_strided_slice %45 {offsets = [0, 0], sizes = [8, 256], strides = [1, 1]} : vector<16x256xbf16> to vector<8x256xbf16>
    %79 = vector.extract_strided_slice %50 {offsets = [0, 0], sizes = [8, 256], strides = [1, 1]} : vector<16x256xbf16> to vector<8x256xbf16>
    %80 = vector.extract_strided_slice %55 {offsets = [0, 0], sizes = [8, 256], strides = [1, 1]} : vector<16x256xbf16> to vector<8x256xbf16>
    %81 = vector.extract_strided_slice %56 {offsets = [0, 0], sizes = [8, 256], strides = [1, 1]} : vector<16x256xbf16> to vector<8x256xbf16>
    %82 = vector.extract_strided_slice %61 {offsets = [0, 0], sizes = [8, 256], strides = [1, 1]} : vector<16x256xbf16> to vector<8x256xbf16>
    %83 = vector.extract_strided_slice %66 {offsets = [0, 0], sizes = [8, 256], strides = [1, 1]} : vector<16x256xbf16> to vector<8x256xbf16>
    %84 = vector.extract_strided_slice %67 {offsets = [0, 0], sizes = [8, 256], strides = [1, 1]} : vector<16x256xbf16> to vector<8x256xbf16>
    %85 = vector.extract_strided_slice %72 {offsets = [0, 0], sizes = [8, 256], strides = [1, 1]} : vector<16x256xbf16> to vector<8x256xbf16>
    %86 = tpu.concatenate %77, %78, %79, %80, %81, %82, %83, %84, %85 in 0 : vector<8x256xbf16>, vector<8x256xbf16>, vector<8x256xbf16>, vector<8x256xbf16>, vector<8x256xbf16>, vector<8x256xbf16>, vector<8x256xbf16>, vector<8x256xbf16>, vector<8x256xbf16> -> vector<72x256xbf16>
    %cst_25 = arith.constant dense<0.000000e+00> : vector<4x256xf32>
    %87 = tpu.matmul %74, %86, %cst_25 {dimension_numbers = #tpu.dot_dimension_numbers<[1], [0], [0], [1], [0, 0, 1, 1], [], []>} : vector<4x72xbf16>, vector<72x256xbf16>, vector<4x256xf32> -> vector<4x256xf32>
    %88 = vector.broadcast %76 : vector<4x1xf32> to vector<4x256xf32>
    %89 = arith.addf %87, %88 : vector<4x256xf32>
    %cst_26 = arith.constant 0.000000e+00 : f32
    %90 = vector.broadcast %cst_26 : f32 to vector<4x256xf32>
    %91 = arith.cmpf oge, %89, %90 : vector<4x256xf32>
    %cst_27 = arith.constant 5.000000e-02 : f32
    %92 = vector.broadcast %cst_27 : f32 to vector<4x256xf32>
    %93 = arith.mulf %92, %89 : vector<4x256xf32>
    %94 = arith.select %91, %89, %93 : vector<4x256xi1>, vector<4x256xf32>
    %95 = arith.addf %1, %94 : vector<4x256xf32>
    %96 = vector.extract_strided_slice %44 {offsets = [8, 0], sizes = [8, 256], strides = [1, 1]} : vector<16x256xbf16> to vector<8x256xbf16>
    %97 = vector.extract_strided_slice %45 {offsets = [8, 0], sizes = [8, 256], strides = [1, 1]} : vector<16x256xbf16> to vector<8x256xbf16>
    %98 = vector.extract_strided_slice %50 {offsets = [8, 0], sizes = [8, 256], strides = [1, 1]} : vector<16x256xbf16> to vector<8x256xbf16>
    %99 = vector.extract_strided_slice %55 {offsets = [8, 0], sizes = [8, 256], strides = [1, 1]} : vector<16x256xbf16> to vector<8x256xbf16>
    %100 = vector.extract_strided_slice %56 {offsets = [8, 0], sizes = [8, 256], strides = [1, 1]} : vector<16x256xbf16> to vector<8x256xbf16>
    %101 = vector.extract_strided_slice %61 {offsets = [8, 0], sizes = [8, 256], strides = [1, 1]} : vector<16x256xbf16> to vector<8x256xbf16>
    %102 = vector.extract_strided_slice %66 {offsets = [8, 0], sizes = [8, 256], strides = [1, 1]} : vector<16x256xbf16> to vector<8x256xbf16>
    %103 = vector.extract_strided_slice %67 {offsets = [8, 0], sizes = [8, 256], strides = [1, 1]} : vector<16x256xbf16> to vector<8x256xbf16>
    %104 = vector.extract_strided_slice %72 {offsets = [8, 0], sizes = [8, 256], strides = [1, 1]} : vector<16x256xbf16> to vector<8x256xbf16>
    %105 = tpu.concatenate %96, %97, %98, %99, %100, %101, %102, %103, %104 in 0 : vector<8x256xbf16>, vector<8x256xbf16>, vector<8x256xbf16>, vector<8x256xbf16>, vector<8x256xbf16>, vector<8x256xbf16>, vector<8x256xbf16>, vector<8x256xbf16>, vector<8x256xbf16> -> vector<72x256xbf16>
    %cst_28 = arith.constant dense<0.000000e+00> : vector<4x256xf32>
    %106 = tpu.matmul %74, %105, %cst_28 {dimension_numbers = #tpu.dot_dimension_numbers<[1], [0], [0], [1], [0, 0, 1, 1], [], []>} : vector<4x72xbf16>, vector<72x256xbf16>, vector<4x256xf32> -> vector<4x256xf32>
    %107 = vector.broadcast %76 : vector<4x1xf32> to vector<4x256xf32>
    %108 = arith.addf %106, %107 : vector<4x256xf32>
    %cst_29 = arith.constant 0.000000e+00 : f32
    %109 = vector.broadcast %cst_29 : f32 to vector<4x256xf32>
    %110 = arith.cmpf oge, %108, %109 : vector<4x256xf32>
    %cst_30 = arith.constant 5.000000e-02 : f32
    %111 = vector.broadcast %cst_30 : f32 to vector<4x256xf32>
    %112 = arith.mulf %111, %108 : vector<4x256xf32>
    %113 = arith.select %110, %108, %112 : vector<4x256xi1>, vector<4x256xf32>
    %114 = arith.addf %2, %113 : vector<4x256xf32>
    %c0_31 = arith.constant 0 : index
    %c0_32 = arith.constant 0 : index
    %115 = vector.load %arg4[%c0_31, %c0_32] : memref<256x64xbf16, #tpu.memory_space<vmem>>, vector<256x64xbf16>
    %cst_33 = arith.constant dense<0.000000e+00> : vector<16x64xf32>
    %116 = tpu.matmul %0, %115, %cst_33 {dimension_numbers = #tpu.dot_dimension_numbers<[1], [0], [0], [1], [0, 0, 1, 1], [], []>} : vector<16x256xbf16>, vector<256x64xbf16>, vector<16x64xf32> -> vector<16x64xf32>
    %117 = arith.truncf %116 : vector<16x64xf32> to vector<16x64xbf16>
    %cst_34 = arith.constant 0.000000e+00 : bf16
    %118 = vector.broadcast %cst_34 : bf16 to vector<16x9xbf16>
    %119 = tpu.concatenate %118, %117, %118 in 1 : vector<16x9xbf16>, vector<16x64xbf16>, vector<16x9xbf16> -> vector<16x82xbf16>
    %120 = tpu.iota {dimensions = array<i32: 1>} : vector<1x64xi32>
    %c8_i32 = arith.constant 8 : i32
    %c0_i32_35 = arith.constant 0 : i32
    %121 = arith.cmpi eq, %c8_i32, %c0_i32_35 : i32
    %c1_i32_36 = arith.constant 1 : i32
    %122 = arith.select %121, %c1_i32_36, %c8_i32 : i32
    %123 = vector.broadcast %122 : i32 to vector<1x64xi32>
    %124 = arith.remsi %120, %123 : vector<1x64xi32>
    %c0_i32_37 = arith.constant 0 : i32
    %125 = vector.broadcast %c0_i32_37 : i32 to vector<1x64xi32>
    %126 = arith.cmpi ne, %124, %125 : vector<1x64xi32>
    %c0_i32_38 = arith.constant 0 : i32
    %127 = vector.broadcast %c0_i32_38 : i32 to vector<1x64xi32>
    %128 = arith.cmpi slt, %124, %127 : vector<1x64xi32>
    %c0_i32_39 = arith.constant 0 : i32
    %129 = arith.cmpi slt, %122, %c0_i32_39 : i32
    %130 = vector.broadcast %129 : i1 to vector<1x64xi1>
    %131 = vector.broadcast %130 : vector<1x64xi1> to vector<1x64xi1>
    %132 = arith.xori %128, %131 : vector<1x64xi1>
    %133 = arith.andi %132, %126 : vector<1x64xi1>
    %134 = vector.broadcast %122 : i32 to vector<1x64xi32>
    %135 = arith.addi %124, %134 : vector<1x64xi32>
    %136 = arith.select %133, %135, %124 : vector<1x64xi1>, vector<1x64xi32>
    %c-1_i32_40 = arith.constant -1 : i32
    %137 = vector.broadcast %c-1_i32_40 : i32 to vector<1x64xi32>
    %138 = arith.addi %136, %137 : vector<1x64xi32>
    %c0_i32_41 = arith.constant 0 : i32
    %139 = vector.broadcast %c0_i32_41 : i32 to vector<1x64xi32>
    %140 = arith.cmpi sge, %138, %139 : vector<1x64xi32>
    %c-1_i32_42 = arith.constant -1 : i32
    %141 = vector.broadcast %c-1_i32_42 : i32 to vector<1x64xi32>
    %142 = arith.addi %136, %141 : vector<1x64xi32>
    %c8_i32_43 = arith.constant 8 : i32
    %143 = vector.broadcast %c8_i32_43 : i32 to vector<1x64xi32>
    %144 = arith.cmpi slt, %142, %143 : vector<1x64xi32>
    %145 = arith.andi %140, %144 : vector<1x64xi1>
    %c1_i32_44 = arith.constant 1 : i32
    %146 = vector.broadcast %c1_i32_44 : i32 to vector<1x64xi32>
    %147 = arith.addi %136, %146 : vector<1x64xi32>
    %c0_i32_45 = arith.constant 0 : i32
    %148 = vector.broadcast %c0_i32_45 : i32 to vector<1x64xi32>
    %149 = arith.cmpi sge, %147, %148 : vector<1x64xi32>
    %c1_i32_46 = arith.constant 1 : i32
    %150 = vector.broadcast %c1_i32_46 : i32 to vector<1x64xi32>
    %151 = arith.addi %136, %150 : vector<1x64xi32>
    %c8_i32_47 = arith.constant 8 : i32
    %152 = vector.broadcast %c8_i32_47 : i32 to vector<1x64xi32>
    %153 = arith.cmpi slt, %151, %152 : vector<1x64xi32>
    %154 = arith.andi %149, %153 : vector<1x64xi1>
    %155 = vector.extract_strided_slice %119 {offsets = [0, 0], sizes = [16, 64], strides = [1, 1]} : vector<16x82xbf16> to vector<16x64xbf16>
    %cst_48 = arith.constant 0.000000e+00 : bf16
    %156 = vector.broadcast %cst_48 : bf16 to vector<16x64xbf16>
    %157 = vector.shape_cast %145 : vector<1x64xi1> to vector<1x64xi1>
    %158 = vector.broadcast %157 : vector<1x64xi1> to vector<16x64xi1>
    %159 = arith.select %158, %155, %156 : vector<16x64xi1>, vector<16x64xbf16>
    %160 = vector.extract_strided_slice %119 {offsets = [0, 1], sizes = [16, 64], strides = [1, 1]} : vector<16x82xbf16> to vector<16x64xbf16>
    %161 = vector.extract_strided_slice %119 {offsets = [0, 2], sizes = [16, 64], strides = [1, 1]} : vector<16x82xbf16> to vector<16x64xbf16>
    %cst_49 = arith.constant 0.000000e+00 : bf16
    %162 = vector.broadcast %cst_49 : bf16 to vector<16x64xbf16>
    %163 = vector.shape_cast %154 : vector<1x64xi1> to vector<1x64xi1>
    %164 = vector.broadcast %163 : vector<1x64xi1> to vector<16x64xi1>
    %165 = arith.select %164, %161, %162 : vector<16x64xi1>, vector<16x64xbf16>
    %166 = vector.extract_strided_slice %119 {offsets = [0, 8], sizes = [16, 64], strides = [1, 1]} : vector<16x82xbf16> to vector<16x64xbf16>
    %cst_50 = arith.constant 0.000000e+00 : bf16
    %167 = vector.broadcast %cst_50 : bf16 to vector<16x64xbf16>
    %168 = vector.shape_cast %145 : vector<1x64xi1> to vector<1x64xi1>
    %169 = vector.broadcast %168 : vector<1x64xi1> to vector<16x64xi1>
    %170 = arith.select %169, %166, %167 : vector<16x64xi1>, vector<16x64xbf16>
    %171 = vector.extract_strided_slice %119 {offsets = [0, 9], sizes = [16, 64], strides = [1, 1]} : vector<16x82xbf16> to vector<16x64xbf16>
    %172 = vector.extract_strided_slice %119 {offsets = [0, 10], sizes = [16, 64], strides = [1, 1]} : vector<16x82xbf16> to vector<16x64xbf16>
    %cst_51 = arith.constant 0.000000e+00 : bf16
    %173 = vector.broadcast %cst_51 : bf16 to vector<16x64xbf16>
    %174 = vector.shape_cast %154 : vector<1x64xi1> to vector<1x64xi1>
    %175 = vector.broadcast %174 : vector<1x64xi1> to vector<16x64xi1>
    %176 = arith.select %175, %172, %173 : vector<16x64xi1>, vector<16x64xbf16>
    %177 = vector.extract_strided_slice %119 {offsets = [0, 16], sizes = [16, 64], strides = [1, 1]} : vector<16x82xbf16> to vector<16x64xbf16>
    %cst_52 = arith.constant 0.000000e+00 : bf16
    %178 = vector.broadcast %cst_52 : bf16 to vector<16x64xbf16>
    %179 = vector.shape_cast %145 : vector<1x64xi1> to vector<1x64xi1>
    %180 = vector.broadcast %179 : vector<1x64xi1> to vector<16x64xi1>
    %181 = arith.select %180, %177, %178 : vector<16x64xi1>, vector<16x64xbf16>
    %182 = vector.extract_strided_slice %119 {offsets = [0, 17], sizes = [16, 64], strides = [1, 1]} : vector<16x82xbf16> to vector<16x64xbf16>
    %183 = vector.extract_strided_slice %119 {offsets = [0, 18], sizes = [16, 64], strides = [1, 1]} : vector<16x82xbf16> to vector<16x64xbf16>
    %cst_53 = arith.constant 0.000000e+00 : bf16
    %184 = vector.broadcast %cst_53 : bf16 to vector<16x64xbf16>
    %185 = vector.shape_cast %154 : vector<1x64xi1> to vector<1x64xi1>
    %186 = vector.broadcast %185 : vector<1x64xi1> to vector<16x64xi1>
    %187 = arith.select %186, %183, %184 : vector<16x64xi1>, vector<16x64xbf16>
    %c1 = arith.constant 1 : index
    %c0_54 = arith.constant 0 : index
    %c0_55 = arith.constant 0 : index
    %188 = vector.load %arg2[%c1, %c0_54, %c0_55] : memref<3x4x72xbf16, #tpu.memory_space<vmem>>, vector<1x4x72xbf16>
    %189 = vector.shape_cast %188 : vector<1x4x72xbf16> to vector<4x72xbf16>
    %c1_56 = arith.constant 1 : index
    %c0_57 = arith.constant 0 : index
    %c0_58 = arith.constant 0 : index
    %190 = vector.load %arg3[%c1_56, %c0_57, %c0_58] : memref<3x4x1xf32, #tpu.memory_space<vmem>>, vector<1x4x1xf32>
    %191 = vector.shape_cast %190 : vector<1x4x1xf32> to vector<4x1xf32>
    %192 = vector.extract_strided_slice %159 {offsets = [0, 0], sizes = [8, 64], strides = [1, 1]} : vector<16x64xbf16> to vector<8x64xbf16>
    %193 = vector.extract_strided_slice %160 {offsets = [0, 0], sizes = [8, 64], strides = [1, 1]} : vector<16x64xbf16> to vector<8x64xbf16>
    %194 = vector.extract_strided_slice %165 {offsets = [0, 0], sizes = [8, 64], strides = [1, 1]} : vector<16x64xbf16> to vector<8x64xbf16>
    %195 = vector.extract_strided_slice %170 {offsets = [0, 0], sizes = [8, 64], strides = [1, 1]} : vector<16x64xbf16> to vector<8x64xbf16>
    %196 = vector.extract_strided_slice %171 {offsets = [0, 0], sizes = [8, 64], strides = [1, 1]} : vector<16x64xbf16> to vector<8x64xbf16>
    %197 = vector.extract_strided_slice %176 {offsets = [0, 0], sizes = [8, 64], strides = [1, 1]} : vector<16x64xbf16> to vector<8x64xbf16>
    %198 = vector.extract_strided_slice %181 {offsets = [0, 0], sizes = [8, 64], strides = [1, 1]} : vector<16x64xbf16> to vector<8x64xbf16>
    %199 = vector.extract_strided_slice %182 {offsets = [0, 0], sizes = [8, 64], strides = [1, 1]} : vector<16x64xbf16> to vector<8x64xbf16>
    %200 = vector.extract_strided_slice %187 {offsets = [0, 0], sizes = [8, 64], strides = [1, 1]} : vector<16x64xbf16> to vector<8x64xbf16>
    %201 = tpu.concatenate %192, %193, %194, %195, %196, %197, %198, %199, %200 in 0 : vector<8x64xbf16>, vector<8x64xbf16>, vector<8x64xbf16>, vector<8x64xbf16>, vector<8x64xbf16>, vector<8x64xbf16>, vector<8x64xbf16>, vector<8x64xbf16>, vector<8x64xbf16> -> vector<72x64xbf16>
    %cst_59 = arith.constant dense<0.000000e+00> : vector<4x64xf32>
    %202 = tpu.matmul %189, %201, %cst_59 {dimension_numbers = #tpu.dot_dimension_numbers<[1], [0], [0], [1], [0, 0, 1, 1], [], []>} : vector<4x72xbf16>, vector<72x64xbf16>, vector<4x64xf32> -> vector<4x64xf32>
    %203 = vector.broadcast %191 : vector<4x1xf32> to vector<4x64xf32>
    %204 = arith.addf %202, %203 : vector<4x64xf32>
    %cst_60 = arith.constant 0.000000e+00 : f32
    %205 = vector.broadcast %cst_60 : f32 to vector<4x64xf32>
    %206 = arith.cmpf oge, %204, %205 : vector<4x64xf32>
    %cst_61 = arith.constant 5.000000e-02 : f32
    %207 = vector.broadcast %cst_61 : f32 to vector<4x64xf32>
    %208 = arith.mulf %207, %204 : vector<4x64xf32>
    %209 = arith.select %206, %204, %208 : vector<4x64xi1>, vector<4x64xf32>
    %210 = arith.truncf %209 : vector<4x64xf32> to vector<4x64xbf16>
    %c0_62 = arith.constant 0 : index
    %c0_63 = arith.constant 0 : index
    %211 = vector.load %arg6[%c0_62, %c0_63] : memref<64x256xbf16, #tpu.memory_space<vmem>>, vector<64x256xbf16>
    %cst_64 = arith.constant dense<0.000000e+00> : vector<4x256xf32>
    %212 = tpu.matmul %210, %211, %cst_64 {dimension_numbers = #tpu.dot_dimension_numbers<[1], [0], [0], [1], [0, 0, 1, 1], [], []>} : vector<4x64xbf16>, vector<64x256xbf16>, vector<4x256xf32> -> vector<4x256xf32>
    %213 = arith.addf %95, %212 : vector<4x256xf32>
    %214 = vector.extract_strided_slice %159 {offsets = [8, 0], sizes = [8, 64], strides = [1, 1]} : vector<16x64xbf16> to vector<8x64xbf16>
    %215 = vector.extract_strided_slice %160 {offsets = [8, 0], sizes = [8, 64], strides = [1, 1]} : vector<16x64xbf16> to vector<8x64xbf16>
    %216 = vector.extract_strided_slice %165 {offsets = [8, 0], sizes = [8, 64], strides = [1, 1]} : vector<16x64xbf16> to vector<8x64xbf16>
    %217 = vector.extract_strided_slice %170 {offsets = [8, 0], sizes = [8, 64], strides = [1, 1]} : vector<16x64xbf16> to vector<8x64xbf16>
    %218 = vector.extract_strided_slice %171 {offsets = [8, 0], sizes = [8, 64], strides = [1, 1]} : vector<16x64xbf16> to vector<8x64xbf16>
    %219 = vector.extract_strided_slice %176 {offsets = [8, 0], sizes = [8, 64], strides = [1, 1]} : vector<16x64xbf16> to vector<8x64xbf16>
    %220 = vector.extract_strided_slice %181 {offsets = [8, 0], sizes = [8, 64], strides = [1, 1]} : vector<16x64xbf16> to vector<8x64xbf16>
    %221 = vector.extract_strided_slice %182 {offsets = [8, 0], sizes = [8, 64], strides = [1, 1]} : vector<16x64xbf16> to vector<8x64xbf16>
    %222 = vector.extract_strided_slice %187 {offsets = [8, 0], sizes = [8, 64], strides = [1, 1]} : vector<16x64xbf16> to vector<8x64xbf16>
    %223 = tpu.concatenate %214, %215, %216, %217, %218, %219, %220, %221, %222 in 0 : vector<8x64xbf16>, vector<8x64xbf16>, vector<8x64xbf16>, vector<8x64xbf16>, vector<8x64xbf16>, vector<8x64xbf16>, vector<8x64xbf16>, vector<8x64xbf16>, vector<8x64xbf16> -> vector<72x64xbf16>
    %cst_65 = arith.constant dense<0.000000e+00> : vector<4x64xf32>
    %224 = tpu.matmul %189, %223, %cst_65 {dimension_numbers = #tpu.dot_dimension_numbers<[1], [0], [0], [1], [0, 0, 1, 1], [], []>} : vector<4x72xbf16>, vector<72x64xbf16>, vector<4x64xf32> -> vector<4x64xf32>
    %225 = vector.broadcast %191 : vector<4x1xf32> to vector<4x64xf32>
    %226 = arith.addf %224, %225 : vector<4x64xf32>
    %cst_66 = arith.constant 0.000000e+00 : f32
    %227 = vector.broadcast %cst_66 : f32 to vector<4x64xf32>
    %228 = arith.cmpf oge, %226, %227 : vector<4x64xf32>
    %cst_67 = arith.constant 5.000000e-02 : f32
    %229 = vector.broadcast %cst_67 : f32 to vector<4x64xf32>
    %230 = arith.mulf %229, %226 : vector<4x64xf32>
    %231 = arith.select %228, %226, %230 : vector<4x64xi1>, vector<4x64xf32>
    %232 = arith.truncf %231 : vector<4x64xf32> to vector<4x64xbf16>
    %c0_68 = arith.constant 0 : index
    %c0_69 = arith.constant 0 : index
    %233 = vector.load %arg6[%c0_68, %c0_69] : memref<64x256xbf16, #tpu.memory_space<vmem>>, vector<64x256xbf16>
    %cst_70 = arith.constant dense<0.000000e+00> : vector<4x256xf32>
    %234 = tpu.matmul %232, %233, %cst_70 {dimension_numbers = #tpu.dot_dimension_numbers<[1], [0], [0], [1], [0, 0, 1, 1], [], []>} : vector<4x64xbf16>, vector<64x256xbf16>, vector<4x256xf32> -> vector<4x256xf32>
    %235 = arith.addf %114, %234 : vector<4x256xf32>
    %c0_71 = arith.constant 0 : index
    %c0_72 = arith.constant 0 : index
    %236 = vector.load %arg5[%c0_71, %c0_72] : memref<256x16xbf16, #tpu.memory_space<vmem>>, vector<256x16xbf16>
    %cst_73 = arith.constant dense<0.000000e+00> : vector<16x16xf32>
    %237 = tpu.matmul %0, %236, %cst_73 {dimension_numbers = #tpu.dot_dimension_numbers<[1], [0], [0], [1], [0, 0, 1, 1], [], []>} : vector<16x256xbf16>, vector<256x16xbf16>, vector<16x16xf32> -> vector<16x16xf32>
    %238 = arith.truncf %237 : vector<16x16xf32> to vector<16x16xbf16>
    %cst_74 = arith.constant 0.000000e+00 : bf16
    %239 = vector.broadcast %cst_74 : bf16 to vector<16x5xbf16>
    %240 = tpu.concatenate %239, %238, %239 in 1 : vector<16x5xbf16>, vector<16x16xbf16>, vector<16x5xbf16> -> vector<16x26xbf16>
    %241 = tpu.iota {dimensions = array<i32: 1>} : vector<1x16xi32>
    %c4_i32 = arith.constant 4 : i32
    %c0_i32_75 = arith.constant 0 : i32
    %242 = arith.cmpi eq, %c4_i32, %c0_i32_75 : i32
    %c1_i32_76 = arith.constant 1 : i32
    %243 = arith.select %242, %c1_i32_76, %c4_i32 : i32
    %244 = vector.broadcast %243 : i32 to vector<1x16xi32>
    %245 = arith.remsi %241, %244 : vector<1x16xi32>
    %c0_i32_77 = arith.constant 0 : i32
    %246 = vector.broadcast %c0_i32_77 : i32 to vector<1x16xi32>
    %247 = arith.cmpi ne, %245, %246 : vector<1x16xi32>
    %c0_i32_78 = arith.constant 0 : i32
    %248 = vector.broadcast %c0_i32_78 : i32 to vector<1x16xi32>
    %249 = arith.cmpi slt, %245, %248 : vector<1x16xi32>
    %c0_i32_79 = arith.constant 0 : i32
    %250 = arith.cmpi slt, %243, %c0_i32_79 : i32
    %251 = vector.broadcast %250 : i1 to vector<1x16xi1>
    %252 = vector.broadcast %251 : vector<1x16xi1> to vector<1x16xi1>
    %253 = arith.xori %249, %252 : vector<1x16xi1>
    %254 = arith.andi %253, %247 : vector<1x16xi1>
    %255 = vector.broadcast %243 : i32 to vector<1x16xi32>
    %256 = arith.addi %245, %255 : vector<1x16xi32>
    %257 = arith.select %254, %256, %245 : vector<1x16xi1>, vector<1x16xi32>
    %c-1_i32_80 = arith.constant -1 : i32
    %258 = vector.broadcast %c-1_i32_80 : i32 to vector<1x16xi32>
    %259 = arith.addi %257, %258 : vector<1x16xi32>
    %c0_i32_81 = arith.constant 0 : i32
    %260 = vector.broadcast %c0_i32_81 : i32 to vector<1x16xi32>
    %261 = arith.cmpi sge, %259, %260 : vector<1x16xi32>
    %c-1_i32_82 = arith.constant -1 : i32
    %262 = vector.broadcast %c-1_i32_82 : i32 to vector<1x16xi32>
    %263 = arith.addi %257, %262 : vector<1x16xi32>
    %c4_i32_83 = arith.constant 4 : i32
    %264 = vector.broadcast %c4_i32_83 : i32 to vector<1x16xi32>
    %265 = arith.cmpi slt, %263, %264 : vector<1x16xi32>
    %266 = arith.andi %261, %265 : vector<1x16xi1>
    %c1_i32_84 = arith.constant 1 : i32
    %267 = vector.broadcast %c1_i32_84 : i32 to vector<1x16xi32>
    %268 = arith.addi %257, %267 : vector<1x16xi32>
    %c0_i32_85 = arith.constant 0 : i32
    %269 = vector.broadcast %c0_i32_85 : i32 to vector<1x16xi32>
    %270 = arith.cmpi sge, %268, %269 : vector<1x16xi32>
    %c1_i32_86 = arith.constant 1 : i32
    %271 = vector.broadcast %c1_i32_86 : i32 to vector<1x16xi32>
    %272 = arith.addi %257, %271 : vector<1x16xi32>
    %c4_i32_87 = arith.constant 4 : i32
    %273 = vector.broadcast %c4_i32_87 : i32 to vector<1x16xi32>
    %274 = arith.cmpi slt, %272, %273 : vector<1x16xi32>
    %275 = arith.andi %270, %274 : vector<1x16xi1>
    %276 = vector.extract_strided_slice %240 {offsets = [0, 0], sizes = [16, 16], strides = [1, 1]} : vector<16x26xbf16> to vector<16x16xbf16>
    %cst_88 = arith.constant 0.000000e+00 : bf16
    %277 = vector.broadcast %cst_88 : bf16 to vector<16x16xbf16>
    %278 = vector.shape_cast %266 : vector<1x16xi1> to vector<1x16xi1>
    %279 = vector.broadcast %278 : vector<1x16xi1> to vector<16x16xi1>
    %280 = arith.select %279, %276, %277 : vector<16x16xi1>, vector<16x16xbf16>
    %281 = vector.extract_strided_slice %240 {offsets = [0, 1], sizes = [16, 16], strides = [1, 1]} : vector<16x26xbf16> to vector<16x16xbf16>
    %282 = vector.extract_strided_slice %240 {offsets = [0, 2], sizes = [16, 16], strides = [1, 1]} : vector<16x26xbf16> to vector<16x16xbf16>
    %cst_89 = arith.constant 0.000000e+00 : bf16
    %283 = vector.broadcast %cst_89 : bf16 to vector<16x16xbf16>
    %284 = vector.shape_cast %275 : vector<1x16xi1> to vector<1x16xi1>
    %285 = vector.broadcast %284 : vector<1x16xi1> to vector<16x16xi1>
    %286 = arith.select %285, %282, %283 : vector<16x16xi1>, vector<16x16xbf16>
    %287 = vector.extract_strided_slice %240 {offsets = [0, 4], sizes = [16, 16], strides = [1, 1]} : vector<16x26xbf16> to vector<16x16xbf16>
    %cst_90 = arith.constant 0.000000e+00 : bf16
    %288 = vector.broadcast %cst_90 : bf16 to vector<16x16xbf16>
    %289 = vector.shape_cast %266 : vector<1x16xi1> to vector<1x16xi1>
    %290 = vector.broadcast %289 : vector<1x16xi1> to vector<16x16xi1>
    %291 = arith.select %290, %287, %288 : vector<16x16xi1>, vector<16x16xbf16>
    %292 = vector.extract_strided_slice %240 {offsets = [0, 5], sizes = [16, 16], strides = [1, 1]} : vector<16x26xbf16> to vector<16x16xbf16>
    %293 = vector.extract_strided_slice %240 {offsets = [0, 6], sizes = [16, 16], strides = [1, 1]} : vector<16x26xbf16> to vector<16x16xbf16>
    %cst_91 = arith.constant 0.000000e+00 : bf16
    %294 = vector.broadcast %cst_91 : bf16 to vector<16x16xbf16>
    %295 = vector.shape_cast %275 : vector<1x16xi1> to vector<1x16xi1>
    %296 = vector.broadcast %295 : vector<1x16xi1> to vector<16x16xi1>
    %297 = arith.select %296, %293, %294 : vector<16x16xi1>, vector<16x16xbf16>
    %298 = vector.extract_strided_slice %240 {offsets = [0, 8], sizes = [16, 16], strides = [1, 1]} : vector<16x26xbf16> to vector<16x16xbf16>
    %cst_92 = arith.constant 0.000000e+00 : bf16
    %299 = vector.broadcast %cst_92 : bf16 to vector<16x16xbf16>
    %300 = vector.shape_cast %266 : vector<1x16xi1> to vector<1x16xi1>
    %301 = vector.broadcast %300 : vector<1x16xi1> to vector<16x16xi1>
    %302 = arith.select %301, %298, %299 : vector<16x16xi1>, vector<16x16xbf16>
    %303 = vector.extract_strided_slice %240 {offsets = [0, 9], sizes = [16, 16], strides = [1, 1]} : vector<16x26xbf16> to vector<16x16xbf16>
    %304 = vector.extract_strided_slice %240 {offsets = [0, 10], sizes = [16, 16], strides = [1, 1]} : vector<16x26xbf16> to vector<16x16xbf16>
    %cst_93 = arith.constant 0.000000e+00 : bf16
    %305 = vector.broadcast %cst_93 : bf16 to vector<16x16xbf16>
    %306 = vector.shape_cast %275 : vector<1x16xi1> to vector<1x16xi1>
    %307 = vector.broadcast %306 : vector<1x16xi1> to vector<16x16xi1>
    %308 = arith.select %307, %304, %305 : vector<16x16xi1>, vector<16x16xbf16>
    %c2 = arith.constant 2 : index
    %c0_94 = arith.constant 0 : index
    %c0_95 = arith.constant 0 : index
    %309 = vector.load %arg2[%c2, %c0_94, %c0_95] : memref<3x4x72xbf16, #tpu.memory_space<vmem>>, vector<1x4x72xbf16>
    %310 = vector.shape_cast %309 : vector<1x4x72xbf16> to vector<4x72xbf16>
    %c2_96 = arith.constant 2 : index
    %c0_97 = arith.constant 0 : index
    %c0_98 = arith.constant 0 : index
    %311 = vector.load %arg3[%c2_96, %c0_97, %c0_98] : memref<3x4x1xf32, #tpu.memory_space<vmem>>, vector<1x4x1xf32>
    %312 = vector.shape_cast %311 : vector<1x4x1xf32> to vector<4x1xf32>
    %313 = vector.extract_strided_slice %280 {offsets = [0, 0], sizes = [8, 16], strides = [1, 1]} : vector<16x16xbf16> to vector<8x16xbf16>
    %314 = vector.extract_strided_slice %281 {offsets = [0, 0], sizes = [8, 16], strides = [1, 1]} : vector<16x16xbf16> to vector<8x16xbf16>
    %315 = vector.extract_strided_slice %286 {offsets = [0, 0], sizes = [8, 16], strides = [1, 1]} : vector<16x16xbf16> to vector<8x16xbf16>
    %316 = vector.extract_strided_slice %291 {offsets = [0, 0], sizes = [8, 16], strides = [1, 1]} : vector<16x16xbf16> to vector<8x16xbf16>
    %317 = vector.extract_strided_slice %292 {offsets = [0, 0], sizes = [8, 16], strides = [1, 1]} : vector<16x16xbf16> to vector<8x16xbf16>
    %318 = vector.extract_strided_slice %297 {offsets = [0, 0], sizes = [8, 16], strides = [1, 1]} : vector<16x16xbf16> to vector<8x16xbf16>
    %319 = vector.extract_strided_slice %302 {offsets = [0, 0], sizes = [8, 16], strides = [1, 1]} : vector<16x16xbf16> to vector<8x16xbf16>
    %320 = vector.extract_strided_slice %303 {offsets = [0, 0], sizes = [8, 16], strides = [1, 1]} : vector<16x16xbf16> to vector<8x16xbf16>
    %321 = vector.extract_strided_slice %308 {offsets = [0, 0], sizes = [8, 16], strides = [1, 1]} : vector<16x16xbf16> to vector<8x16xbf16>
    %322 = tpu.concatenate %313, %314, %315, %316, %317, %318, %319, %320, %321 in 0 : vector<8x16xbf16>, vector<8x16xbf16>, vector<8x16xbf16>, vector<8x16xbf16>, vector<8x16xbf16>, vector<8x16xbf16>, vector<8x16xbf16>, vector<8x16xbf16>, vector<8x16xbf16> -> vector<72x16xbf16>
    %cst_99 = arith.constant dense<0.000000e+00> : vector<4x16xf32>
    %323 = tpu.matmul %310, %322, %cst_99 {dimension_numbers = #tpu.dot_dimension_numbers<[1], [0], [0], [1], [0, 0, 1, 1], [], []>} : vector<4x72xbf16>, vector<72x16xbf16>, vector<4x16xf32> -> vector<4x16xf32>
    %324 = vector.broadcast %312 : vector<4x1xf32> to vector<4x16xf32>
    %325 = arith.addf %323, %324 : vector<4x16xf32>
    %cst_100 = arith.constant 0.000000e+00 : f32
    %326 = vector.broadcast %cst_100 : f32 to vector<4x16xf32>
    %327 = arith.cmpf oge, %325, %326 : vector<4x16xf32>
    %cst_101 = arith.constant 5.000000e-02 : f32
    %328 = vector.broadcast %cst_101 : f32 to vector<4x16xf32>
    %329 = arith.mulf %328, %325 : vector<4x16xf32>
    %330 = arith.select %327, %325, %329 : vector<4x16xi1>, vector<4x16xf32>
    %331 = arith.truncf %330 : vector<4x16xf32> to vector<4x16xbf16>
    %c0_102 = arith.constant 0 : index
    %c0_103 = arith.constant 0 : index
    %332 = vector.load %arg7[%c0_102, %c0_103] : memref<16x256xbf16, #tpu.memory_space<vmem>>, vector<16x256xbf16>
    %cst_104 = arith.constant dense<0.000000e+00> : vector<4x256xf32>
    %333 = tpu.matmul %331, %332, %cst_104 {dimension_numbers = #tpu.dot_dimension_numbers<[1], [0], [0], [1], [0, 0, 1, 1], [], []>} : vector<4x16xbf16>, vector<16x256xbf16>, vector<4x256xf32> -> vector<4x256xf32>
    %334 = arith.addf %213, %333 : vector<4x256xf32>
    %335 = vector.extract_strided_slice %280 {offsets = [8, 0], sizes = [8, 16], strides = [1, 1]} : vector<16x16xbf16> to vector<8x16xbf16>
    %336 = vector.extract_strided_slice %281 {offsets = [8, 0], sizes = [8, 16], strides = [1, 1]} : vector<16x16xbf16> to vector<8x16xbf16>
    %337 = vector.extract_strided_slice %286 {offsets = [8, 0], sizes = [8, 16], strides = [1, 1]} : vector<16x16xbf16> to vector<8x16xbf16>
    %338 = vector.extract_strided_slice %291 {offsets = [8, 0], sizes = [8, 16], strides = [1, 1]} : vector<16x16xbf16> to vector<8x16xbf16>
    %339 = vector.extract_strided_slice %292 {offsets = [8, 0], sizes = [8, 16], strides = [1, 1]} : vector<16x16xbf16> to vector<8x16xbf16>
    %340 = vector.extract_strided_slice %297 {offsets = [8, 0], sizes = [8, 16], strides = [1, 1]} : vector<16x16xbf16> to vector<8x16xbf16>
    %341 = vector.extract_strided_slice %302 {offsets = [8, 0], sizes = [8, 16], strides = [1, 1]} : vector<16x16xbf16> to vector<8x16xbf16>
    %342 = vector.extract_strided_slice %303 {offsets = [8, 0], sizes = [8, 16], strides = [1, 1]} : vector<16x16xbf16> to vector<8x16xbf16>
    %343 = vector.extract_strided_slice %308 {offsets = [8, 0], sizes = [8, 16], strides = [1, 1]} : vector<16x16xbf16> to vector<8x16xbf16>
    %344 = tpu.concatenate %335, %336, %337, %338, %339, %340, %341, %342, %343 in 0 : vector<8x16xbf16>, vector<8x16xbf16>, vector<8x16xbf16>, vector<8x16xbf16>, vector<8x16xbf16>, vector<8x16xbf16>, vector<8x16xbf16>, vector<8x16xbf16>, vector<8x16xbf16> -> vector<72x16xbf16>
    %cst_105 = arith.constant dense<0.000000e+00> : vector<4x16xf32>
    %345 = tpu.matmul %310, %344, %cst_105 {dimension_numbers = #tpu.dot_dimension_numbers<[1], [0], [0], [1], [0, 0, 1, 1], [], []>} : vector<4x72xbf16>, vector<72x16xbf16>, vector<4x16xf32> -> vector<4x16xf32>
    %346 = vector.broadcast %312 : vector<4x1xf32> to vector<4x16xf32>
    %347 = arith.addf %345, %346 : vector<4x16xf32>
    %cst_106 = arith.constant 0.000000e+00 : f32
    %348 = vector.broadcast %cst_106 : f32 to vector<4x16xf32>
    %349 = arith.cmpf oge, %347, %348 : vector<4x16xf32>
    %cst_107 = arith.constant 5.000000e-02 : f32
    %350 = vector.broadcast %cst_107 : f32 to vector<4x16xf32>
    %351 = arith.mulf %350, %347 : vector<4x16xf32>
    %352 = arith.select %349, %347, %351 : vector<4x16xi1>, vector<4x16xf32>
    %353 = arith.truncf %352 : vector<4x16xf32> to vector<4x16xbf16>
    %c0_108 = arith.constant 0 : index
    %c0_109 = arith.constant 0 : index
    %354 = vector.load %arg7[%c0_108, %c0_109] : memref<16x256xbf16, #tpu.memory_space<vmem>>, vector<16x256xbf16>
    %cst_110 = arith.constant dense<0.000000e+00> : vector<4x256xf32>
    %355 = tpu.matmul %353, %354, %cst_110 {dimension_numbers = #tpu.dot_dimension_numbers<[1], [0], [0], [1], [0, 0, 1, 1], [], []>} : vector<4x16xbf16>, vector<16x256xbf16>, vector<4x256xf32> -> vector<4x256xf32>
    %356 = arith.addf %235, %355 : vector<4x256xf32>
    %357 = tpu.concatenate %334, %356 in 0 : vector<4x256xf32>, vector<4x256xf32> -> vector<8x256xf32>
    %c0_111 = arith.constant 0 : index
    %c0_112 = arith.constant 0 : index
    %358 = vector.load %arg8[%c0_111, %c0_112] : memref<8x256xf32, #tpu.memory_space<vmem>>, vector<8x256xf32>
    tpu.vector_store %arg8[%c0_111, %c0_112], %357 {strides = array<i32>} : memref<8x256xf32, #tpu.memory_space<vmem>>, vector<8x256xf32>,
    return
  }
  func.func @transform_0(%arg0: i32) -> (i32, i32) {
    %c0_i32 = arith.constant 0 : i32
    %c0_i32_0 = arith.constant 0 : i32
    return %arg0, %c0_i32 : i32, i32
  }
  func.func @transform_1(%arg0: i32) -> (i32, i32, i32) {
    %c0_i32 = arith.constant 0 : i32
    %c0_i32_0 = arith.constant 0 : i32
    %c0_i32_1 = arith.constant 0 : i32
    %c0_i32_2 = arith.constant 0 : i32
    return %c0_i32, %c0_i32_0, %c0_i32_1 : i32, i32, i32
  }
  func.func @transform_2(%arg0: i32) -> (i32, i32, i32) {
    %c0_i32 = arith.constant 0 : i32
    %c0_i32_0 = arith.constant 0 : i32
    %c0_i32_1 = arith.constant 0 : i32
    %c0_i32_2 = arith.constant 0 : i32
    return %c0_i32, %c0_i32_0, %c0_i32_1 : i32, i32, i32
  }
  func.func @transform_3(%arg0: i32) -> (i32, i32) {
    %c0_i32 = arith.constant 0 : i32
    %c0_i32_0 = arith.constant 0 : i32
    %c0_i32_1 = arith.constant 0 : i32
    return %c0_i32, %c0_i32_0 : i32, i32
  }
  func.func @transform_4(%arg0: i32) -> (i32, i32) {
    %c0_i32 = arith.constant 0 : i32
    %c0_i32_0 = arith.constant 0 : i32
    %c0_i32_1 = arith.constant 0 : i32
    return %c0_i32, %c0_i32_0 : i32, i32
  }
  func.func @transform_5(%arg0: i32) -> (i32, i32) {
    %c0_i32 = arith.constant 0 : i32
    %c0_i32_0 = arith.constant 0 : i32
    %c0_i32_1 = arith.constant 0 : i32
    return %c0_i32, %c0_i32_0 : i32, i32
  }
  func.func @transform_6(%arg0: i32) -> (i32, i32) {
    %c0_i32 = arith.constant 0 : i32
    %c0_i32_0 = arith.constant 0 : i32
    %c0_i32_1 = arith.constant 0 : i32
    return %c0_i32, %c0_i32_0 : i32, i32
  }
  func.func @transform_7(%arg0: i32) -> (i32, i32) {
    %c0_i32 = arith.constant 0 : i32
    %c0_i32_0 = arith.constant 0 : i32
    return %arg0, %c0_i32 : i32, i32
  }
}

</mosaic_0001>

<llo_original>
// kernel: tpu_custom_call.1
$region0: #{tpu_custom_call.1}
  #allocation0 [shape = 'u32[]', space=smem, size = 0x4, offset = 0x4, fixed_abs, tag = 'smem constant byte address 0x4 - core index']
  #allocation1 [shape = 'u32[144,128]{1,0:T(1,128)}', space=vmem, size = 0x12000, scoped, tag = 'internal scratch']
  %s0 = inlined_call_operand.vmem [shape: bf16[16,256], index: 0, kind: input, shape index: {}]
  %s1 = inlined_call_operand.vmem [shape: bf16[3,4,72], index: 1, kind: input, shape index: {}]
  %s2 = inlined_call_operand.vmem [shape: f32[3,4,1], index: 2, kind: input, shape index: {}]
  %s3 = inlined_call_operand.vmem [shape: bf16[256,64], index: 3, kind: input, shape index: {}]
  %s4 = inlined_call_operand.vmem [shape: bf16[256,16], index: 4, kind: input, shape index: {}]
  %s5 = inlined_call_operand.vmem [shape: bf16[64,256], index: 5, kind: input, shape index: {}]
  %s6 = inlined_call_operand.vmem [shape: bf16[16,256], index: 6, kind: input, shape index: {}]
  %s7 = inlined_call_operand.hbm [shape: f32[8,256], index: 7, kind: output, shape index: {}]
  %s8 = sld [smem:[#allocation0]]
  $region38: #{tpu_custom_call.1} parent=0
    _
  %s10 = ssub.s32 1, %s8
  %s11 = scalar_select 0, %s10, %s8
  $region1: #{tpu_custom_call.1} parent=0
    #allocation2 [shape = 'u8[8192]{0}', space=vmem, size = 0x2000, scoped, tag = 'output window, operand 0, single buffered']
    #allocation3 [shape = 's32[1]{0}', space=sflag, size = 0x4, scoped, tag = 'scoped memory for tpu_custom_call.1']
    %12 = vsyncpa [#allocation3], 0
    // Predicated region
    $region2: #{tpu_custom_call.1} parent=1 // pred_check
      _
    $region3: #{tpu_custom_call.1} parent=1 // pred_check_branch
      %14 = sbr.rel (0) target = $region5
    $region4: #{tpu_custom_call.1} parent=1 // pred_region
      _
    $region5: #{tpu_custom_call.1} parent=1 // pred_fallthru
      _
    // Predicated region
    $region6: #{tpu_custom_call.1} parent=1 // pred_check
      _
    $region7: #{tpu_custom_call.1} parent=1 // pred_check_branch
      %16 = sbr.rel (0) target = $region9
    $region8: #{tpu_custom_call.1} parent=1 // pred_region
      _
    $region9: #{tpu_custom_call.1} parent=1 // pred_fallthru
      _
    // Predicated region
    $region10: #{tpu_custom_call.1} parent=1 // pred_check
      _
    $region11: #{tpu_custom_call.1} parent=1 // pred_check_branch
      %18 = sbr.rel (0) target = $region13
    $region12: #{tpu_custom_call.1} parent=1 // pred_region
      _
    $region13: #{tpu_custom_call.1} parent=1 // pred_fallthru
      _
    // Predicated region
    $region14: #{tpu_custom_call.1} parent=1 // pred_check
      _
    $region15: #{tpu_custom_call.1} parent=1 // pred_check_branch
      %20 = sbr.rel (0) target = $region17
    $region16: #{tpu_custom_call.1} parent=1 // pred_region
      _
    $region17: #{tpu_custom_call.1} parent=1 // pred_fallthru
      _
    // Predicated region
    $region18: #{tpu_custom_call.1} parent=1 // pred_check
      _
    $region19: #{tpu_custom_call.1} parent=1 // pred_check_branch
      %22 = sbr.rel (0) target = $region21
    $region20: #{tpu_custom_call.1} parent=1 // pred_region
      _
    $region21: #{tpu_custom_call.1} parent=1 // pred_fallthru
      _
    // Predicated region
    $region22: #{tpu_custom_call.1} parent=1 // pred_check
      _
    $region23: #{tpu_custom_call.1} parent=1 // pred_check_branch
      %24 = sbr.rel (0) target = $region25
    $region24: #{tpu_custom_call.1} parent=1 // pred_region
      _
    $region25: #{tpu_custom_call.1} parent=1 // pred_fallthru
      _
    // Predicated region
    $region26: #{tpu_custom_call.1} parent=1 // pred_check
      _
    $region27: #{tpu_custom_call.1} parent=1 // pred_check_branch
      %26 = sbr.rel (0) target = $region29
    $region28: #{tpu_custom_call.1} parent=1 // pred_region
      _
    $region29: #{tpu_custom_call.1} parent=1 // pred_fallthru
      _
    %v30 = vld [vmem:[%s0] sm:$0xff]
    %v31 = vld [vmem:[%s0 + $0x8] sm:$0xff]
    %v34 = vunpack.c.l.b16 %v30
    %v35 = vunpack.c.h.b16 %v30
    %v36 = vunpack.c.l.b16 %v31
    %v37 = vunpack.c.h.b16 %v31
    %v38 = vpack.c.b16 %v36, %v34
    %v39 = vpack.c.b16 %v37, %v35
    %40 = vrot.lane.b32.xlu0 %v38, 17
    %v41 = vpop.permute.xlu0 %40
    %42 = vrot.lane.b32.xlu0 %v39, 17
    %v43 = vpop.permute.xlu0 %42
    %vm44 = vcmask 138240
    %v45 = vsel %vm44, %v41, %v43
    %vm47 = vcmask 138240
    %v50 = vsel %vm47, 0, %v41
    %v53 = vsel %vm47, %v43, 0
    %v55 = vlaneseq
    %v56 = vand.u32 %v55, 127
    %v57 = vadd.s32 %v56, 128
    %vm58 = vcmp.lt.s32.totalorder %v56, 0
    %v59 = vsub.s32 0, %v56
    %v60 = vsel %vm58, %v59, %v56
    %v61 = vshrl.u32 %v60, 4
    %v62 = vand.u32 %v60, 15
    %v63 = vsub.s32 0, %v62
    %v64 = vsel %vm58, %v63, %v62
    %vm65 = vcmp.lt.s32.totalorder %v57, 0
    %v66 = vsub.s32 0, %v57
    %v67 = vsel %vm65, %v66, %v57
    %v68 = vshrl.u32 %v67, 4
    %v69 = vand.u32 %v67, 15
    %v70 = vsub.s32 0, %v69
    %v71 = vsel %vm65, %v70, %v69
    %vm72 = vcmp.ne.s32.totalorder %v64, 0
    %vm73 = vcmp.ne.s32.totalorder %v71, 0
    %vm74 = vcmp.lt.s32.totalorder %v64, 0
    %vm75 = vcmp.lt.s32.totalorder %v71, 0
    %vm76 = vmand %vm74, %vm72
    %vm77 = vmand %vm75, %vm73
    %v78 = vadd.s32 %v64, 16
    %v79 = vadd.s32 %v71, 16
    %v80 = vsel %vm76, %v78, %v64
    %v81 = vsel %vm77, %v79, %v71
    %v82 = vadd.s32 %v80, 4294967295
    %v83 = vadd.s32 %v81, 4294967295
    %vm84 = vcmp.ge.s32.totalorder %v82, 0
    %vm85 = vcmp.ge.s32.totalorder %v83, 0
    %vm86 = vcmp.lt.s32.totalorder %v82, 16
    %vm87 = vcmp.lt.s32.totalorder %v83, 16
    %vm88 = vmand %vm84, %vm86
    %vm89 = vmand %vm85, %vm87
    %v90 = vadd.s32 %v80, 1
    %v91 = vadd.s32 %v81, 1
    %vm92 = vcmp.ge.s32.totalorder %v90, 0
    %vm93 = vcmp.ge.s32.totalorder %v91, 0
    %vm94 = vcmp.lt.s32.totalorder %v90, 16
    %vm95 = vcmp.lt.s32.totalorder %v91, 16
    %vm96 = vmand %vm92, %vm94
    %vm97 = vmand %vm93, %vm95
    %v98 = vsel %vm88, 1, 0
    %v99 = vsel %vm89, 1, 0
    %vm100 = vcmp.eq.s32.totalorder %v98, 1
    %vm101 = vcmp.eq.s32.totalorder %v99, 1
    %vm102 = vmpackc.low %vm101, %vm100
    %v103 = vsel %vm102, 65537, 0
    %v104 = vlaneseq
    %v105 = vshrl.u32 %v104, 7
    %v106 = vsub.s32 0, %v105
    %v107 = vrot.slane %v103, %v106
    %v108 = vlaneseq
    %v109 = vshrl.u32 %v108, 7
    %v110 = vsub.s32 4, %v109
    %v111 = vrot.slane %v103, %v110
    %vm112 = vcmp.ne.s16.totalorder %v107, 0
    %vm113 = vcmp.ne.s16.totalorder %v111, 0
    %v114 = vsel %vm112, %v50, 0
    %v115 = vsel %vm113, %v45, 0
    %v116 = vsel %vm96, 1, 0
    %v117 = vsel %vm97, 1, 0
    %vm118 = vcmp.eq.s32.totalorder %v116, 1
    %vm119 = vcmp.eq.s32.totalorder %v117, 1
    %vm120 = vmpackc.low %vm119, %vm118
    %v121 = vsel %vm120, 65537, 0
    %v122 = vlaneseq
    %v123 = vshrl.u32 %v122, 7
    %v124 = vsub.s32 0, %v123
    %v125 = vrot.slane %v121, %v124
    %v126 = vlaneseq
    %v127 = vshrl.u32 %v126, 7
    %v128 = vsub.s32 4, %v127
    %v129 = vrot.slane %v121, %v128
    %130 = vrot.lane.b32.xlu0 %v125, 2
    %v131 = vpop.permute.xlu0 %130
    %132 = vrot.lane.b32.xlu0 %v129, 2
    %v133 = vpop.permute.xlu0 %132
    %vm134 = vcmask 15360
    %v135 = vsel %vm134, %v131, %v133
    %vm136 = vcmp.ne.s16.totalorder %v131, 0
    %vm137 = vcmp.ne.s16.totalorder %v135, 0
    %vm138 = vcmp.ne.s16.totalorder %v133, 0
    %v139 = vsel %vm136, %v50, 0
    %v140 = vsel %vm137, %v45, 0
    %v141 = vsel %vm138, %v53, 0
    %142 = vrot.lane.b32.xlu0 %v107, 16
    %v143 = vpop.permute.xlu0 %142
    %144 = vrot.lane.b32.xlu0 %v111, 16
    %v145 = vpop.permute.xlu0 %144
    %vm146 = vcmask 130048
    %v147 = vsel %vm146, %v143, %v145
    %vm148 = vcmp.ne.s16.totalorder %v143, 0
    %vm149 = vcmp.ne.s16.totalorder %v147, 0
    %vm150 = vcmp.ne.s16.totalorder %v145, 0
    %v151 = vsel %vm148, %v50, 0
    %v152 = vsel %vm149, %v45, 0
    %v153 = vsel %vm150, %v53, 0
    %154 = vrot.lane.b32.xlu0 %v125, 18
    %v155 = vpop.permute.xlu0 %154
    %156 = vrot.lane.b32.xlu0 %v129, 18
    %v157 = vpop.permute.xlu0 %156
    %vm158 = vcmask 146432
    %v159 = vsel %vm158, %v155, %v157
    %vm160 = vcmp.ne.s16.totalorder %v155, 0
    %vm161 = vcmp.ne.s16.totalorder %v159, 0
    %vm162 = vcmp.ne.s16.totalorder %v157, 0
    %v163 = vsel %vm160, %v50, 0
    %v164 = vsel %vm161, %v45, 0
    %v165 = vsel %vm162, %v53, 0
    %166 = vrot.lane.b32.xlu0 %v107, 32
    %v167 = vpop.permute.xlu0 %166
    %168 = vrot.lane.b32.xlu0 %v111, 32
    %v169 = vpop.permute.xlu0 %168
    %vm170 = vcmask 261120
    %v171 = vsel %vm170, %v167, %v169
    %vm172 = vcmp.ne.s16.totalorder %v167, 0
    %vm173 = vcmp.ne.s16.totalorder %v171, 0
    %vm174 = vcmp.ne.s16.totalorder %v169, 0
    %v175 = vsel %vm172, %v50, 0
    %v176 = vsel %vm173, %v45, 0
    %v177 = vsel %vm174, %v53, 0
    %178 = vrot.lane.b32.xlu0 %v125, 34
    %v179 = vpop.permute.xlu0 %178
    %180 = vrot.lane.b32.xlu0 %v129, 34
    %v181 = vpop.permute.xlu0 %180
    %vm182 = vcmask 277504
    %v183 = vsel %vm182, %v179, %v181
    %vm184 = vcmp.ne.s16.totalorder %v179, 0
    %vm185 = vcmp.ne.s16.totalorder %v183, 0
    %vm186 = vcmp.ne.s16.totalorder %v181, 0
    %v187 = vsel %vm184, %v50, 0
    %v188 = vsel %vm185, %v45, 0
    %v189 = vsel %vm186, %v53, 0
    %v190 = vld [vmem:[%s1] sm:$0x3]
    %v191 = vld [vmem:[%s2] sm:$0xf]
    %v194 = vrot.slane %v50, 4
    %v195 = vrot.slane %v45, 4
    %v196 = vrot.slane %v53, 4
    %197 = vrot.lane.b32.xlu0 %v194, 127
    %v198 = vpop.permute.xlu0 %197
    %199 = vrot.lane.b32.xlu0 %v195, 127
    %v200 = vpop.permute.xlu0 %199
    %201 = vrot.lane.b32.xlu0 %v196, 127
    %v202 = vpop.permute.xlu0 %201
    %vm203 = vcmask 1039360
    %v204 = vsel %vm203, %v198, %v200
    %v205 = vsel %vm203, %v200, %v202
    %209 = vrot.lane.b32.xlu0 %v139, 126
    %v210 = vpop.permute.xlu0 %209
    %211 = vrot.lane.b32.xlu0 %v140, 126
    %v212 = vpop.permute.xlu0 %211
    %213 = vrot.lane.b32.xlu0 %v141, 126
    %v214 = vpop.permute.xlu0 %213
    %vm215 = vcmask 1031168
    %v216 = vsel %vm215, %v210, %v212
    %v217 = vsel %vm215, %v212, %v214
    %v221 = vrot.slane %v151, 4
    %v222 = vrot.slane %v152, 4
    %v223 = vrot.slane %v153, 4
    %224 = vrot.lane.b32.xlu0 %v221, 112
    %v225 = vpop.permute.xlu0 %224
    %226 = vrot.lane.b32.xlu0 %v222, 112
    %v227 = vpop.permute.xlu0 %226
    %228 = vrot.lane.b32.xlu0 %v223, 112
    %v229 = vpop.permute.xlu0 %228
    %vm230 = vcmask 916480
    %v231 = vsel %vm230, %v225, %v227
    %v232 = vsel %vm230, %v227, %v229
    %233 = vrot.lane.b32.xlu0 %v50, 111
    %v234 = vpop.permute.xlu0 %233
    %235 = vrot.lane.b32.xlu0 %v45, 111
    %v236 = vpop.permute.xlu0 %235
    %237 = vrot.lane.b32.xlu0 %v53, 111
    %v238 = vpop.permute.xlu0 %237
    %vm239 = vcmask 908288
    %v240 = vsel %vm239, %v234, %v236
    %v241 = vsel %vm239, %v236, %v238
    %v245 = vrot.slane %v163, 4
    %v246 = vrot.slane %v164, 4
    %v247 = vrot.slane %v165, 4
    %248 = vrot.lane.b32.xlu0 %v245, 110
    %v249 = vpop.permute.xlu0 %248
    %250 = vrot.lane.b32.xlu0 %v246, 110
    %v251 = vpop.permute.xlu0 %250
    %252 = vrot.lane.b32.xlu0 %v247, 110
    %v253 = vpop.permute.xlu0 %252
    %vm254 = vcmask 900096
    %v255 = vsel %vm254, %v249, %v251
    %v256 = vsel %vm254, %v251, %v253
    %260 = vrot.lane.b32.xlu0 %v175, 96
    %v261 = vpop.permute.xlu0 %260
    %262 = vrot.lane.b32.xlu0 %v176, 96
    %v263 = vpop.permute.xlu0 %262
    %264 = vrot.lane.b32.xlu0 %v177, 96
    %v265 = vpop.permute.xlu0 %264
    %vm266 = vcmask 785408
    %v267 = vsel %vm266, %v261, %v263
    %v268 = vsel %vm266, %v263, %v265
    %269 = vrot.lane.b32.xlu0 %v194, 95
    %v270 = vpop.permute.xlu0 %269
    %271 = vrot.lane.b32.xlu0 %v195, 95
    %v272 = vpop.permute.xlu0 %271
    %273 = vrot.lane.b32.xlu0 %v196, 95
    %v274 = vpop.permute.xlu0 %273
    %vm275 = vcmask 777216
    %v276 = vsel %vm275, %v270, %v272
    %v277 = vsel %vm275, %v272, %v274
    %281 = vrot.lane.b32.xlu0 %v187, 94
    %v282 = vpop.permute.xlu0 %281
    %283 = vrot.lane.b32.xlu0 %v188, 94
    %v284 = vpop.permute.xlu0 %283
    %285 = vrot.lane.b32.xlu0 %v189, 94
    %v286 = vpop.permute.xlu0 %285
    %vm287 = vcmask 769024
    %v288 = vsel %vm287, %v282, %v284
    %v289 = vsel %vm287, %v284, %v286
    %vm290 = vcmask 1043456
    %v293 = vsel %vm290, %v114, %v204
    %v297 = vsel %vm290, %v115, %v205
    %v301 = vsel %vm290, %v216, %v231
    %v305 = vsel %vm290, %v217, %v232
    %v309 = vsel %vm290, %v240, %v255
    %v313 = vsel %vm290, %v241, %v256
    %v317 = vsel %vm290, %v267, %v276
    %v321 = vsel %vm290, %v268, %v277
    %324 = vset.pattern.permute.xlu0 0
    %325 = vperm.xlu0 %324, %v191
    %v326 = vpop.permute.xlu0 %325
    %vm328 = vcmask 588800
    %v330 = vsel %vm328, %v190, 0
    %v333 = vsel %vm290, %v288, 0
    %v336 = vsel %vm290, %v289, 0
    %338 = vmatprep.subr.bf16.mxu0 %v297
    %339 = vmatpush1.bf16.msra.mxu0 %v293
    %340 = vmatprep.subr.bf16.mxu0 %v305
    %341 = vmatpush1.bf16.msra.mxu0 %v301
    %342 = vmatprep.subr.bf16.mxu0 %v313
    %343 = vmatpush1.bf16.msra.mxu0 %v309
    %344 = vmatprep.subr.bf16.mxu0 %v321
    %345 = vmatpush1.bf16.msra.mxu0 %v317
    %346 = vmatprep.subr.bf16.mxu0 %v336
    %347 = vmatpush1.bf16.msra.mxu0 %v333
    %348 = vmatprep.subr.bf16.mxu0 0
    %349 = vmatpush1.bf16.msra.mxu0 0
    %350 = vmatprep.subr.bf16.mxu0 0
    %351 = vmatpush1.bf16.msra.mxu0 0
    %352 = vmatprep.subr.bf16.mxu0 0
    %353 = vmatpush1.bf16.msra.mxu0 0
    %354 = vmatprep.subr.bf16.mxu0 0
    %355 = vmatpush1.bf16.msra.mxu0 0
    %356 = vmatprep.subr.bf16.mxu0 0
    %357 = vmatpush1.bf16.msra.mxu0 0
    %358 = vmatprep.subr.bf16.mxu0 0
    %359 = vmatpush1.bf16.msra.mxu0 0
    %360 = vmatprep.subr.bf16.mxu0 0
    %361 = vmatpush1.bf16.msra.mxu0 0
    %362 = vmatprep.subr.bf16.mxu0 0
    %363 = vmatpush1.bf16.msra.mxu0 0
    %364 = vmatprep.subr.bf16.mxu0 0
    %365 = vmatpush1.bf16.msra.mxu0 0
    %366 = vmatprep.subr.bf16.mxu0 0
    %367 = vmatpush1.bf16.msra.mxu0 0
    %368 = vmatprep.subr.bf16.mxu0 0
    %369 = vmatpush1.bf16.msra.mxu0 0
    %370 = vmatprep.mubr.bf16.mxu0 0
    %371 = vmatmul.mubr.bf16.gmra.mrb[0].mxu0 %v330
    %v372 = vpop.f32.mrb[0].mxu0
    %v373 = vadd.f32 %v326, %v372
    %v374 = vpop.f32.mrb[0].mxu0
    %v375 = vadd.f32 %v326, %v374
    %v376 = vpop.f32.mrb[0].mxu0
    %v377 = vpop.f32.mrb[0].mxu0
    %378 = vdwg.mxu0
    %vm379 = vcmp.ge.f32.partialorder %v373, 0.0
    %vm380 = vcmp.ge.f32.partialorder %v375, 0.0
    %v381 = vmul.f32 %v373, 0.05
    %v382 = vmul.f32 %v375, 0.05
    %v383 = vsel %vm379, %v373, %v381
    %v384 = vsel %vm380, %v375, %v382
    %v385 = vadd.f32 %v383, 0.0
    %v386 = vadd.f32 %v384, 0.0
    %v389 = vrot.slane %v114, 4
    %v390 = vrot.slane %v115, 4
    %391 = vrot.lane.b32.xlu0 %v50, 127
    %v392 = vpop.permute.xlu0 %391
    %393 = vrot.lane.b32.xlu0 %v45, 127
    %v394 = vpop.permute.xlu0 %393
    %395 = vrot.lane.b32.xlu0 %v53, 127
    %v396 = vpop.permute.xlu0 %395
    %v397 = vsel %vm203, %v392, %v394
    %v398 = vsel %vm203, %v394, %v396
    %v399 = vrot.slane %v139, 4
    %v400 = vrot.slane %v140, 4
    %v401 = vrot.slane %v141, 4
    %402 = vrot.lane.b32.xlu0 %v399, 126
    %v403 = vpop.permute.xlu0 %402
    %404 = vrot.lane.b32.xlu0 %v400, 126
    %v405 = vpop.permute.xlu0 %404
    %406 = vrot.lane.b32.xlu0 %v401, 126
    %v407 = vpop.permute.xlu0 %406
    %v408 = vsel %vm215, %v403, %v405
    %v409 = vsel %vm215, %v405, %v407
    %410 = vrot.lane.b32.xlu0 %v151, 112
    %v411 = vpop.permute.xlu0 %410
    %412 = vrot.lane.b32.xlu0 %v152, 112
    %v413 = vpop.permute.xlu0 %412
    %414 = vrot.lane.b32.xlu0 %v153, 112
    %v415 = vpop.permute.xlu0 %414
    %v416 = vsel %vm230, %v411, %v413
    %v417 = vsel %vm230, %v413, %v415
    %418 = vrot.lane.b32.xlu0 %v194, 111
    %v419 = vpop.permute.xlu0 %418
    %420 = vrot.lane.b32.xlu0 %v195, 111
    %v421 = vpop.permute.xlu0 %420
    %422 = vrot.lane.b32.xlu0 %v196, 111
    %v423 = vpop.permute.xlu0 %422
    %v424 = vsel %vm239, %v419, %v421
    %v425 = vsel %vm239, %v421, %v423
    %426 = vrot.lane.b32.xlu0 %v163, 110
    %v427 = vpop.permute.xlu0 %426
    %428 = vrot.lane.b32.xlu0 %v164, 110
    %v429 = vpop.permute.xlu0 %428
    %430 = vrot.lane.b32.xlu0 %v165, 110
    %v431 = vpop.permute.xlu0 %430
    %v432 = vsel %vm254, %v427, %v429
    %v433 = vsel %vm254, %v429, %v431
    %v434 = vrot.slane %v175, 4
    %v435 = vrot.slane %v176, 4
    %v436 = vrot.slane %v177, 4
    %437 = vrot.lane.b32.xlu0 %v434, 96
    %v438 = vpop.permute.xlu0 %437
    %439 = vrot.lane.b32.xlu0 %v435, 96
    %v440 = vpop.permute.xlu0 %439
    %441 = vrot.lane.b32.xlu0 %v436, 96
    %v442 = vpop.permute.xlu0 %441
    %v443 = vsel %vm266, %v438, %v440
    %v444 = vsel %vm266, %v440, %v442
    %445 = vrot.lane.b32.xlu0 %v50, 95
    %v446 = vpop.permute.xlu0 %445
    %447 = vrot.lane.b32.xlu0 %v45, 95
    %v448 = vpop.permute.xlu0 %447
    %449 = vrot.lane.b32.xlu0 %v53, 95
    %v450 = vpop.permute.xlu0 %449
    %v451 = vsel %vm275, %v446, %v448
    %v452 = vsel %vm275, %v448, %v450
    %v453 = vrot.slane %v187, 4
    %v454 = vrot.slane %v188, 4
    %v455 = vrot.slane %v189, 4
    %456 = vrot.lane.b32.xlu0 %v453, 94
    %v457 = vpop.permute.xlu0 %456
    %458 = vrot.lane.b32.xlu0 %v454, 94
    %v459 = vpop.permute.xlu0 %458
    %460 = vrot.lane.b32.xlu0 %v455, 94
    %v461 = vpop.permute.xlu0 %460
    %v462 = vsel %vm287, %v457, %v459
    %v463 = vsel %vm287, %v459, %v461
    %v466 = vsel %vm290, %v389, %v397
    %v470 = vsel %vm290, %v390, %v398
    %v474 = vsel %vm290, %v408, %v416
    %v478 = vsel %vm290, %v409, %v417
    %v482 = vsel %vm290, %v424, %v432
    %v486 = vsel %vm290, %v425, %v433
    %v490 = vsel %vm290, %v443, %v451
    %v494 = vsel %vm290, %v444, %v452
    %v497 = vsel %vm290, %v462, 0
    %v500 = vsel %vm290, %v463, 0
    %502 = vmatprep.subr.bf16.mxu0 %v470
    %503 = vmatpush1.bf16.msra.mxu0 %v466
    %504 = vmatprep.subr.bf16.mxu0 %v478
    %505 = vmatpush1.bf16.msra.mxu0 %v474
    %506 = vmatprep.subr.bf16.mxu0 %v486
    %507 = vmatpush1.bf16.msra.mxu0 %v482
    %508 = vmatprep.subr.bf16.mxu0 %v494
    %509 = vmatpush1.bf16.msra.mxu0 %v490
    %510 = vmatprep.subr.bf16.mxu0 %v500
    %511 = vmatpush1.bf16.msra.mxu0 %v497
    %512 = vmatprep.subr.bf16.mxu0 0
    %513 = vmatpush1.bf16.msra.mxu0 0
    %514 = vmatprep.subr.bf16.mxu0 0
    %515 = vmatpush1.bf16.msra.mxu0 0
    %516 = vmatprep.subr.bf16.mxu0 0
    %517 = vmatpush1.bf16.msra.mxu0 0
    %518 = vmatprep.subr.bf16.mxu0 0
    %519 = vmatpush1.bf16.msra.mxu0 0
    %520 = vmatprep.subr.bf16.mxu0 0
    %521 = vmatpush1.bf16.msra.mxu0 0
    %522 = vmatprep.subr.bf16.mxu0 0
    %523 = vmatpush1.bf16.msra.mxu0 0
    %524 = vmatprep.subr.bf16.mxu0 0
    %525 = vmatpush1.bf16.msra.mxu0 0
    %526 = vmatprep.subr.bf16.mxu0 0
    %527 = vmatpush1.bf16.msra.mxu0 0
    %528 = vmatprep.subr.bf16.mxu0 0
    %529 = vmatpush1.bf16.msra.mxu0 0
    %530 = vmatprep.subr.bf16.mxu0 0
    %531 = vmatpush1.bf16.msra.mxu0 0
    %532 = vmatprep.subr.bf16.mxu0 0
    %533 = vmatpush1.bf16.msra.mxu0 0
    %534 = vmatprep.mubr.bf16.mxu0 0
    %535 = vmatmul.mubr.bf16.gmra.mrb[0].mxu0 %v330
    %v536 = vpop.f32.mrb[0].mxu0
    %v537 = vadd.f32 %v326, %v536
    %v538 = vpop.f32.mrb[0].mxu0
    %v539 = vadd.f32 %v326, %v538
    %v540 = vpop.f32.mrb[0].mxu0
    %v541 = vpop.f32.mrb[0].mxu0
    %542 = vdwg.mxu0
    %vm543 = vcmp.ge.f32.partialorder %v537, 0.0
    %vm544 = vcmp.ge.f32.partialorder %v539, 0.0
    %v545 = vmul.f32 %v537, 0.05
    %v546 = vmul.f32 %v539, 0.05
    %v547 = vsel %vm543, %v537, %v545
    %v548 = vsel %vm544, %v539, %v546
    %v549 = vadd.f32 %v547, 0.0
    %v550 = vadd.f32 %v548, 0.0
    %v551 = vld [vmem:[%s3] sm:$0xf]
    %v552 = vld [vmem:[%s3 + $0x4] sm:$0xf]
    %v553 = vld [vmem:[%s3 + $0x8] sm:$0xf]
    %v554 = vld [vmem:[%s3 + $0xc] sm:$0xf]
    %v555 = vld [vmem:[%s3 + $0x10] sm:$0xf]
    %v556 = vld [vmem:[%s3 + $0x14] sm:$0xf]
    %v557 = vld [vmem:[%s3 + $0x18] sm:$0xf]
    %v558 = vld [vmem:[%s3 + $0x1c] sm:$0xf]
    %v559 = vld [vmem:[%s3 + $0x20] sm:$0xf]
    %v560 = vld [vmem:[%s3 + $0x24] sm:$0xf]
    %v561 = vld [vmem:[%s3 + $0x28] sm:$0xf]
    %v562 = vld [vmem:[%s3 + $0x2c] sm:$0xf]
    %v563 = vld [vmem:[%s3 + $0x30] sm:$0xf]
    %v564 = vld [vmem:[%s3 + $0x34] sm:$0xf]
    %v565 = vld [vmem:[%s3 + $0x38] sm:$0xf]
    %v566 = vld [vmem:[%s3 + $0x3c] sm:$0xf]
    %v567 = vld [vmem:[%s3 + $0x40] sm:$0xf]
    %v568 = vld [vmem:[%s3 + $0x44] sm:$0xf]
    %v569 = vld [vmem:[%s3 + $0x48] sm:$0xf]
    %v570 = vld [vmem:[%s3 + $0x4c] sm:$0xf]
    %v571 = vld [vmem:[%s3 + $0x50] sm:$0xf]
    %v572 = vld [vmem:[%s3 + $0x54] sm:$0xf]
    %v573 = vld [vmem:[%s3 + $0x58] sm:$0xf]
    %v574 = vld [vmem:[%s3 + $0x5c] sm:$0xf]
    %v575 = vld [vmem:[%s3 + $0x60] sm:$0xf]
    %v576 = vld [vmem:[%s3 + $0x64] sm:$0xf]
    %v577 = vld [vmem:[%s3 + $0x68] sm:$0xf]
    %v578 = vld [vmem:[%s3 + $0x6c] sm:$0xf]
    %v579 = vld [vmem:[%s3 + $0x70] sm:$0xf]
    %v580 = vld [vmem:[%s3 + $0x74] sm:$0xf]
    %v581 = vld [vmem:[%s3 + $0x78] sm:$0xf]
    %v582 = vld [vmem:[%s3 + $0x7c] sm:$0xf]
    %v617 = vunpack.c.l.b16 %v551
    %v618 = vunpack.c.l.b16 %v552
    %v619 = vunpack.c.l.b16 %v553
    %v620 = vunpack.c.l.b16 %v554
    %v621 = vunpack.c.l.b16 %v555
    %v622 = vunpack.c.l.b16 %v556
    %v623 = vunpack.c.l.b16 %v557
    %v624 = vunpack.c.l.b16 %v558
    %v625 = vunpack.c.l.b16 %v559
    %v626 = vunpack.c.l.b16 %v560
    %v627 = vunpack.c.l.b16 %v561
    %v628 = vunpack.c.l.b16 %v562
    %v629 = vunpack.c.l.b16 %v563
    %v630 = vunpack.c.l.b16 %v564
    %v631 = vunpack.c.l.b16 %v565
    %v632 = vunpack.c.l.b16 %v566
    %v633 = vunpack.c.l.b16 %v567
    %v634 = vunpack.c.l.b16 %v568
    %v635 = vunpack.c.l.b16 %v569
    %v636 = vunpack.c.l.b16 %v570
    %v637 = vunpack.c.l.b16 %v571
    %v638 = vunpack.c.l.b16 %v572
    %v639 = vunpack.c.l.b16 %v573
    %v640 = vunpack.c.l.b16 %v574
    %v641 = vunpack.c.l.b16 %v575
    %v642 = vunpack.c.l.b16 %v576
    %v643 = vunpack.c.l.b16 %v577
    %v644 = vunpack.c.l.b16 %v578
    %v645 = vunpack.c.l.b16 %v579
    %v646 = vunpack.c.l.b16 %v580
    %v647 = vunpack.c.l.b16 %v581
    %v648 = vunpack.c.l.b16 %v582
    %v649 = vpack.c.b16 %v618, %v617
    %v650 = vpack.c.b16 %v620, %v619
    %v651 = vpack.c.b16 %v622, %v621
    %v652 = vpack.c.b16 %v624, %v623
    %v653 = vpack.c.b16 %v626, %v625
    %v654 = vpack.c.b16 %v628, %v627
    %v655 = vpack.c.b16 %v630, %v629
    %v656 = vpack.c.b16 %v632, %v631
    %v657 = vpack.c.b16 %v634, %v633
    %v658 = vpack.c.b16 %v636, %v635
    %v659 = vpack.c.b16 %v638, %v637
    %v660 = vpack.c.b16 %v640, %v639
    %v661 = vpack.c.b16 %v642, %v641
    %v662 = vpack.c.b16 %v644, %v643
    %v663 = vpack.c.b16 %v646, %v645
    %v664 = vpack.c.b16 %v648, %v647
    %681 = vmatprep.subr.bf16.mxu0 0
    %682 = vmatpush1.bf16.msra.mxu0 %v649
    %683 = vmatprep.subr.bf16.mxu0 0
    %684 = vmatpush1.bf16.msra.mxu0 %v650
    %685 = vmatprep.subr.bf16.mxu0 0
    %686 = vmatpush1.bf16.msra.mxu0 %v651
    %687 = vmatprep.subr.bf16.mxu0 0
    %688 = vmatpush1.bf16.msra.mxu0 %v652
    %689 = vmatprep.subr.bf16.mxu0 0
    %690 = vmatpush1.bf16.msra.mxu0 %v653
    %691 = vmatprep.subr.bf16.mxu0 0
    %692 = vmatpush1.bf16.msra.mxu0 %v654
    %693 = vmatprep.subr.bf16.mxu0 0
    %694 = vmatpush1.bf16.msra.mxu0 %v655
    %695 = vmatprep.subr.bf16.mxu0 0
    %696 = vmatpush1.bf16.msra.mxu0 %v656
    %697 = vmatprep.subr.bf16.mxu0 0
    %698 = vmatpush1.bf16.msra.mxu0 %v657
    %699 = vmatprep.subr.bf16.mxu0 0
    %700 = vmatpush1.bf16.msra.mxu0 %v658
    %701 = vmatprep.subr.bf16.mxu0 0
    %702 = vmatpush1.bf16.msra.mxu0 %v659
    %703 = vmatprep.subr.bf16.mxu0 0
    %704 = vmatpush1.bf16.msra.mxu0 %v660
    %705 = vmatprep.subr.bf16.mxu0 0
    %706 = vmatpush1.bf16.msra.mxu0 %v661
    %707 = vmatprep.subr.bf16.mxu0 0
    %708 = vmatpush1.bf16.msra.mxu0 %v662
    %709 = vmatprep.subr.bf16.mxu0 0
    %710 = vmatpush1.bf16.msra.mxu0 %v663
    %711 = vmatprep.subr.bf16.mxu0 0
    %712 = vmatpush1.bf16.msra.mxu0 %v664
    %713 = vmatprep.mubr.bf16.mxu0 %v39
    %714 = vmatmul.mubr.bf16.gmra.mrb[0].mxu0 %v38
    %v715 = vpop.f32.mrb[0].mxu0
    %v716 = vadd.f32 0.0, %v715
    %v717 = vpop.f32.mrb[0].mxu0
    %v718 = vpop.f32.mrb[0].mxu0
    %v719 = vadd.f32 0.0, %v718
    %v720 = vpop.f32.mrb[0].mxu0
    %721 = vdwg.mxu0
    %v722 = vpack.c.bf16 %v719, %v716
    %724 = vrot.lane.b32.xlu0 %v722, 9
    %v725 = vpop.permute.xlu0 %724
    %vm726 = vcmask 72704
    %v728 = vsel %vm726, 0, %v725
    %vm729 = vcmask 596992
    %v730 = vsel %vm729, %v728, 0
    %vm732 = vcmp.lt.s32.totalorder %v56, 0
    %v733 = vsub.s32 0, %v56
    %v734 = vsel %vm732, %v733, %v56
    %v735 = vshrl.u32 %v734, 3
    %v736 = vand.u32 %v734, 7
    %v737 = vsub.s32 0, %v736
    %v738 = vsel %vm732, %v737, %v736
    %vm739 = vcmp.ne.s32.totalorder %v738, 0
    %vm740 = vcmp.lt.s32.totalorder %v738, 0
    %vm741 = vmand %vm740, %vm739
    %v742 = vadd.s32 %v738, 8
    %v743 = vsel %vm741, %v742, %v738
    %v744 = vadd.s32 %v743, 4294967295
    %vm745 = vcmp.ge.s32.totalorder %v744, 0
    %vm746 = vcmp.lt.s32.totalorder %v744, 8
    %vm747 = vmand %vm745, %vm746
    %v748 = vadd.s32 %v743, 1
    %vm749 = vcmp.ge.s32.totalorder %v748, 0
    %vm750 = vcmp.lt.s32.totalorder %v748, 8
    %vm751 = vmand %vm749, %vm750
    %v752 = vsel %vm747, 1, 0
    %vm753 = vcmp.eq.s32.totalorder %v752, 1
    %vm754 = vmpackc.low %vm753, %vm753
    %v755 = vsel %vm754, 65537, 0
    %v756 = vlaneseq
    %v757 = vshrl.u32 %v756, 7
    %v758 = vsub.s32 0, %v757
    %v759 = vrot.slane %v755, %v758
    %vm760 = vcmp.ne.s16.totalorder %v759, 0
    %v761 = vsel %vm760, %v730, 0
    %v762 = vsel %vm751, 1, 0
    %vm763 = vcmp.eq.s32.totalorder %v762, 1
    %vm764 = vmpackc.low %vm763, %vm763
    %v765 = vsel %vm764, 65537, 0
    %v766 = vlaneseq
    %v767 = vshrl.u32 %v766, 7
    %v768 = vsub.s32 0, %v767
    %v769 = vrot.slane %v765, %v768
    %770 = vrot.lane.b32.xlu0 %v769, 2
    %v771 = vpop.permute.xlu0 %770
    %vm772 = vcmp.ne.s16.totalorder %v771, 0
    %v773 = vsel %vm772, %v730, 0
    %774 = vrot.lane.b32.xlu0 %v759, 8
    %v775 = vpop.permute.xlu0 %774
    %vm776 = vcmp.ne.s16.totalorder %v775, 0
    %v777 = vsel %vm776, %v730, 0
    %778 = vrot.lane.b32.xlu0 %v769, 10
    %v779 = vpop.permute.xlu0 %778
    %vm780 = vcmp.ne.s16.totalorder %v779, 0
    %v781 = vsel %vm780, %v730, 0
    %782 = vrot.lane.b32.xlu0 %v759, 16
    %v783 = vpop.permute.xlu0 %782
    %vm784 = vcmp.ne.s16.totalorder %v783, 0
    %v785 = vsel %vm784, %v730, 0
    %786 = vrot.lane.b32.xlu0 %v769, 18
    %v787 = vpop.permute.xlu0 %786
    %vm788 = vcmp.ne.s16.totalorder %v787, 0
    %v789 = vsel %vm788, %v730, 0
    %s790 = scalar_lea.vmem %s1, 2
    %v791 = vld [vmem:[%s790] sm:$0x3]
    %s792 = scalar_lea.vmem %s2, 4
    %v793 = vld [vmem:[%s792] sm:$0xf]
    %v795 = vrot.slane %v730, 4
    %796 = vrot.lane.b32.xlu0 %v795, 127
    %v797 = vpop.permute.xlu0 %796
    %799 = vrot.lane.b32.xlu0 %v773, 126
    %v800 = vpop.permute.xlu0 %799
    %v802 = vrot.slane %v777, 4
    %803 = vrot.lane.b32.xlu0 %v802, 120
    %v804 = vpop.permute.xlu0 %803
    %805 = vrot.lane.b32.xlu0 %v730, 119
    %v806 = vpop.permute.xlu0 %805
    %v808 = vrot.slane %v781, 4
    %809 = vrot.lane.b32.xlu0 %v808, 118
    %v810 = vpop.permute.xlu0 %809
    %812 = vrot.lane.b32.xlu0 %v785, 112
    %v813 = vpop.permute.xlu0 %812
    %814 = vrot.lane.b32.xlu0 %v795, 111
    %v815 = vpop.permute.xlu0 %814
    %817 = vrot.lane.b32.xlu0 %v789, 110
    %v818 = vpop.permute.xlu0 %817
    %v821 = vsel %vm290, %v761, %v797
    %v825 = vsel %vm290, %v800, %v804
    %v829 = vsel %vm290, %v806, %v810
    %v833 = vsel %vm290, %v813, %v815
    %836 = vset.pattern.permute.xlu0 0
    %837 = vperm.xlu0 %836, %v793
    %v838 = vpop.permute.xlu0 %837
    %v841 = vsel %vm328, %v791, 0
    %v844 = vsel %vm290, %v818, 0
    %846 = vmatprep.subr.bf16.mxu0 0
    %847 = vmatpush1.bf16.msra.mxu0 %v821
    %848 = vmatprep.subr.bf16.mxu0 0
    %849 = vmatpush1.bf16.msra.mxu0 %v825
    %850 = vmatprep.subr.bf16.mxu0 0
    %851 = vmatpush1.bf16.msra.mxu0 %v829
    %852 = vmatprep.subr.bf16.mxu0 0
    %853 = vmatpush1.bf16.msra.mxu0 %v833
    %854 = vmatprep.subr.bf16.mxu0 0
    %855 = vmatpush1.bf16.msra.mxu0 %v844
    %856 = vmatprep.subr.bf16.mxu0 0
    %857 = vmatpush1.bf16.msra.mxu0 0
    %858 = vmatprep.subr.bf16.mxu0 0
    %859 = vmatpush1.bf16.msra.mxu0 0
    %860 = vmatprep.subr.bf16.mxu0 0
    %861 = vmatpush1.bf16.msra.mxu0 0
    %862 = vmatprep.subr.bf16.mxu0 0
    %863 = vmatpush1.bf16.msra.mxu0 0
    %864 = vmatprep.subr.bf16.mxu0 0
    %865 = vmatpush1.bf16.msra.mxu0 0
    %866 = vmatprep.subr.bf16.mxu0 0
    %867 = vmatpush1.bf16.msra.mxu0 0
    %868 = vmatprep.subr.bf16.mxu0 0
    %869 = vmatpush1.bf16.msra.mxu0 0
    %870 = vmatprep.subr.bf16.mxu0 0
    %871 = vmatpush1.bf16.msra.mxu0 0
    %872 = vmatprep.subr.bf16.mxu0 0
    %873 = vmatpush1.bf16.msra.mxu0 0
    %874 = vmatprep.subr.bf16.mxu0 0
    %875 = vmatpush1.bf16.msra.mxu0 0
    %876 = vmatprep.subr.bf16.mxu0 0
    %877 = vmatpush1.bf16.msra.mxu0 0
    %878 = vmatprep.mubr.bf16.mxu0 0
    %879 = vmatmul.mubr.bf16.gmra.mrb[0].mxu0 %v841
    %v880 = vpop.f32.mrb[0].mxu0
    %v881 = vadd.f32 %v838, %v880
    %v882 = vpop.f32.mrb[0].mxu0
    %v883 = vpop.f32.mrb[0].mxu0
    %v884 = vpop.f32.mrb[0].mxu0
    %885 = vdwg.mxu0
    %vm886 = vcmp.ge.f32.partialorder %v881, 0.0
    %v887 = vmul.f32 %v881, 0.05
    %v888 = vsel %vm886, %v881, %v887
    %v889 = vpack.c.bf16 %v888, %v888
    %v890 = vld [vmem:[%s5] sm:$0xff]
    %v891 = vld [vmem:[%s5 + $0x8] sm:$0xff]
    %v892 = vld [vmem:[%s5 + $0x10] sm:$0xff]
    %v893 = vld [vmem:[%s5 + $0x18] sm:$0xff]
    %v894 = vld [vmem:[%s5 + $0x20] sm:$0xff]
    %v895 = vld [vmem:[%s5 + $0x28] sm:$0xff]
    %v896 = vld [vmem:[%s5 + $0x30] sm:$0xff]
    %v897 = vld [vmem:[%s5 + $0x38] sm:$0xff]
    %v906 = vunpack.c.l.b16 %v890
    %v907 = vunpack.c.h.b16 %v890
    %v908 = vunpack.c.l.b16 %v891
    %v909 = vunpack.c.h.b16 %v891
    %v910 = vunpack.c.l.b16 %v892
    %v911 = vunpack.c.h.b16 %v892
    %v912 = vunpack.c.l.b16 %v893
    %v913 = vunpack.c.h.b16 %v893
    %v914 = vunpack.c.l.b16 %v894
    %v915 = vunpack.c.h.b16 %v894
    %v916 = vunpack.c.l.b16 %v895
    %v917 = vunpack.c.h.b16 %v895
    %v918 = vunpack.c.l.b16 %v896
    %v919 = vunpack.c.h.b16 %v896
    %v920 = vunpack.c.l.b16 %v897
    %v921 = vunpack.c.h.b16 %v897
    %v922 = vpack.c.b16 %v908, %v906
    %v923 = vpack.c.b16 %v909, %v907
    %v924 = vpack.c.b16 %v912, %v910
    %v925 = vpack.c.b16 %v913, %v911
    %v926 = vpack.c.b16 %v916, %v914
    %v927 = vpack.c.b16 %v917, %v915
    %v928 = vpack.c.b16 %v920, %v918
    %v929 = vpack.c.b16 %v921, %v919
    %vm938 = vcmask 523264
    %v940 = vsel %vm938, %v889, 0
    %942 = vmatprep.subr.bf16.mxu0 %v923
    %943 = vmatpush1.bf16.msra.mxu0 %v922
    %944 = vmatprep.subr.bf16.mxu0 %v925
    %945 = vmatpush1.bf16.msra.mxu0 %v924
    %946 = vmatprep.subr.bf16.mxu0 %v927
    %947 = vmatpush1.bf16.msra.mxu0 %v926
    %948 = vmatprep.subr.bf16.mxu0 %v929
    %949 = vmatpush1.bf16.msra.mxu0 %v928
    %950 = vmatprep.subr.bf16.mxu0 0
    %951 = vmatpush1.bf16.msra.mxu0 0
    %952 = vmatprep.subr.bf16.mxu0 0
    %953 = vmatpush1.bf16.msra.mxu0 0
    %954 = vmatprep.subr.bf16.mxu0 0
    %955 = vmatpush1.bf16.msra.mxu0 0
    %956 = vmatprep.subr.bf16.mxu0 0
    %957 = vmatpush1.bf16.msra.mxu0 0
    %958 = vmatprep.subr.bf16.mxu0 0
    %959 = vmatpush1.bf16.msra.mxu0 0
    %960 = vmatprep.subr.bf16.mxu0 0
    %961 = vmatpush1.bf16.msra.mxu0 0
    %962 = vmatprep.subr.bf16.mxu0 0
    %963 = vmatpush1.bf16.msra.mxu0 0
    %964 = vmatprep.subr.bf16.mxu0 0
    %965 = vmatpush1.bf16.msra.mxu0 0
    %966 = vmatprep.subr.bf16.mxu0 0
    %967 = vmatpush1.bf16.msra.mxu0 0
    %968 = vmatprep.subr.bf16.mxu0 0
    %969 = vmatpush1.bf16.msra.mxu0 0
    %970 = vmatprep.subr.bf16.mxu0 0
    %971 = vmatpush1.bf16.msra.mxu0 0
    %972 = vmatprep.subr.bf16.mxu0 0
    %973 = vmatpush1.bf16.msra.mxu0 0
    %974 = vmatprep.mubr.bf16.mxu0 0
    %975 = vmatmul.mubr.bf16.gmra.mrb[0].mxu0 %v940
    %v976 = vpop.f32.mrb[0].mxu0
    %v977 = vadd.f32 0.0, %v976
    %v978 = vpop.f32.mrb[0].mxu0
    %v979 = vadd.f32 0.0, %v978
    %v980 = vpop.f32.mrb[0].mxu0
    %v981 = vpop.f32.mrb[0].mxu0
    %982 = vdwg.mxu0
    %v983 = vadd.f32 %v385, %v977
    %v984 = vadd.f32 %v386, %v979
    %v986 = vrot.slane %v761, 4
    %987 = vrot.lane.b32.xlu0 %v730, 127
    %v988 = vpop.permute.xlu0 %987
    %v989 = vrot.slane %v773, 4
    %990 = vrot.lane.b32.xlu0 %v989, 126
    %v991 = vpop.permute.xlu0 %990
    %992 = vrot.lane.b32.xlu0 %v777, 120
    %v993 = vpop.permute.xlu0 %992
    %994 = vrot.lane.b32.xlu0 %v795, 119
    %v995 = vpop.permute.xlu0 %994
    %996 = vrot.lane.b32.xlu0 %v781, 118
    %v997 = vpop.permute.xlu0 %996
    %v998 = vrot.slane %v785, 4
    %999 = vrot.lane.b32.xlu0 %v998, 112
    %v1000 = vpop.permute.xlu0 %999
    %1001 = vrot.lane.b32.xlu0 %v730, 111
    %v1002 = vpop.permute.xlu0 %1001
    %v1003 = vrot.slane %v789, 4
    %1004 = vrot.lane.b32.xlu0 %v1003, 110
    %v1005 = vpop.permute.xlu0 %1004
    %v1008 = vsel %vm290, %v986, %v988
    %v1012 = vsel %vm290, %v991, %v993
    %v1016 = vsel %vm290, %v995, %v997
    %v1020 = vsel %vm290, %v1000, %v1002
    %v1023 = vsel %vm290, %v1005, 0
    %1025 = vmatprep.subr.bf16.mxu0 0
    %1026 = vmatpush1.bf16.msra.mxu0 %v1008
    %1027 = vmatprep.subr.bf16.mxu0 0
    %1028 = vmatpush1.bf16.msra.mxu0 %v1012
    %1029 = vmatprep.subr.bf16.mxu0 0
    %1030 = vmatpush1.bf16.msra.mxu0 %v1016
    %1031 = vmatprep.subr.bf16.mxu0 0
    %1032 = vmatpush1.bf16.msra.mxu0 %v1020
    %1033 = vmatprep.subr.bf16.mxu0 0
    %1034 = vmatpush1.bf16.msra.mxu0 %v1023
    %1035 = vmatprep.subr.bf16.mxu0 0
    %1036 = vmatpush1.bf16.msra.mxu0 0
    %1037 = vmatprep.subr.bf16.mxu0 0
    %1038 = vmatpush1.bf16.msra.mxu0 0
    %1039 = vmatprep.subr.bf16.mxu0 0
    %1040 = vmatpush1.bf16.msra.mxu0 0
    %1041 = vmatprep.subr.bf16.mxu0 0
    %1042 = vmatpush1.bf16.msra.mxu0 0
    %1043 = vmatprep.subr.bf16.mxu0 0
    %1044 = vmatpush1.bf16.msra.mxu0 0
    %1045 = vmatprep.subr.bf16.mxu0 0
    %1046 = vmatpush1.bf16.msra.mxu0 0
    %1047 = vmatprep.subr.bf16.mxu0 0
    %1048 = vmatpush1.bf16.msra.mxu0 0
    %1049 = vmatprep.subr.bf16.mxu0 0
    %1050 = vmatpush1.bf16.msra.mxu0 0
    %1051 = vmatprep.subr.bf16.mxu0 0
    %1052 = vmatpush1.bf16.msra.mxu0 0
    %1053 = vmatprep.subr.bf16.mxu0 0
    %1054 = vmatpush1.bf16.msra.mxu0 0
    %1055 = vmatprep.subr.bf16.mxu0 0
    %1056 = vmatpush1.bf16.msra.mxu0 0
    %1057 = vmatprep.mubr.bf16.mxu0 0
    %1058 = vmatmul.mubr.bf16.gmra.mrb[0].mxu0 %v841
    %v1059 = vpop.f32.mrb[0].mxu0
    %v1060 = vadd.f32 %v838, %v1059
    %v1061 = vpop.f32.mrb[0].mxu0
    %v1062 = vpop.f32.mrb[0].mxu0
    %v1063 = vpop.f32.mrb[0].mxu0
    %1064 = vdwg.mxu0
    %vm1065 = vcmp.ge.f32.partialorder %v1060, 0.0
    %v1066 = vmul.f32 %v1060, 0.05
    %v1067 = vsel %vm1065, %v1060, %v1066
    %v1068 = vpack.c.bf16 %v1067, %v1067
    %v1070 = vsel %vm938, %v1068, 0
    %1072 = vmatprep.subr.bf16.mxu0 %v923
    %1073 = vmatpush1.bf16.msra.mxu0 %v922
    %1074 = vmatprep.subr.bf16.mxu0 %v925
    %1075 = vmatpush1.bf16.msra.mxu0 %v924
    %1076 = vmatprep.subr.bf16.mxu0 %v927
    %1077 = vmatpush1.bf16.msra.mxu0 %v926
    %1078 = vmatprep.subr.bf16.mxu0 %v929
    %1079 = vmatpush1.bf16.msra.mxu0 %v928
    %1080 = vmatprep.subr.bf16.mxu0 0
    %1081 = vmatpush1.bf16.msra.mxu0 0
    %1082 = vmatprep.subr.bf16.mxu0 0
    %1083 = vmatpush1.bf16.msra.mxu0 0
    %1084 = vmatprep.subr.bf16.mxu0 0
    %1085 = vmatpush1.bf16.msra.mxu0 0
    %1086 = vmatprep.subr.bf16.mxu0 0
    %1087 = vmatpush1.bf16.msra.mxu0 0
    %1088 = vmatprep.subr.bf16.mxu0 0
    %1089 = vmatpush1.bf16.msra.mxu0 0
    %1090 = vmatprep.subr.bf16.mxu0 0
    %1091 = vmatpush1.bf16.msra.mxu0 0
    %1092 = vmatprep.subr.bf16.mxu0 0
    %1093 = vmatpush1.bf16.msra.mxu0 0
    %1094 = vmatprep.subr.bf16.mxu0 0
    %1095 = vmatpush1.bf16.msra.mxu0 0
    %1096 = vmatprep.subr.bf16.mxu0 0
    %1097 = vmatpush1.bf16.msra.mxu0 0
    %1098 = vmatprep.subr.bf16.mxu0 0
    %1099 = vmatpush1.bf16.msra.mxu0 0
    %1100 = vmatprep.subr.bf16.mxu0 0
    %1101 = vmatpush1.bf16.msra.mxu0 0
    %1102 = vmatprep.subr.bf16.mxu0 0
    %1103 = vmatpush1.bf16.msra.mxu0 0
    %1104 = vmatprep.mubr.bf16.mxu0 0
    %1105 = vmatmul.mubr.bf16.gmra.mrb[0].mxu0 %v1070
    %v1106 = vpop.f32.mrb[0].mxu0
    %v1107 = vadd.f32 0.0, %v1106
    %v1108 = vpop.f32.mrb[0].mxu0
    %v1109 = vadd.f32 0.0, %v1108
    %v1110 = vpop.f32.mrb[0].mxu0
    %v1111 = vpop.f32.mrb[0].mxu0
    %1112 = vdwg.mxu0
    %v1113 = vadd.f32 %v549, %v1107
    %v1114 = vadd.f32 %v550, %v1109
    %v1115 = vld [vmem:[%s4] sm:$0xf]
    %v1116 = vld [vmem:[%s4 + $0x4] sm:$0xf]
    %v1117 = vld [vmem:[%s4 + $0x8] sm:$0xf]
    %v1118 = vld [vmem:[%s4 + $0xc] sm:$0xf]
    %v1119 = vld [vmem:[%s4 + $0x10] sm:$0xf]
    %v1120 = vld [vmem:[%s4 + $0x14] sm:$0xf]
    %v1121 = vld [vmem:[%s4 + $0x18] sm:$0xf]
    %v1122 = vld [vmem:[%s4 + $0x1c] sm:$0xf]
    %v1123 = vld [vmem:[%s4 + $0x20] sm:$0xf]
    %v1124 = vld [vmem:[%s4 + $0x24] sm:$0xf]
    %v1125 = vld [vmem:[%s4 + $0x28] sm:$0xf]
    %v1126 = vld [vmem:[%s4 + $0x2c] sm:$0xf]
    %v1127 = vld [vmem:[%s4 + $0x30] sm:$0xf]
    %v1128 = vld [vmem:[%s4 + $0x34] sm:$0xf]
    %v1129 = vld [vmem:[%s4 + $0x38] sm:$0xf]
    %v1130 = vld [vmem:[%s4 + $0x3c] sm:$0xf]
    %v1131 = vld [vmem:[%s4 + $0x40] sm:$0xf]
    %v1132 = vld [vmem:[%s4 + $0x44] sm:$0xf]
    %v1133 = vld [vmem:[%s4 + $0x48] sm:$0xf]
    %v1134 = vld [vmem:[%s4 + $0x4c] sm:$0xf]
    %v1135 = vld [vmem:[%s4 + $0x50] sm:$0xf]
    %v1136 = vld [vmem:[%s4 + $0x54] sm:$0xf]
    %v1137 = vld [vmem:[%s4 + $0x58] sm:$0xf]
    %v1138 = vld [vmem:[%s4 + $0x5c] sm:$0xf]
    %v1139 = vld [vmem:[%s4 + $0x60] sm:$0xf]
    %v1140 = vld [vmem:[%s4 + $0x64] sm:$0xf]
    %v1141 = vld [vmem:[%s4 + $0x68] sm:$0xf]
    %v1142 = vld [vmem:[%s4 + $0x6c] sm:$0xf]
    %v1143 = vld [vmem:[%s4 + $0x70] sm:$0xf]
    %v1144 = vld [vmem:[%s4 + $0x74] sm:$0xf]
    %v1145 = vld [vmem:[%s4 + $0x78] sm:$0xf]
    %v1146 = vld [vmem:[%s4 + $0x7c] sm:$0xf]
    %v1179 = vunpack.c.l.b16 %v1115
    %v1180 = vunpack.c.l.b16 %v1116
    %v1181 = vunpack.c.l.b16 %v1117
    %v1182 = vunpack.c.l.b16 %v1118
    %v1183 = vunpack.c.l.b16 %v1119
    %v1184 = vunpack.c.l.b16 %v1120
    %v1185 = vunpack.c.l.b16 %v1121
    %v1186 = vunpack.c.l.b16 %v1122
    %v1187 = vunpack.c.l.b16 %v1123
    %v1188 = vunpack.c.l.b16 %v1124
    %v1189 = vunpack.c.l.b16 %v1125
    %v1190 = vunpack.c.l.b16 %v1126
    %v1191 = vunpack.c.l.b16 %v1127
    %v1192 = vunpack.c.l.b16 %v1128
    %v1193 = vunpack.c.l.b16 %v1129
    %v1194 = vunpack.c.l.b16 %v1130
    %v1195 = vunpack.c.l.b16 %v1131
    %v1196 = vunpack.c.l.b16 %v1132
    %v1197 = vunpack.c.l.b16 %v1133
    %v1198 = vunpack.c.l.b16 %v1134
    %v1199 = vunpack.c.l.b16 %v1135
    %v1200 = vunpack.c.l.b16 %v1136
    %v1201 = vunpack.c.l.b16 %v1137
    %v1202 = vunpack.c.l.b16 %v1138
    %v1203 = vunpack.c.l.b16 %v1139
    %v1204 = vunpack.c.l.b16 %v1140
    %v1205 = vunpack.c.l.b16 %v1141
    %v1206 = vunpack.c.l.b16 %v1142
    %v1207 = vunpack.c.l.b16 %v1143
    %v1208 = vunpack.c.l.b16 %v1144
    %v1209 = vunpack.c.l.b16 %v1145
    %v1210 = vunpack.c.l.b16 %v1146
    %v1211 = vpack.c.b16 %v1180, %v1179
    %v1212 = vpack.c.b16 %v1182, %v1181
    %v1213 = vpack.c.b16 %v1184, %v1183
    %v1214 = vpack.c.b16 %v1186, %v1185
    %v1215 = vpack.c.b16 %v1188, %v1187
    %v1216 = vpack.c.b16 %v1190, %v1189
    %v1217 = vpack.c.b16 %v1192, %v1191
    %v1218 = vpack.c.b16 %v1194, %v1193
    %v1219 = vpack.c.b16 %v1196, %v1195
    %v1220 = vpack.c.b16 %v1198, %v1197
    %v1221 = vpack.c.b16 %v1200, %v1199
    %v1222 = vpack.c.b16 %v1202, %v1201
    %v1223 = vpack.c.b16 %v1204, %v1203
    %v1224 = vpack.c.b16 %v1206, %v1205
    %v1225 = vpack.c.b16 %v1208, %v1207
    %v1226 = vpack.c.b16 %v1210, %v1209
    %1243 = vmatprep.subr.bf16.mxu0 0
    %1244 = vmatpush1.bf16.msra.mxu0 %v1211
    %1245 = vmatprep.subr.bf16.mxu0 0
    %1246 = vmatpush1.bf16.msra.mxu0 %v1212
    %1247 = vmatprep.subr.bf16.mxu0 0
    %1248 = vmatpush1.bf16.msra.mxu0 %v1213
    %1249 = vmatprep.subr.bf16.mxu0 0
    %1250 = vmatpush1.bf16.msra.mxu0 %v1214
    %1251 = vmatprep.subr.bf16.mxu0 0
    %1252 = vmatpush1.bf16.msra.mxu0 %v1215
    %1253 = vmatprep.subr.bf16.mxu0 0
    %1254 = vmatpush1.bf16.msra.mxu0 %v1216
    %1255 = vmatprep.subr.bf16.mxu0 0
    %1256 = vmatpush1.bf16.msra.mxu0 %v1217
    %1257 = vmatprep.subr.bf16.mxu0 0
    %1258 = vmatpush1.bf16.msra.mxu0 %v1218
    %1259 = vmatprep.subr.bf16.mxu0 0
    %1260 = vmatpush1.bf16.msra.mxu0 %v1219
    %1261 = vmatprep.subr.bf16.mxu0 0
    %1262 = vmatpush1.bf16.msra.mxu0 %v1220
    %1263 = vmatprep.subr.bf16.mxu0 0
    %1264 = vmatpush1.bf16.msra.mxu0 %v1221
    %1265 = vmatprep.subr.bf16.mxu0 0
    %1266 = vmatpush1.bf16.msra.mxu0 %v1222
    %1267 = vmatprep.subr.bf16.mxu0 0
    %1268 = vmatpush1.bf16.msra.mxu0 %v1223
    %1269 = vmatprep.subr.bf16.mxu0 0
    %1270 = vmatpush1.bf16.msra.mxu0 %v1224
    %1271 = vmatprep.subr.bf16.mxu0 0
    %1272 = vmatpush1.bf16.msra.mxu0 %v1225
    %1273 = vmatprep.subr.bf16.mxu0 0
    %1274 = vmatpush1.bf16.msra.mxu0 %v1226
    %1275 = vmatprep.mubr.bf16.mxu0 %v39
    %1276 = vmatmul.mubr.bf16.gmra.mrb[0].mxu0 %v38
    %v1277 = vpop.f32.mrb[0].mxu0
    %v1278 = vadd.f32 0.0, %v1277
    %v1279 = vpop.f32.mrb[0].mxu0
    %v1280 = vpop.f32.mrb[0].mxu0
    %v1281 = vadd.f32 0.0, %v1280
    %v1282 = vpop.f32.mrb[0].mxu0
    %1283 = vdwg.mxu0
    %v1284 = vpack.c.bf16 %v1281, %v1278
    %1286 = vrot.lane.b32.xlu0 %v1284, 5
    %v1287 = vpop.permute.xlu0 %1286
    %vm1288 = vcmask 39936
    %v1290 = vsel %vm1288, 0, %v1287
    %vm1291 = vcmask 171008
    %v1292 = vsel %vm1291, %v1290, 0
    %vm1294 = vcmp.lt.s32.totalorder %v56, 0
    %v1295 = vsub.s32 0, %v56
    %v1296 = vsel %vm1294, %v1295, %v56
    %v1297 = vshrl.u32 %v1296, 2
    %v1298 = vand.u32 %v1296, 3
    %v1299 = vsub.s32 0, %v1298
    %v1300 = vsel %vm1294, %v1299, %v1298
    %vm1301 = vcmp.ne.s32.totalorder %v1300, 0
    %vm1302 = vcmp.lt.s32.totalorder %v1300, 0
    %vm1303 = vmand %vm1302, %vm1301
    %v1304 = vadd.s32 %v1300, 4
    %v1305 = vsel %vm1303, %v1304, %v1300
    %v1306 = vadd.s32 %v1305, 4294967295
    %vm1307 = vcmp.ge.s32.totalorder %v1306, 0
    %vm1308 = vcmp.lt.s32.totalorder %v1306, 4
    %vm1309 = vmand %vm1307, %vm1308
    %v1310 = vadd.s32 %v1305, 1
    %vm1311 = vcmp.ge.s32.totalorder %v1310, 0
    %vm1312 = vcmp.lt.s32.totalorder %v1310, 4
    %vm1313 = vmand %vm1311, %vm1312
    %v1314 = vsel %vm1309, 1, 0
    %vm1315 = vcmp.eq.s32.totalorder %v1314, 1
    %vm1316 = vmpackc.low %vm1315, %vm1315
    %v1317 = vsel %vm1316, 65537, 0
    %v1318 = vlaneseq
    %v1319 = vshrl.u32 %v1318, 7
    %v1320 = vsub.s32 0, %v1319
    %v1321 = vrot.slane %v1317, %v1320
    %vm1322 = vcmp.ne.s16.totalorder %v1321, 0
    %v1323 = vsel %vm1322, %v1292, 0
    %v1324 = vsel %vm1313, 1, 0
    %vm1325 = vcmp.eq.s32.totalorder %v1324, 1
    %vm1326 = vmpackc.low %vm1325, %vm1325
    %v1327 = vsel %vm1326, 65537, 0
    %v1328 = vlaneseq
    %v1329 = vshrl.u32 %v1328, 7
    %v1330 = vsub.s32 0, %v1329
    %v1331 = vrot.slane %v1327, %v1330
    %1332 = vrot.lane.b32.xlu0 %v1331, 2
    %v1333 = vpop.permute.xlu0 %1332
    %vm1334 = vcmp.ne.s16.totalorder %v1333, 0
    %v1335 = vsel %vm1334, %v1292, 0
    %1336 = vrot.lane.b32.xlu0 %v1321, 4
    %v1337 = vpop.permute.xlu0 %1336
    %vm1338 = vcmp.ne.s16.totalorder %v1337, 0
    %v1339 = vsel %vm1338, %v1292, 0
    %1340 = vrot.lane.b32.xlu0 %v1331, 6
    %v1341 = vpop.permute.xlu0 %1340
    %vm1342 = vcmp.ne.s16.totalorder %v1341, 0
    %v1343 = vsel %vm1342, %v1292, 0
    %1344 = vrot.lane.b32.xlu0 %v1321, 8
    %v1345 = vpop.permute.xlu0 %1344
    %vm1346 = vcmp.ne.s16.totalorder %v1345, 0
    %v1347 = vsel %vm1346, %v1292, 0
    %1348 = vrot.lane.b32.xlu0 %v1331, 10
    %v1349 = vpop.permute.xlu0 %1348
    %vm1350 = vcmp.ne.s16.totalorder %v1349, 0
    %v1351 = vsel %vm1350, %v1292, 0
    %s1352 = scalar_lea.vmem %s1, 4
    %v1353 = vld [vmem:[%s1352] sm:$0x3]
    %s1354 = scalar_lea.vmem %s2, 8
    %v1355 = vld [vmem:[%s1354] sm:$0xf]
    %v1357 = vrot.slane %v1292, 4
    %1358 = vrot.lane.b32.xlu0 %v1357, 127
    %v1359 = vpop.permute.xlu0 %1358
    %1361 = vrot.lane.b32.xlu0 %v1335, 126
    %v1362 = vpop.permute.xlu0 %1361
    %v1364 = vrot.slane %v1339, 4
    %1365 = vrot.lane.b32.xlu0 %v1364, 124
    %v1366 = vpop.permute.xlu0 %1365
    %1367 = vrot.lane.b32.xlu0 %v1292, 123
    %v1368 = vpop.permute.xlu0 %1367
    %v1370 = vrot.slane %v1343, 4
    %1371 = vrot.lane.b32.xlu0 %v1370, 122
    %v1372 = vpop.permute.xlu0 %1371
    %1374 = vrot.lane.b32.xlu0 %v1347, 120
    %v1375 = vpop.permute.xlu0 %1374
    %1376 = vrot.lane.b32.xlu0 %v1357, 119
    %v1377 = vpop.permute.xlu0 %1376
    %1379 = vrot.lane.b32.xlu0 %v1351, 118
    %v1380 = vpop.permute.xlu0 %1379
    %v1383 = vsel %vm290, %v1323, %v1359
    %v1387 = vsel %vm290, %v1362, %v1366
    %v1391 = vsel %vm290, %v1368, %v1372
    %v1395 = vsel %vm290, %v1375, %v1377
    %1398 = vset.pattern.permute.xlu0 0
    %1399 = vperm.xlu0 %1398, %v1355
    %v1400 = vpop.permute.xlu0 %1399
    %v1403 = vsel %vm328, %v1353, 0
    %v1406 = vsel %vm290, %v1380, 0
    %1408 = vmatprep.subr.bf16.mxu0 0
    %1409 = vmatpush1.bf16.msra.mxu0 %v1383
    %1410 = vmatprep.subr.bf16.mxu0 0
    %1411 = vmatpush1.bf16.msra.mxu0 %v1387
    %1412 = vmatprep.subr.bf16.mxu0 0
    %1413 = vmatpush1.bf16.msra.mxu0 %v1391
    %1414 = vmatprep.subr.bf16.mxu0 0
    %1415 = vmatpush1.bf16.msra.mxu0 %v1395
    %1416 = vmatprep.subr.bf16.mxu0 0
    %1417 = vmatpush1.bf16.msra.mxu0 %v1406
    %1418 = vmatprep.subr.bf16.mxu0 0
    %1419 = vmatpush1.bf16.msra.mxu0 0
    %1420 = vmatprep.subr.bf16.mxu0 0
    %1421 = vmatpush1.bf16.msra.mxu0 0
    %1422 = vmatprep.subr.bf16.mxu0 0
    %1423 = vmatpush1.bf16.msra.mxu0 0
    %1424 = vmatprep.subr.bf16.mxu0 0
    %1425 = vmatpush1.bf16.msra.mxu0 0
    %1426 = vmatprep.subr.bf16.mxu0 0
    %1427 = vmatpush1.bf16.msra.mxu0 0
    %1428 = vmatprep.subr.bf16.mxu0 0
    %1429 = vmatpush1.bf16.msra.mxu0 0
    %1430 = vmatprep.subr.bf16.mxu0 0
    %1431 = vmatpush1.bf16.msra.mxu0 0
    %1432 = vmatprep.subr.bf16.mxu0 0
    %1433 = vmatpush1.bf16.msra.mxu0 0
    %1434 = vmatprep.subr.bf16.mxu0 0
    %1435 = vmatpush1.bf16.msra.mxu0 0
    %1436 = vmatprep.subr.bf16.mxu0 0
    %1437 = vmatpush1.bf16.msra.mxu0 0
    %1438 = vmatprep.subr.bf16.mxu0 0
    %1439 = vmatpush1.bf16.msra.mxu0 0
    %1440 = vmatprep.mubr.bf16.mxu0 0
    %1441 = vmatmul.mubr.bf16.gmra.mrb[0].mxu0 %v1403
    %v1442 = vpop.f32.mrb[0].mxu0
    %v1443 = vadd.f32 %v1400, %v1442
    %v1444 = vpop.f32.mrb[0].mxu0
    %v1445 = vpop.f32.mrb[0].mxu0
    %v1446 = vpop.f32.mrb[0].mxu0
    %1447 = vdwg.mxu0
    %vm1448 = vcmp.ge.f32.partialorder %v1443, 0.0
    %v1449 = vmul.f32 %v1443, 0.05
    %v1450 = vsel %vm1448, %v1443, %v1449
    %v1451 = vpack.c.bf16 %v1450, %v1450
    %v1452 = vld [vmem:[%s6] sm:$0xff]
    %v1453 = vld [vmem:[%s6 + $0x8] sm:$0xff]
    %v1456 = vunpack.c.l.b16 %v1452
    %v1457 = vunpack.c.h.b16 %v1452
    %v1458 = vunpack.c.l.b16 %v1453
    %v1459 = vunpack.c.h.b16 %v1453
    %v1460 = vpack.c.b16 %v1458, %v1456
    %v1461 = vpack.c.b16 %v1459, %v1457
    %vm1464 = vcmask 130048
    %v1466 = vsel %vm1464, %v1451, 0
    %1468 = vmatprep.subr.bf16.mxu0 %v1461
    %1469 = vmatpush1.bf16.msra.mxu0 %v1460
    %1470 = vmatprep.subr.bf16.mxu0 0
    %1471 = vmatpush1.bf16.msra.mxu0 0
    %1472 = vmatprep.subr.bf16.mxu0 0
    %1473 = vmatpush1.bf16.msra.mxu0 0
    %1474 = vmatprep.subr.bf16.mxu0 0
    %1475 = vmatpush1.bf16.msra.mxu0 0
    %1476 = vmatprep.subr.bf16.mxu0 0
    %1477 = vmatpush1.bf16.msra.mxu0 0
    %1478 = vmatprep.subr.bf16.mxu0 0
    %1479 = vmatpush1.bf16.msra.mxu0 0
    %1480 = vmatprep.subr.bf16.mxu0 0
    %1481 = vmatpush1.bf16.msra.mxu0 0
    %1482 = vmatprep.subr.bf16.mxu0 0
    %1483 = vmatpush1.bf16.msra.mxu0 0
    %1484 = vmatprep.subr.bf16.mxu0 0
    %1485 = vmatpush1.bf16.msra.mxu0 0
    %1486 = vmatprep.subr.bf16.mxu0 0
    %1487 = vmatpush1.bf16.msra.mxu0 0
    %1488 = vmatprep.subr.bf16.mxu0 0
    %1489 = vmatpush1.bf16.msra.mxu0 0
    %1490 = vmatprep.subr.bf16.mxu0 0
    %1491 = vmatpush1.bf16.msra.mxu0 0
    %1492 = vmatprep.subr.bf16.mxu0 0
    %1493 = vmatpush1.bf16.msra.mxu0 0
    %1494 = vmatprep.subr.bf16.mxu0 0
    %1495 = vmatpush1.bf16.msra.mxu0 0
    %1496 = vmatprep.subr.bf16.mxu0 0
    %1497 = vmatpush1.bf16.msra.mxu0 0
    %1498 = vmatprep.subr.bf16.mxu0 0
    %1499 = vmatpush1.bf16.msra.mxu0 0
    %1500 = vmatprep.mubr.bf16.mxu0 0
    %1501 = vmatmul.mubr.bf16.gmra.mrb[0].mxu0 %v1466
    %v1502 = vpop.f32.mrb[0].mxu0
    %v1503 = vadd.f32 0.0, %v1502
    %v1504 = vpop.f32.mrb[0].mxu0
    %v1505 = vadd.f32 0.0, %v1504
    %v1506 = vpop.f32.mrb[0].mxu0
    %v1507 = vpop.f32.mrb[0].mxu0
    %1508 = vdwg.mxu0
    %v1509 = vadd.f32 %v983, %v1503
    %v1510 = vadd.f32 %v984, %v1505
    %v1512 = vrot.slane %v1323, 4
    %1513 = vrot.lane.b32.xlu0 %v1292, 127
    %v1514 = vpop.permute.xlu0 %1513
    %v1515 = vrot.slane %v1335, 4
    %1516 = vrot.lane.b32.xlu0 %v1515, 126
    %v1517 = vpop.permute.xlu0 %1516
    %1518 = vrot.lane.b32.xlu0 %v1339, 124
    %v1519 = vpop.permute.xlu0 %1518
    %1520 = vrot.lane.b32.xlu0 %v1357, 123
    %v1521 = vpop.permute.xlu0 %1520
    %1522 = vrot.lane.b32.xlu0 %v1343, 122
    %v1523 = vpop.permute.xlu0 %1522
    %v1524 = vrot.slane %v1347, 4
    %1525 = vrot.lane.b32.xlu0 %v1524, 120
    %v1526 = vpop.permute.xlu0 %1525
    %1527 = vrot.lane.b32.xlu0 %v1292, 119
    %v1528 = vpop.permute.xlu0 %1527
    %v1529 = vrot.slane %v1351, 4
    %1530 = vrot.lane.b32.xlu0 %v1529, 118
    %v1531 = vpop.permute.xlu0 %1530
    %v1534 = vsel %vm290, %v1512, %v1514
    %v1538 = vsel %vm290, %v1517, %v1519
    %v1542 = vsel %vm290, %v1521, %v1523
    %v1546 = vsel %vm290, %v1526, %v1528
    %v1549 = vsel %vm290, %v1531, 0
    %1551 = vmatprep.subr.bf16.mxu0 0
    %1552 = vmatpush1.bf16.msra.mxu0 %v1534
    %1553 = vmatprep.subr.bf16.mxu0 0
    %1554 = vmatpush1.bf16.msra.mxu0 %v1538
    %1555 = vmatprep.subr.bf16.mxu0 0
    %1556 = vmatpush1.bf16.msra.mxu0 %v1542
    %1557 = vmatprep.subr.bf16.mxu0 0
    %1558 = vmatpush1.bf16.msra.mxu0 %v1546
    %1559 = vmatprep.subr.bf16.mxu0 0
    %1560 = vmatpush1.bf16.msra.mxu0 %v1549
    %1561 = vmatprep.subr.bf16.mxu0 0
    %1562 = vmatpush1.bf16.msra.mxu0 0
    %1563 = vmatprep.subr.bf16.mxu0 0
    %1564 = vmatpush1.bf16.msra.mxu0 0
    %1565 = vmatprep.subr.bf16.mxu0 0
    %1566 = vmatpush1.bf16.msra.mxu0 0
    %1567 = vmatprep.subr.bf16.mxu0 0
    %1568 = vmatpush1.bf16.msra.mxu0 0
    %1569 = vmatprep.subr.bf16.mxu0 0
    %1570 = vmatpush1.bf16.msra.mxu0 0
    %1571 = vmatprep.subr.bf16.mxu0 0
    %1572 = vmatpush1.bf16.msra.mxu0 0
    %1573 = vmatprep.subr.bf16.mxu0 0
    %1574 = vmatpush1.bf16.msra.mxu0 0
    %1575 = vmatprep.subr.bf16.mxu0 0
    %1576 = vmatpush1.bf16.msra.mxu0 0
    %1577 = vmatprep.subr.bf16.mxu0 0
    %1578 = vmatpush1.bf16.msra.mxu0 0
    %1579 = vmatprep.subr.bf16.mxu0 0
    %1580 = vmatpush1.bf16.msra.mxu0 0
    %1581 = vmatprep.subr.bf16.mxu0 0
    %1582 = vmatpush1.bf16.msra.mxu0 0
    %1583 = vmatprep.mubr.bf16.mxu0 0
    %1584 = vmatmul.mubr.bf16.gmra.mrb[0].mxu0 %v1403
    %v1585 = vpop.f32.mrb[0].mxu0
    %v1586 = vadd.f32 %v1400, %v1585
    %v1587 = vpop.f32.mrb[0].mxu0
    %v1588 = vpop.f32.mrb[0].mxu0
    %v1589 = vpop.f32.mrb[0].mxu0
    %1590 = vdwg.mxu0
    %vm1591 = vcmp.ge.f32.partialorder %v1586, 0.0
    %v1592 = vmul.f32 %v1586, 0.05
    %v1593 = vsel %vm1591, %v1586, %v1592
    %v1594 = vpack.c.bf16 %v1593, %v1593
    %v1596 = vsel %vm1464, %v1594, 0
    %1598 = vmatprep.subr.bf16.mxu0 %v1461
    %1599 = vmatpush1.bf16.msra.mxu0 %v1460
    %1600 = vmatprep.subr.bf16.mxu0 0
    %1601 = vmatpush1.bf16.msra.mxu0 0
    %1602 = vmatprep.subr.bf16.mxu0 0
    %1603 = vmatpush1.bf16.msra.mxu0 0
    %1604 = vmatprep.subr.bf16.mxu0 0
    %1605 = vmatpush1.bf16.msra.mxu0 0
    %1606 = vmatprep.subr.bf16.mxu0 0
    %1607 = vmatpush1.bf16.msra.mxu0 0
    %1608 = vmatprep.subr.bf16.mxu0 0
    %1609 = vmatpush1.bf16.msra.mxu0 0
    %1610 = vmatprep.subr.bf16.mxu0 0
    %1611 = vmatpush1.bf16.msra.mxu0 0
    %1612 = vmatprep.subr.bf16.mxu0 0
    %1613 = vmatpush1.bf16.msra.mxu0 0
    %1614 = vmatprep.subr.bf16.mxu0 0
    %1615 = vmatpush1.bf16.msra.mxu0 0
    %1616 = vmatprep.subr.bf16.mxu0 0
    %1617 = vmatpush1.bf16.msra.mxu0 0
    %1618 = vmatprep.subr.bf16.mxu0 0
    %1619 = vmatpush1.bf16.msra.mxu0 0
    %1620 = vmatprep.subr.bf16.mxu0 0
    %1621 = vmatpush1.bf16.msra.mxu0 0
    %1622 = vmatprep.subr.bf16.mxu0 0
    %1623 = vmatpush1.bf16.msra.mxu0 0
    %1624 = vmatprep.subr.bf16.mxu0 0
    %1625 = vmatpush1.bf16.msra.mxu0 0
    %1626 = vmatprep.subr.bf16.mxu0 0
    %1627 = vmatpush1.bf16.msra.mxu0 0
    %1628 = vmatprep.subr.bf16.mxu0 0
    %1629 = vmatpush1.bf16.msra.mxu0 0
    %1630 = vmatprep.mubr.bf16.mxu0 0
    %1631 = vmatmul.mubr.bf16.gmra.mrb[0].mxu0 %v1596
    %v1632 = vpop.f32.mrb[0].mxu0
    %v1633 = vadd.f32 0.0, %v1632
    %v1634 = vpop.f32.mrb[0].mxu0
    %v1635 = vadd.f32 0.0, %v1634
    %v1636 = vpop.f32.mrb[0].mxu0
    %v1637 = vpop.f32.mrb[0].mxu0
    %1638 = vdwg.mxu0
    %v1639 = vadd.f32 %v1113, %v1633
    %v1640 = vadd.f32 %v1114, %v1635
    %v1643 = vrot.slane %v1639, 4
    %v1644 = vrot.slane %v1640, 4
    %v1647 = vsel %vm290, %v1509, %v1643
    %v1648 = vsel %vm290, %v1510, %v1644
    %1649 = vst [vmem:[#allocation2] sm:$0xff] %v1647
    %1650 = vst [vmem:[#allocation2 + $0x8] sm:$0xff] %v1648
    // Predicated region
    $region30: #{tpu_custom_call.1} parent=1 // pred_check
      _
    $region31: #{tpu_custom_call.1} parent=1 // pred_check_branch
      %1652 = sbr.rel (0) target = $region33
    $region32: #{tpu_custom_call.1} parent=1 // pred_region
      %s1654 = ssub.s32 256, 256
      %1655 = vsyncadd [#allocation3], %s1654
      %s1657 = sshll.u32 [#allocation2], 4
      %s1658 = int_to_ptr.vmem [resolvable:$true] %s1657
      %1660 = dma.vmem_to_hbm [thread:$0]  %s1658, 256, %s7, [#allocation3]
    $region33: #{tpu_custom_call.1} parent=1 // pred_fallthru
      _
    // Predicated region
    $region34: #{tpu_custom_call.1} parent=1 // pred_check
      _
    $region35: #{tpu_custom_call.1} parent=1 // pred_check_branch
      %1662 = sbr.rel (0) target = $region37
    $region36: #{tpu_custom_call.1} parent=1 // pred_region
      %1663 = dma.done [#allocation3], 256
    $region37: #{tpu_custom_call.1} parent=1 // pred_fallthru
      _
    %1664 = vsyncpa [#allocation3], 1

// kernel: tpu_custom_call.1
$region0: #{tpu_custom_call.1}
  #allocation0 [shape = 'u32[]', space=smem, size = 0x4, offset = 0x4, fixed_abs, tag = 'smem constant byte address 0x4 - core index']
  #allocation1 [shape = 'u32[144,128]{1,0:T(1,128)}', space=vmem, size = 0x12000, scoped, tag = 'internal scratch']
  %s0 = inlined_call_operand.vmem [shape: bf16[16,256], index: 0, kind: input, shape index: {}]
  %s1 = inlined_call_operand.vmem [shape: bf16[3,4,72], index: 1, kind: input, shape index: {}]
  %s2 = inlined_call_operand.vmem [shape: f32[3,4,1], index: 2, kind: input, shape index: {}]
  %s3 = inlined_call_operand.vmem [shape: bf16[256,64], index: 3, kind: input, shape index: {}]
  %s4 = inlined_call_operand.vmem [shape: bf16[256,16], index: 4, kind: input, shape index: {}]
  %s5 = inlined_call_operand.vmem [shape: bf16[64,256], index: 5, kind: input, shape index: {}]
  %s6 = inlined_call_operand.vmem [shape: bf16[16,256], index: 6, kind: input, shape index: {}]
  %s7 = inlined_call_operand.hbm [shape: f32[8,256], index: 7, kind: output, shape index: {}]
  %s8 = sld [smem:[#allocation0]]
  $region38: #{tpu_custom_call.1} parent=0
    _
  %s10 = ssub.s32 1, %s8
  %s11 = scalar_select 0, %s10, %s8
  $region1: #{tpu_custom_call.1} parent=0
    #allocation2 [shape = 'u8[8192]{0}', space=vmem, size = 0x2000, scoped, tag = 'output window, operand 0, single buffered']
    #allocation3 [shape = 's32[1]{0}', space=sflag, size = 0x4, scoped, tag = 'scoped memory for tpu_custom_call.1']
    %12 = vsyncpa [#allocation3], 0
    // Predicated region
    $region2: #{tpu_custom_call.1} parent=1 // pred_check
      _
    $region3: #{tpu_custom_call.1} parent=1 // pred_check_branch
      %14 = sbr.rel (0) target = $region5
    $region4: #{tpu_custom_call.1} parent=1 // pred_region
      _
    $region5: #{tpu_custom_call.1} parent=1 // pred_fallthru
      _
    // Predicated region
    $region6: #{tpu_custom_call.1} parent=1 // pred_check
      _
    $region7: #{tpu_custom_call.1} parent=1 // pred_check_branch
      %16 = sbr.rel (0) target = $region9
    $region8: #{tpu_custom_call.1} parent=1 // pred_region
      _
    $region9: #{tpu_custom_call.1} parent=1 // pred_fallthru
      _
    // Predicated region
    $region10: #{tpu_custom_call.1} parent=1 // pred_check
      _
    $region11: #{tpu_custom_call.1} parent=1 // pred_check_branch
      %18 = sbr.rel (0) target = $region13
    $region12: #{tpu_custom_call.1} parent=1 // pred_region
      _
    $region13: #{tpu_custom_call.1} parent=1 // pred_fallthru
      _
    // Predicated region
    $region14: #{tpu_custom_call.1} parent=1 // pred_check
      _
    $region15: #{tpu_custom_call.1} parent=1 // pred_check_branch
      %20 = sbr.rel (0) target = $region17
    $region16: #{tpu_custom_call.1} parent=1 // pred_region
      _
    $region17: #{tpu_custom_call.1} parent=1 // pred_fallthru
      _
    // Predicated region
    $region18: #{tpu_custom_call.1} parent=1 // pred_check
      _
    $region19: #{tpu_custom_call.1} parent=1 // pred_check_branch
      %22 = sbr.rel (0) target = $region21
    $region20: #{tpu_custom_call.1} parent=1 // pred_region
      _
    $region21: #{tpu_custom_call.1} parent=1 // pred_fallthru
      _
    // Predicated region
    $region22: #{tpu_custom_call.1} parent=1 // pred_check
      _
    $region23: #{tpu_custom_call.1} parent=1 // pred_check_branch
      %24 = sbr.rel (0) target = $region25
    $region24: #{tpu_custom_call.1} parent=1 // pred_region
      _
    $region25: #{tpu_custom_call.1} parent=1 // pred_fallthru
      _
    // Predicated region
    $region26: #{tpu_custom_call.1} parent=1 // pred_check
      _
    $region27: #{tpu_custom_call.1} parent=1 // pred_check_branch
      %26 = sbr.rel (0) target = $region29
    $region28: #{tpu_custom_call.1} parent=1 // pred_region
      _
    $region29: #{tpu_custom_call.1} parent=1 // pred_fallthru
      _
    %v30 = vld [vmem:[%s0] sm:$0xff]
    %v31 = vld [vmem:[%s0 + $0x8] sm:$0xff]
    %v34 = vunpack.c.l.b16 %v30
    %v35 = vunpack.c.h.b16 %v30
    %v36 = vunpack.c.l.b16 %v31
    %v37 = vunpack.c.h.b16 %v31
    %v38 = vpack.c.b16 %v36, %v34
    %v39 = vpack.c.b16 %v37, %v35
    %40 = vrot.lane.b32.xlu0 %v38, 17
    %v41 = vpop.permute.xlu0 %40
    %42 = vrot.lane.b32.xlu0 %v39, 17
    %v43 = vpop.permute.xlu0 %42
    %vm44 = vcmask 138240
    %v45 = vsel %vm44, %v41, %v43
    %vm47 = vcmask 138240
    %v50 = vsel %vm47, 0, %v41
    %v53 = vsel %vm47, %v43, 0
    %v55 = vlaneseq
    %v56 = vand.u32 %v55, 127
    %v57 = vadd.s32 %v56, 128
    %vm58 = vcmp.lt.s32.totalorder %v56, 0
    %v59 = vsub.s32 0, %v56
    %v60 = vsel %vm58, %v59, %v56
    %v61 = vshrl.u32 %v60, 4
    %v62 = vand.u32 %v60, 15
    %v63 = vsub.s32 0, %v62
    %v64 = vsel %vm58, %v63, %v62
    %vm65 = vcmp.lt.s32.totalorder %v57, 0
    %v66 = vsub.s32 0, %v57
    %v67 = vsel %vm65, %v66, %v57
    %v68 = vshrl.u32 %v67, 4
    %v69 = vand.u32 %v67, 15
    %v70 = vsub.s32 0, %v69
    %v71 = vsel %vm65, %v70, %v69
    %vm72 = vcmp.ne.s32.totalorder %v64, 0
    %vm73 = vcmp.ne.s32.totalorder %v71, 0
    %vm74 = vcmp.lt.s32.totalorder %v64, 0
    %vm75 = vcmp.lt.s32.totalorder %v71, 0
    %vm76 = vmand %vm74, %vm72
    %vm77 = vmand %vm75, %vm73
    %v78 = vadd.s32 %v64, 16
    %v79 = vadd.s32 %v71, 16
    %v80 = vsel %vm76, %v78, %v64
    %v81 = vsel %vm77, %v79, %v71
    %v82 = vadd.s32 %v80, 4294967295
    %v83 = vadd.s32 %v81, 4294967295
    %vm84 = vcmp.ge.s32.totalorder %v82, 0
    %vm85 = vcmp.ge.s32.totalorder %v83, 0
    %vm86 = vcmp.lt.s32.totalorder %v82, 16
    %vm87 = vcmp.lt.s32.totalorder %v83, 16
    %vm88 = vmand %vm84, %vm86
    %vm89 = vmand %vm85, %vm87
    %v90 = vadd.s32 %v80, 1
    %v91 = vadd.s32 %v81, 1
    %vm92 = vcmp.ge.s32.totalorder %v90, 0
    %vm93 = vcmp.ge.s32.totalorder %v91, 0
    %vm94 = vcmp.lt.s32.totalorder %v90, 16
    %vm95 = vcmp.lt.s32.totalorder %v91, 16
    %vm96 = vmand %vm92, %vm94
    %vm97 = vmand %vm93, %vm95
    %v98 = vsel %vm88, 1, 0
    %v99 = vsel %vm89, 1, 0
    %vm100 = vcmp.eq.s32.totalorder %v98, 1
    %vm101 = vcmp.eq.s32.totalorder %v99, 1
    %vm102 = vmpackc.low %vm101, %vm100
    %v103 = vsel %vm102, 65537, 0
    %v104 = vlaneseq
    %v105 = vshrl.u32 %v104, 7
    %v106 = vsub.s32 0, %v105
    %v107 = vrot.slane %v103, %v106
    %v108 = vlaneseq
    %v109 = vshrl.u32 %v108, 7
    %v110 = vsub.s32 4, %v109
    %v111 = vrot.slane %v103, %v110
    %vm112 = vcmp.ne.s16.totalorder %v107, 0
    %vm113 = vcmp.ne.s16.totalorder %v111, 0
    %v114 = vsel %vm112, %v50, 0
    %v115 = vsel %vm113, %v45, 0
    %v116 = vsel %vm96, 1, 0
    %v117 = vsel %vm97, 1, 0
    %vm118 = vcmp.eq.s32.totalorder %v116, 1
    %vm119 = vcmp.eq.s32.totalorder %v117, 1
    %vm120 = vmpackc.low %vm119, %vm118
    %v121 = vsel %vm120, 65537, 0
    %v122 = vlaneseq
    %v123 = vshrl.u32 %v122, 7
    %v124 = vsub.s32 0, %v123
    %v125 = vrot.slane %v121, %v124
    %v126 = vlaneseq
    %v127 = vshrl.u32 %v126, 7
    %v128 = vsub.s32 4, %v127
    %v129 = vrot.slane %v121, %v128
    %130 = vrot.lane.b32.xlu0 %v125, 2
    %v131 = vpop.permute.xlu0 %130
    %132 = vrot.lane.b32.xlu0 %v129, 2
    %v133 = vpop.permute.xlu0 %132
    %vm134 = vcmask 15360
    %v135 = vsel %vm134, %v131, %v133
    %vm136 = vcmp.ne.s16.totalorder %v131, 0
    %vm137 = vcmp.ne.s16.totalorder %v135, 0
    %vm138 = vcmp.ne.s16.totalorder %v133, 0
    %v139 = vsel %vm136, %v50, 0
    %v140 = vsel %vm137, %v45, 0
    %v141 = vsel %vm138, %v53, 0
    %142 = vrot.lane.b32.xlu0 %v107, 16
    %v143 = vpop.permute.xlu0 %142
    %144 = vrot.lane.b32.xlu0 %v111, 16
    %v145 = vpop.permute.xlu0 %144
    %vm146 = vcmask 130048
    %v147 = vsel %vm146, %v143, %v145
    %vm148 = vcmp.ne.s16.totalorder %v143, 0
    %vm149 = vcmp.ne.s16.totalorder %v147, 0
    %vm150 = vcmp.ne.s16.totalorder %v145, 0
    %v151 = vsel %vm148, %v50, 0
    %v152 = vsel %vm149, %v45, 0
    %v153 = vsel %vm150, %v53, 0
    %154 = vrot.lane.b32.xlu0 %v125, 18
    %v155 = vpop.permute.xlu0 %154
    %156 = vrot.lane.b32.xlu0 %v129, 18
    %v157 = vpop.permute.xlu0 %156
    %vm158 = vcmask 146432
    %v159 = vsel %vm158, %v155, %v157
    %vm160 = vcmp.ne.s16.totalorder %v155, 0
    %vm161 = vcmp.ne.s16.totalorder %v159, 0
    %vm162 = vcmp.ne.s16.totalorder %v157, 0
    %v163 = vsel %vm160, %v50, 0
    %v164 = vsel %vm161, %v45, 0
    %v165 = vsel %vm162, %v53, 0
    %166 = vrot.lane.b32.xlu0 %v107, 32
    %v167 = vpop.permute.xlu0 %166
    %168 = vrot.lane.b32.xlu0 %v111, 32
    %v169 = vpop.permute.xlu0 %168
    %vm170 = vcmask 261120
    %v171 = vsel %vm170, %v167, %v169
    %vm172 = vcmp.ne.s16.totalorder %v167, 0
    %vm173 = vcmp.ne.s16.totalorder %v171, 0
    %vm174 = vcmp.ne.s16.totalorder %v169, 0
    %v175 = vsel %vm172, %v50, 0
    %v176 = vsel %vm173, %v45, 0
    %v177 = vsel %vm174, %v53, 0
    %178 = vrot.lane.b32.xlu0 %v125, 34
    %v179 = vpop.permute.xlu0 %178
    %180 = vrot.lane.b32.xlu0 %v129, 34
    %v181 = vpop.permute.xlu0 %180
    %vm182 = vcmask 277504
    %v183 = vsel %vm182, %v179, %v181
    %vm184 = vcmp.ne.s16.totalorder %v179, 0
    %vm185 = vcmp.ne.s16.totalorder %v183, 0
    %vm186 = vcmp.ne.s16.totalorder %v181, 0
    %v187 = vsel %vm184, %v50, 0
    %v188 = vsel %vm185, %v45, 0
    %v189 = vsel %vm186, %v53, 0
    %v190 = vld [vmem:[%s1] sm:$0x3]
    %v191 = vld [vmem:[%s2] sm:$0xf]
    %v194 = vrot.slane %v50, 4
    %v195 = vrot.slane %v45, 4
    %v196 = vrot.slane %v53, 4
    %197 = vrot.lane.b32.xlu0 %v194, 127
    %v198 = vpop.permute.xlu0 %197
    %199 = vrot.lane.b32.xlu0 %v195, 127
    %v200 = vpop.permute.xlu0 %199
    %201 = vrot.lane.b32.xlu0 %v196, 127
    %v202 = vpop.permute.xlu0 %201
    %vm203 = vcmask 1039360
    %v204 = vsel %vm203, %v198, %v200
    %v205 = vsel %vm203, %v200, %v202
    %209 = vrot.lane.b32.xlu0 %v139, 126
    %v210 = vpop.permute.xlu0 %209
    %211 = vrot.lane.b32.xlu0 %v140, 126
    %v212 = vpop.permute.xlu0 %211
    %213 = vrot.lane.b32.xlu0 %v141, 126
    %v214 = vpop.permute.xlu0 %213
    %vm215 = vcmask 1031168
    %v216 = vsel %vm215, %v210, %v212
    %v217 = vsel %vm215, %v212, %v214
    %v221 = vrot.slane %v151, 4
    %v222 = vrot.slane %v152, 4
    %v223 = vrot.slane %v153, 4
    %224 = vrot.lane.b32.xlu0 %v221, 112
    %v225 = vpop.permute.xlu0 %224
    %226 = vrot.lane.b32.xlu0 %v222, 112
    %v227 = vpop.permute.xlu0 %226
    %228 = vrot.lane.b32.xlu0 %v223, 112
    %v229 = vpop.permute.xlu0 %228
    %vm230 = vcmask 916480
    %v231 = vsel %vm230, %v225, %v227
    %v232 = vsel %vm230, %v227, %v229
    %233 = vrot.lane.b32.xlu0 %v50, 111
    %v234 = vpop.permute.xlu0 %233
    %235 = vrot.lane.b32.xlu0 %v45, 111
    %v236 = vpop.permute.xlu0 %235
    %237 = vrot.lane.b32.xlu0 %v53, 111
    %v238 = vpop.permute.xlu0 %237
    %vm239 = vcmask 908288
    %v240 = vsel %vm239, %v234, %v236
    %v241 = vsel %vm239, %v236, %v238
    %v245 = vrot.slane %v163, 4
    %v246 = vrot.slane %v164, 4
    %v247 = vrot.slane %v165, 4
    %248 = vrot.lane.b32.xlu0 %v245, 110
    %v249 = vpop.permute.xlu0 %248
    %250 = vrot.lane.b32.xlu0 %v246, 110
    %v251 = vpop.permute.xlu0 %250
    %252 = vrot.lane.b32.xlu0 %v247, 110
    %v253 = vpop.permute.xlu0 %252
    %vm254 = vcmask 900096
    %v255 = vsel %vm254, %v249, %v251
    %v256 = vsel %vm254, %v251, %v253
    %260 = vrot.lane.b32.xlu0 %v175, 96
    %v261 = vpop.permute.xlu0 %260
    %262 = vrot.lane.b32.xlu0 %v176, 96
    %v263 = vpop.permute.xlu0 %262
    %264 = vrot.lane.b32.xlu0 %v177, 96
    %v265 = vpop.permute.xlu0 %264
    %vm266 = vcmask 785408
    %v267 = vsel %vm266, %v261, %v263
    %v268 = vsel %vm266, %v263, %v265
    %269 = vrot.lane.b32.xlu0 %v194, 95
    %v270 = vpop.permute.xlu0 %269
    %271 = vrot.lane.b32.xlu0 %v195, 95
    %v272 = vpop.permute.xlu0 %271
    %273 = vrot.lane.b32.xlu0 %v196, 95
    %v274 = vpop.permute.xlu0 %273
    %vm275 = vcmask 777216
    %v276 = vsel %vm275, %v270, %v272
    %v277 = vsel %vm275, %v272, %v274
    %281 = vrot.lane.b32.xlu0 %v187, 94
    %v282 = vpop.permute.xlu0 %281
    %283 = vrot.lane.b32.xlu0 %v188, 94
    %v284 = vpop.permute.xlu0 %283
    %285 = vrot.lane.b32.xlu0 %v189, 94
    %v286 = vpop.permute.xlu0 %285
    %vm287 = vcmask 769024
    %v288 = vsel %vm287, %v282, %v284
    %v289 = vsel %vm287, %v284, %v286
    %vm290 = vcmask 1043456
    %v293 = vsel %vm290, %v114, %v204
    %v297 = vsel %vm290, %v115, %v205
    %v301 = vsel %vm290, %v216, %v231
    %v305 = vsel %vm290, %v217, %v232
    %v309 = vsel %vm290, %v240, %v255
    %v313 = vsel %vm290, %v241, %v256
    %v317 = vsel %vm290, %v267, %v276
    %v321 = vsel %vm290, %v268, %v277
    %324 = vset.pattern.permute.xlu0 0
    %325 = vperm.xlu0 %324, %v191
    %v326 = vpop.permute.xlu0 %325
    %vm328 = vcmask 588800
    %v330 = vsel %vm328, %v190, 0
    %v333 = vsel %vm290, %v288, 0
    %v336 = vsel %vm290, %v289, 0
    %338 = vmatprep.subr.bf16.mxu0 %v297
    %339 = vmatpush1.bf16.msra.mxu0 %v293
    %340 = vmatprep.subr.bf16.mxu0 %v305
    %341 = vmatpush1.bf16.msra.mxu0 %v301
    %342 = vmatprep.subr.bf16.mxu0 %v313
    %343 = vmatpush1.bf16.msra.mxu0 %v309
    %344 = vmatprep.subr.bf16.mxu0 %v321
    %345 = vmatpush1.bf16.msra.mxu0 %v317
    %346 = vmatprep.subr.bf16.mxu0 %v336
    %347 = vmatpush1.bf16.msra.mxu0 %v333
    %348 = vmatprep.subr.bf16.mxu0 0
    %349 = vmatpush1.bf16.msra.mxu0 0
    %350 = vmatprep.subr.bf16.mxu0 0
    %351 = vmatpush1.bf16.msra.mxu0 0
    %352 = vmatprep.subr.bf16.mxu0 0
    %353 = vmatpush1.bf16.msra.mxu0 0
    %354 = vmatprep.subr.bf16.mxu0 0
    %355 = vmatpush1.bf16.msra.mxu0 0
    %356 = vmatprep.subr.bf16.mxu0 0
    %357 = vmatpush1.bf16.msra.mxu0 0
    %358 = vmatprep.subr.bf16.mxu0 0
    %359 = vmatpush1.bf16.msra.mxu0 0
    %360 = vmatprep.subr.bf16.mxu0 0
    %361 = vmatpush1.bf16.msra.mxu0 0
    %362 = vmatprep.subr.bf16.mxu0 0
    %363 = vmatpush1.bf16.msra.mxu0 0
    %364 = vmatprep.subr.bf16.mxu0 0
    %365 = vmatpush1.bf16.msra.mxu0 0
    %366 = vmatprep.subr.bf16.mxu0 0
    %367 = vmatpush1.bf16.msra.mxu0 0
    %368 = vmatprep.subr.bf16.mxu0 0
    %369 = vmatpush1.bf16.msra.mxu0 0
    %370 = vmatprep.mubr.bf16.mxu0 0
    %371 = vmatmul.mubr.bf16.gmra.mrb[0].mxu0 %v330
    %v372 = vpop.f32.mrb[0].mxu0
    %v373 = vadd.f32 %v326, %v372
    %v374 = vpop.f32.mrb[0].mxu0
    %v375 = vadd.f32 %v326, %v374
    %v376 = vpop.f32.mrb[0].mxu0
    %v377 = vpop.f32.mrb[0].mxu0
    %378 = vdwg.mxu0
    %vm379 = vcmp.ge.f32.partialorder %v373, 0.0
    %vm380 = vcmp.ge.f32.partialorder %v375, 0.0
    %v381 = vmul.f32 %v373, 0.05
    %v382 = vmul.f32 %v375, 0.05
    %v383 = vsel %vm379, %v373, %v381
    %v384 = vsel %vm380, %v375, %v382
    %v385 = vadd.f32 %v383, 0.0
    %v386 = vadd.f32 %v384, 0.0
    %v389 = vrot.slane %v114, 4
    %v390 = vrot.slane %v115, 4
    %391 = vrot.lane.b32.xlu0 %v50, 127
    %v392 = vpop.permute.xlu0 %391
    %393 = vrot.lane.b32.xlu0 %v45, 127
    %v394 = vpop.permute.xlu0 %393
    %395 = vrot.lane.b32.xlu0 %v53, 127
    %v396 = vpop.permute.xlu0 %395
    %v397 = vsel %vm203, %v392, %v394
    %v398 = vsel %vm203, %v394, %v396
    %v399 = vrot.slane %v139, 4
    %v400 = vrot.slane %v140, 4
    %v401 = vrot.slane %v141, 4
    %402 = vrot.lane.b32.xlu0 %v399, 126
    %v403 = vpop.permute.xlu0 %402
    %404 = vrot.lane.b32.xlu0 %v400, 126
    %v405 = vpop.permute.xlu0 %404
    %406 = vrot.lane.b32.xlu0 %v401, 126
    %v407 = vpop.permute.xlu0 %406
    %v408 = vsel %vm215, %v403, %v405
    %v409 = vsel %vm215, %v405, %v407
    %410 = vrot.lane.b32.xlu0 %v151, 112
    %v411 = vpop.permute.xlu0 %410
    %412 = vrot.lane.b32.xlu0 %v152, 112
    %v413 = vpop.permute.xlu0 %412
    %414 = vrot.lane.b32.xlu0 %v153, 112
    %v415 = vpop.permute.xlu0 %414
    %v416 = vsel %vm230, %v411, %v413
    %v417 = vsel %vm230, %v413, %v415
    %418 = vrot.lane.b32.xlu0 %v194, 111
    %v419 = vpop.permute.xlu0 %418
    %420 = vrot.lane.b32.xlu0 %v195, 111
    %v421 = vpop.permute.xlu0 %420
    %422 = vrot.lane.b32.xlu0 %v196, 111
    %v423 = vpop.permute.xlu0 %422
    %v424 = vsel %vm239, %v419, %v421
    %v425 = vsel %vm239, %v421, %v423
    %426 = vrot.lane.b32.xlu0 %v163, 110
    %v427 = vpop.permute.xlu0 %426
    %428 = vrot.lane.b32.xlu0 %v164, 110
    %v429 = vpop.permute.xlu0 %428
    %430 = vrot.lane.b32.xlu0 %v165, 110
    %v431 = vpop.permute.xlu0 %430
    %v432 = vsel %vm254, %v427, %v429
    %v433 = vsel %vm254, %v429, %v431
    %v434 = vrot.slane %v175, 4
    %v435 = vrot.slane %v176, 4
    %v436 = vrot.slane %v177, 4
    %437 = vrot.lane.b32.xlu0 %v434, 96
    %v438 = vpop.permute.xlu0 %437
    %439 = vrot.lane.b32.xlu0 %v435, 96
    %v440 = vpop.permute.xlu0 %439
    %441 = vrot.lane.b32.xlu0 %v436, 96
    %v442 = vpop.permute.xlu0 %441
    %v443 = vsel %vm266, %v438, %v440
    %v444 = vsel %vm266, %v440, %v442
    %445 = vrot.lane.b32.xlu0 %v50, 95
    %v446 = vpop.permute.xlu0 %445
    %447 = vrot.lane.b32.xlu0 %v45, 95
    %v448 = vpop.permute.xlu0 %447
    %449 = vrot.lane.b32.xlu0 %v53, 95
    %v450 = vpop.permute.xlu0 %449
    %v451 = vsel %vm275, %v446, %v448
    %v452 = vsel %vm275, %v448, %v450
    %v453 = vrot.slane %v187, 4
    %v454 = vrot.slane %v188, 4
    %v455 = vrot.slane %v189, 4
    %456 = vrot.lane.b32.xlu0 %v453, 94
    %v457 = vpop.permute.xlu0 %456
    %458 = vrot.lane.b32.xlu0 %v454, 94
    %v459 = vpop.permute.xlu0 %458
    %460 = vrot.lane.b32.xlu0 %v455, 94
    %v461 = vpop.permute.xlu0 %460
    %v462 = vsel %vm287, %v457, %v459
    %v463 = vsel %vm287, %v459, %v461
    %v466 = vsel %vm290, %v389, %v397
    %v470 = vsel %vm290, %v390, %v398
    %v474 = vsel %vm290, %v408, %v416
    %v478 = vsel %vm290, %v409, %v417
    %v482 = vsel %vm290, %v424, %v432
    %v486 = vsel %vm290, %v425, %v433
    %v490 = vsel %vm290, %v443, %v451
    %v494 = vsel %vm290, %v444, %v452
    %v497 = vsel %vm290, %v462, 0
    %v500 = vsel %vm290, %v463, 0
    %502 = vmatprep.subr.bf16.mxu0 %v470
    %503 = vmatpush1.bf16.msra.mxu0 %v466
    %504 = vmatprep.subr.bf16.mxu0 %v478
    %505 = vmatpush1.bf16.msra.mxu0 %v474
    %506 = vmatprep.subr.bf16.mxu0 %v486
    %507 = vmatpush1.bf16.msra.mxu0 %v482
    %508 = vmatprep.subr.bf16.mxu0 %v494
    %509 = vmatpush1.bf16.msra.mxu0 %v490
    %510 = vmatprep.subr.bf16.mxu0 %v500
    %511 = vmatpush1.bf16.msra.mxu0 %v497
    %512 = vmatprep.subr.bf16.mxu0 0
    %513 = vmatpush1.bf16.msra.mxu0 0
    %514 = vmatprep.subr.bf16.mxu0 0
    %515 = vmatpush1.bf16.msra.mxu0 0
    %516 = vmatprep.subr.bf16.mxu0 0
    %517 = vmatpush1.bf16.msra.mxu0 0
    %518 = vmatprep.subr.bf16.mxu0 0
    %519 = vmatpush1.bf16.msra.mxu0 0
    %520 = vmatprep.subr.bf16.mxu0 0
    %521 = vmatpush1.bf16.msra.mxu0 0
    %522 = vmatprep.subr.bf16.mxu0 0
    %523 = vmatpush1.bf16.msra.mxu0 0
    %524 = vmatprep.subr.bf16.mxu0 0
    %525 = vmatpush1.bf16.msra.mxu0 0
    %526 = vmatprep.subr.bf16.mxu0 0
    %527 = vmatpush1.bf16.msra.mxu0 0
    %528 = vmatprep.subr.bf16.mxu0 0
    %529 = vmatpush1.bf16.msra.mxu0 0
    %530 = vmatprep.subr.bf16.mxu0 0
    %531 = vmatpush1.bf16.msra.mxu0 0
    %532 = vmatprep.subr.bf16.mxu0 0
    %533 = vmatpush1.bf16.msra.mxu0 0
    %534 = vmatprep.mubr.bf16.mxu0 0
    %535 = vmatmul.mubr.bf16.gmra.mrb[0].mxu0 %v330
    %v536 = vpop.f32.mrb[0].mxu0
    %v537 = vadd.f32 %v326, %v536
    %v538 = vpop.f32.mrb[0].mxu0
    %v539 = vadd.f32 %v326, %v538
    %v540 = vpop.f32.mrb[0].mxu0
    %v541 = vpop.f32.mrb[0].mxu0
    %542 = vdwg.mxu0
    %vm543 = vcmp.ge.f32.partialorder %v537, 0.0
    %vm544 = vcmp.ge.f32.partialorder %v539, 0.0
    %v545 = vmul.f32 %v537, 0.05
    %v546 = vmul.f32 %v539, 0.05
    %v547 = vsel %vm543, %v537, %v545
    %v548 = vsel %vm544, %v539, %v546
    %v549 = vadd.f32 %v547, 0.0
    %v550 = vadd.f32 %v548, 0.0
    %v551 = vld [vmem:[%s3] sm:$0xf]
    %v552 = vld [vmem:[%s3 + $0x4] sm:$0xf]
    %v553 = vld [vmem:[%s3 + $0x8] sm:$0xf]
    %v554 = vld [vmem:[%s3 + $0xc] sm:$0xf]
    %v555 = vld [vmem:[%s3 + $0x10] sm:$0xf]
    %v556 = vld [vmem:[%s3 + $0x14] sm:$0xf]
    %v557 = vld [vmem:[%s3 + $0x18] sm:$0xf]
    %v558 = vld [vmem:[%s3 + $0x1c] sm:$0xf]
    %v559 = vld [vmem:[%s3 + $0x20] sm:$0xf]
    %v560 = vld [vmem:[%s3 + $0x24] sm:$0xf]
    %v561 = vld [vmem:[%s3 + $0x28] sm:$0xf]
    %v562 = vld [vmem:[%s3 + $0x2c] sm:$0xf]
    %v563 = vld [vmem:[%s3 + $0x30] sm:$0xf]
    %v564 = vld [vmem:[%s3 + $0x34] sm:$0xf]
    %v565 = vld [vmem:[%s3 + $0x38] sm:$0xf]
    %v566 = vld [vmem:[%s3 + $0x3c] sm:$0xf]
    %v567 = vld [vmem:[%s3 + $0x40] sm:$0xf]
    %v568 = vld [vmem:[%s3 + $0x44] sm:$0xf]
    %v569 = vld [vmem:[%s3 + $0x48] sm:$0xf]
    %v570 = vld [vmem:[%s3 + $0x4c] sm:$0xf]
    %v571 = vld [vmem:[%s3 + $0x50] sm:$0xf]
    %v572 = vld [vmem:[%s3 + $0x54] sm:$0xf]
    %v573 = vld [vmem:[%s3 + $0x58] sm:$0xf]
    %v574 = vld [vmem:[%s3 + $0x5c] sm:$0xf]
    %v575 = vld [vmem:[%s3 + $0x60] sm:$0xf]
    %v576 = vld [vmem:[%s3 + $0x64] sm:$0xf]
    %v577 = vld [vmem:[%s3 + $0x68] sm:$0xf]
    %v578 = vld [vmem:[%s3 + $0x6c] sm:$0xf]
    %v579 = vld [vmem:[%s3 + $0x70] sm:$0xf]
    %v580 = vld [vmem:[%s3 + $0x74] sm:$0xf]
    %v581 = vld [vmem:[%s3 + $0x78] sm:$0xf]
    %v582 = vld [vmem:[%s3 + $0x7c] sm:$0xf]
    %v617 = vunpack.c.l.b16 %v551
    %v618 = vunpack.c.l.b16 %v552
    %v619 = vunpack.c.l.b16 %v553
    %v620 = vunpack.c.l.b16 %v554
    %v621 = vunpack.c.l.b16 %v555
    %v622 = vunpack.c.l.b16 %v556
    %v623 = vunpack.c.l.b16 %v557
    %v624 = vunpack.c.l.b16 %v558
    %v625 = vunpack.c.l.b16 %v559
    %v626 = vunpack.c.l.b16 %v560
    %v627 = vunpack.c.l.b16 %v561
    %v628 = vunpack.c.l.b16 %v562
    %v629 = vunpack.c.l.b16 %v563
    %v630 = vunpack.c.l.b16 %v564
    %v631 = vunpack.c.l.b16 %v565
    %v632 = vunpack.c.l.b16 %v566
    %v633 = vunpack.c.l.b16 %v567
    %v634 = vunpack.c.l.b16 %v568
    %v635 = vunpack.c.l.b16 %v569
    %v636 = vunpack.c.l.b16 %v570
    %v637 = vunpack.c.l.b16 %v571
    %v638 = vunpack.c.l.b16 %v572
    %v639 = vunpack.c.l.b16 %v573
    %v640 = vunpack.c.l.b16 %v574
    %v641 = vunpack.c.l.b16 %v575
    %v642 = vunpack.c.l.b16 %v576
    %v643 = vunpack.c.l.b16 %v577
    %v644 = vunpack.c.l.b16 %v578
    %v645 = vunpack.c.l.b16 %v579
    %v646 = vunpack.c.l.b16 %v580
    %v647 = vunpack.c.l.b16 %v581
    %v648 = vunpack.c.l.b16 %v582
    %v649 = vpack.c.b16 %v618, %v617
    %v650 = vpack.c.b16 %v620, %v619
    %v651 = vpack.c.b16 %v622, %v621
    %v652 = vpack.c.b16 %v624, %v623
    %v653 = vpack.c.b16 %v626, %v625
    %v654 = vpack.c.b16 %v628, %v627
    %v655 = vpack.c.b16 %v630, %v629
    %v656 = vpack.c.b16 %v632, %v631
    %v657 = vpack.c.b16 %v634, %v633
    %v658 = vpack.c.b16 %v636, %v635
    %v659 = vpack.c.b16 %v638, %v637
    %v660 = vpack.c.b16 %v640, %v639
    %v661 = vpack.c.b16 %v642, %v641
    %v662 = vpack.c.b16 %v644, %v643
    %v663 = vpack.c.b16 %v646, %v645
    %v664 = vpack.c.b16 %v648, %v647
    %681 = vmatprep.subr.bf16.mxu0 0
    %682 = vmatpush1.bf16.msra.mxu0 %v649
    %683 = vmatprep.subr.bf16.mxu0 0
    %684 = vmatpush1.bf16.msra.mxu0 %v650
    %685 = vmatprep.subr.bf16.mxu0 0
    %686 = vmatpush1.bf16.msra.mxu0 %v651
    %687 = vmatprep.subr.bf16.mxu0 0
    %688 = vmatpush1.bf16.msra.mxu0 %v652
    %689 = vmatprep.subr.bf16.mxu0 0
    %690 = vmatpush1.bf16.msra.mxu0 %v653
    %691 = vmatprep.subr.bf16.mxu0 0
    %692 = vmatpush1.bf16.msra.mxu0 %v654
    %693 = vmatprep.subr.bf16.mxu0 0
    %694 = vmatpush1.bf16.msra.mxu0 %v655
    %695 = vmatprep.subr.bf16.mxu0 0
    %696 = vmatpush1.bf16.msra.mxu0 %v656
    %697 = vmatprep.subr.bf16.mxu0 0
    %698 = vmatpush1.bf16.msra.mxu0 %v657
    %699 = vmatprep.subr.bf16.mxu0 0
    %700 = vmatpush1.bf16.msra.mxu0 %v658
    %701 = vmatprep.subr.bf16.mxu0 0
    %702 = vmatpush1.bf16.msra.mxu0 %v659
    %703 = vmatprep.subr.bf16.mxu0 0
    %704 = vmatpush1.bf16.msra.mxu0 %v660
    %705 = vmatprep.subr.bf16.mxu0 0
    %706 = vmatpush1.bf16.msra.mxu0 %v661
    %707 = vmatprep.subr.bf16.mxu0 0
    %708 = vmatpush1.bf16.msra.mxu0 %v662
    %709 = vmatprep.subr.bf16.mxu0 0
    %710 = vmatpush1.bf16.msra.mxu0 %v663
    %711 = vmatprep.subr.bf16.mxu0 0
    %712 = vmatpush1.bf16.msra.mxu0 %v664
    %713 = vmatprep.mubr.bf16.mxu0 %v39
    %714 = vmatmul.mubr.bf16.gmra.mrb[0].mxu0 %v38
    %v715 = vpop.f32.mrb[0].mxu0
    %v716 = vadd.f32 0.0, %v715
    %v717 = vpop.f32.mrb[0].mxu0
    %v718 = vpop.f32.mrb[0].mxu0
    %v719 = vadd.f32 0.0, %v718
    %v720 = vpop.f32.mrb[0].mxu0
    %721 = vdwg.mxu0
    %v722 = vpack.c.bf16 %v719, %v716
    %724 = vrot.lane.b32.xlu0 %v722, 9
    %v725 = vpop.permute.xlu0 %724
    %vm726 = vcmask 72704
    %v728 = vsel %vm726, 0, %v725
    %vm729 = vcmask 596992
    %v730 = vsel %vm729, %v728, 0
    %vm732 = vcmp.lt.s32.totalorder %v56, 0
    %v733 = vsub.s32 0, %v56
    %v734 = vsel %vm732, %v733, %v56
    %v735 = vshrl.u32 %v734, 3
    %v736 = vand.u32 %v734, 7
    %v737 = vsub.s32 0, %v736
    %v738 = vsel %vm732, %v737, %v736
    %vm739 = vcmp.ne.s32.totalorder %v738, 0
    %vm740 = vcmp.lt.s32.totalorder %v738, 0
    %vm741 = vmand %vm740, %vm739
    %v742 = vadd.s32 %v738, 8
    %v743 = vsel %vm741, %v742, %v738
    %v744 = vadd.s32 %v743, 4294967295
    %vm745 = vcmp.ge.s32.totalorder %v744, 0
    %vm746 = vcmp.lt.s32.totalorder %v744, 8
    %vm747 = vmand %vm745, %vm746
    %v748 = vadd.s32 %v743, 1
    %vm749 = vcmp.ge.s32.totalorder %v748, 0
    %vm750 = vcmp.lt.s32.totalorder %v748, 8
    %vm751 = vmand %vm749, %vm750
    %v752 = vsel %vm747, 1, 0
    %vm753 = vcmp.eq.s32.totalorder %v752, 1
    %vm754 = vmpackc.low %vm753, %vm753
    %v755 = vsel %vm754, 65537, 0
    %v756 = vlaneseq
    %v757 = vshrl.u32 %v756, 7
    %v758 = vsub.s32 0, %v757
    %v759 = vrot.slane %v755, %v758
    %vm760 = vcmp.ne.s16.totalorder %v759, 0
    %v761 = vsel %vm760, %v730, 0
    %v762 = vsel %vm751, 1, 0
    %vm763 = vcmp.eq.s32.totalorder %v762, 1
    %vm764 = vmpackc.low %vm763, %vm763
    %v765 = vsel %vm764, 65537, 0
    %v766 = vlaneseq
    %v767 = vshrl.u32 %v766, 7
    %v768 = vsub.s32 0, %v767
    %v769 = vrot.slane %v765, %v768
    %770 = vrot.lane.b32.xlu0 %v769, 2
    %v771 = vpop.permute.xlu0 %770
    %vm772 = vcmp.ne.s16.totalorder %v771, 0
    %v773 = vsel %vm772, %v730, 0
    %774 = vrot.lane.b32.xlu0 %v759, 8
    %v775 = vpop.permute.xlu0 %774
    %vm776 = vcmp.ne.s16.totalorder %v775, 0
    %v777 = vsel %vm776, %v730, 0
    %778 = vrot.lane.b32.xlu0 %v769, 10
    %v779 = vpop.permute.xlu0 %778
    %vm780 = vcmp.ne.s16.totalorder %v779, 0
    %v781 = vsel %vm780, %v730, 0
    %782 = vrot.lane.b32.xlu0 %v759, 16
    %v783 = vpop.permute.xlu0 %782
    %vm784 = vcmp.ne.s16.totalorder %v783, 0
    %v785 = vsel %vm784, %v730, 0
    %786 = vrot.lane.b32.xlu0 %v769, 18
    %v787 = vpop.permute.xlu0 %786
    %vm788 = vcmp.ne.s16.totalorder %v787, 0
    %v789 = vsel %vm788, %v730, 0
    %s790 = scalar_lea.vmem %s1, 2
    %v791 = vld [vmem:[%s790] sm:$0x3]
    %s792 = scalar_lea.vmem %s2, 4
    %v793 = vld [vmem:[%s792] sm:$0xf]
    %v795 = vrot.slane %v730, 4
    %796 = vrot.lane.b32.xlu0 %v795, 127
    %v797 = vpop.permute.xlu0 %796
    %799 = vrot.lane.b32.xlu0 %v773, 126
    %v800 = vpop.permute.xlu0 %799
    %v802 = vrot.slane %v777, 4
    %803 = vrot.lane.b32.xlu0 %v802, 120
    %v804 = vpop.permute.xlu0 %803
    %805 = vrot.lane.b32.xlu0 %v730, 119
    %v806 = vpop.permute.xlu0 %805
    %v808 = vrot.slane %v781, 4
    %809 = vrot.lane.b32.xlu0 %v808, 118
    %v810 = vpop.permute.xlu0 %809
    %812 = vrot.lane.b32.xlu0 %v785, 112
    %v813 = vpop.permute.xlu0 %812
    %814 = vrot.lane.b32.xlu0 %v795, 111
    %v815 = vpop.permute.xlu0 %814
    %817 = vrot.lane.b32.xlu0 %v789, 110
    %v818 = vpop.permute.xlu0 %817
    %v821 = vsel %vm290, %v761, %v797
    %v825 = vsel %vm290, %v800, %v804
    %v829 = vsel %vm290, %v806, %v810
    %v833 = vsel %vm290, %v813, %v815
    %836 = vset.pattern.permute.xlu0 0
    %837 = vperm.xlu0 %836, %v793
    %v838 = vpop.permute.xlu0 %837
    %v841 = vsel %vm328, %v791, 0
    %v844 = vsel %vm290, %v818, 0
    %846 = vmatprep.subr.bf16.mxu0 0
    %847 = vmatpush1.bf16.msra.mxu0 %v821
    %848 = vmatprep.subr.bf16.mxu0 0
    %849 = vmatpush1.bf16.msra.mxu0 %v825
    %850 = vmatprep.subr.bf16.mxu0 0
    %851 = vmatpush1.bf16.msra.mxu0 %v829
    %852 = vmatprep.subr.bf16.mxu0 0
    %853 = vmatpush1.bf16.msra.mxu0 %v833
    %854 = vmatprep.subr.bf16.mxu0 0
    %855 = vmatpush1.bf16.msra.mxu0 %v844
    %856 = vmatprep.subr.bf16.mxu0 0
    %857 = vmatpush1.bf16.msra.mxu0 0
    %858 = vmatprep.subr.bf16.mxu0 0
    %859 = vmatpush1.bf16.msra.mxu0 0
    %860 = vmatprep.subr.bf16.mxu0 0
    %861 = vmatpush1.bf16.msra.mxu0 0
    %862 = vmatprep.subr.bf16.mxu0 0
    %863 = vmatpush1.bf16.msra.mxu0 0
    %864 = vmatprep.subr.bf16.mxu0 0
    %865 = vmatpush1.bf16.msra.mxu0 0
    %866 = vmatprep.subr.bf16.mxu0 0
    %867 = vmatpush1.bf16.msra.mxu0 0
    %868 = vmatprep.subr.bf16.mxu0 0
    %869 = vmatpush1.bf16.msra.mxu0 0
    %870 = vmatprep.subr.bf16.mxu0 0
    %871 = vmatpush1.bf16.msra.mxu0 0
    %872 = vmatprep.subr.bf16.mxu0 0
    %873 = vmatpush1.bf16.msra.mxu0 0
    %874 = vmatprep.subr.bf16.mxu0 0
    %875 = vmatpush1.bf16.msra.mxu0 0
    %876 = vmatprep.subr.bf16.mxu0 0
    %877 = vmatpush1.bf16.msra.mxu0 0
    %878 = vmatprep.mubr.bf16.mxu0 0
    %879 = vmatmul.mubr.bf16.gmra.mrb[0].mxu0 %v841
    %v880 = vpop.f32.mrb[0].mxu0
    %v881 = vadd.f32 %v838, %v880
    %v882 = vpop.f32.mrb[0].mxu0
    %v883 = vpop.f32.mrb[0].mxu0
    %v884 = vpop.f32.mrb[0].mxu0
    %885 = vdwg.mxu0
    %vm886 = vcmp.ge.f32.partialorder %v881, 0.0
    %v887 = vmul.f32 %v881, 0.05
    %v888 = vsel %vm886, %v881, %v887
    %v889 = vpack.c.bf16 %v888, %v888
    %v890 = vld [vmem:[%s5] sm:$0xff]
    %v891 = vld [vmem:[%s5 + $0x8] sm:$0xff]
    %v892 = vld [vmem:[%s5 + $0x10] sm:$0xff]
    %v893 = vld [vmem:[%s5 + $0x18] sm:$0xff]
    %v894 = vld [vmem:[%s5 + $0x20] sm:$0xff]
    %v895 = vld [vmem:[%s5 + $0x28] sm:$0xff]
    %v896 = vld [vmem:[%s5 + $0x30] sm:$0xff]
    %v897 = vld [vmem:[%s5 + $0x38] sm:$0xff]
    %v906 = vunpack.c.l.b16 %v890
    %v907 = vunpack.c.h.b16 %v890
    %v908 = vunpack.c.l.b16 %v891
    %v909 = vunpack.c.h.b16 %v891
    %v910 = vunpack.c.l.b16 %v892
    %v911 = vunpack.c.h.b16 %v892
    %v912 = vunpack.c.l.b16 %v893
    %v913 = vunpack.c.h.b16 %v893
    %v914 = vunpack.c.l.b16 %v894
    %v915 = vunpack.c.h.b16 %v894
    %v916 = vunpack.c.l.b16 %v895
    %v917 = vunpack.c.h.b16 %v895
    %v918 = vunpack.c.l.b16 %v896
    %v919 = vunpack.c.h.b16 %v896
    %v920 = vunpack.c.l.b16 %v897
    %v921 = vunpack.c.h.b16 %v897
    %v922 = vpack.c.b16 %v908, %v906
    %v923 = vpack.c.b16 %v909, %v907
    %v924 = vpack.c.b16 %v912, %v910
    %v925 = vpack.c.b16 %v913, %v911
    %v926 = vpack.c.b16 %v916, %v914
    %v927 = vpack.c.b16 %v917, %v915
    %v928 = vpack.c.b16 %v920, %v918
    %v929 = vpack.c.b16 %v921, %v919
    %vm938 = vcmask 523264
    %v940 = vsel %vm938, %v889, 0
    %942 = vmatprep.subr.bf16.mxu0 %v923
    %943 = vmatpush1.bf16.msra.mxu0 %v922
    %944 = vmatprep.subr.bf16.mxu0 %v925
    %945 = vmatpush1.bf16.msra.mxu0 %v924
    %946 = vmatprep.subr.bf16.mxu0 %v927
    %947 = vmatpush1.bf16.msra.mxu0 %v926
    %948 = vmatprep.subr.bf16.mxu0 %v929
    %949 = vmatpush1.bf16.msra.mxu0 %v928
    %950 = vmatprep.subr.bf16.mxu0 0
    %951 = vmatpush1.bf16.msra.mxu0 0
    %952 = vmatprep.subr.bf16.mxu0 0
    %953 = vmatpush1.bf16.msra.mxu0 0
    %954 = vmatprep.subr.bf16.mxu0 0
    %955 = vmatpush1.bf16.msra.mxu0 0
    %956 = vmatprep.subr.bf16.mxu0 0
    %957 = vmatpush1.bf16.msra.mxu0 0
    %958 = vmatprep.subr.bf16.mxu0 0
    %959 = vmatpush1.bf16.msra.mxu0 0
    %960 = vmatprep.subr.bf16.mxu0 0
    %961 = vmatpush1.bf16.msra.mxu0 0
    %962 = vmatprep.subr.bf16.mxu0 0
    %963 = vmatpush1.bf16.msra.mxu0 0
    %964 = vmatprep.subr.bf16.mxu0 0
    %965 = vmatpush1.bf16.msra.mxu0 0
    %966 = vmatprep.subr.bf16.mxu0 0
    %967 = vmatpush1.bf16.msra.mxu0 0
    %968 = vmatprep.subr.bf16.mxu0 0
    %969 = vmatpush1.bf16.msra.mxu0 0
    %970 = vmatprep.subr.bf16.mxu0 0
    %971 = vmatpush1.bf16.msra.mxu0 0
    %972 = vmatprep.subr.bf16.mxu0 0
    %973 = vmatpush1.bf16.msra.mxu0 0
    %974 = vmatprep.mubr.bf16.mxu0 0
    %975 = vmatmul.mubr.bf16.gmra.mrb[0].mxu0 %v940
    %v976 = vpop.f32.mrb[0].mxu0
    %v977 = vadd.f32 0.0, %v976
    %v978 = vpop.f32.mrb[0].mxu0
    %v979 = vadd.f32 0.0, %v978
    %v980 = vpop.f32.mrb[0].mxu0
    %v981 = vpop.f32.mrb[0].mxu0
    %982 = vdwg.mxu0
    %v983 = vadd.f32 %v385, %v977
    %v984 = vadd.f32 %v386, %v979
    %v986 = vrot.slane %v761, 4
    %987 = vrot.lane.b32.xlu0 %v730, 127
    %v988 = vpop.permute.xlu0 %987
    %v989 = vrot.slane %v773, 4
    %990 = vrot.lane.b32.xlu0 %v989, 126
    %v991 = vpop.permute.xlu0 %990
    %992 = vrot.lane.b32.xlu0 %v777, 120
    %v993 = vpop.permute.xlu0 %992
    %994 = vrot.lane.b32.xlu0 %v795, 119
    %v995 = vpop.permute.xlu0 %994
    %996 = vrot.lane.b32.xlu0 %v781, 118
    %v997 = vpop.permute.xlu0 %996
    %v998 = vrot.slane %v785, 4
    %999 = vrot.lane.b32.xlu0 %v998, 112
    %v1000 = vpop.permute.xlu0 %999
    %1001 = vrot.lane.b32.xlu0 %v730, 111
    %v1002 = vpop.permute.xlu0 %1001
    %v1003 = vrot.slane %v789, 4
    %1004 = vrot.lane.b32.xlu0 %v1003, 110
    %v1005 = vpop.permute.xlu0 %1004
    %v1008 = vsel %vm290, %v986, %v988
    %v1012 = vsel %vm290, %v991, %v993
    %v1016 = vsel %vm290, %v995, %v997
    %v1020 = vsel %vm290, %v1000, %v1002
    %v1023 = vsel %vm290, %v1005, 0
    %1025 = vmatprep.subr.bf16.mxu0 0
    %1026 = vmatpush1.bf16.msra.mxu0 %v1008
    %1027 = vmatprep.subr.bf16.mxu0 0
    %1028 = vmatpush1.bf16.msra.mxu0 %v1012
    %1029 = vmatprep.subr.bf16.mxu0 0
    %1030 = vmatpush1.bf16.msra.mxu0 %v1016
    %1031 = vmatprep.subr.bf16.mxu0 0
    %1032 = vmatpush1.bf16.msra.mxu0 %v1020
    %1033 = vmatprep.subr.bf16.mxu0 0
    %1034 = vmatpush1.bf16.msra.mxu0 %v1023
    %1035 = vmatprep.subr.bf16.mxu0 0
    %1036 = vmatpush1.bf16.msra.mxu0 0
    %1037 = vmatprep.subr.bf16.mxu0 0
    %1038 = vmatpush1.bf16.msra.mxu0 0
    %1039 = vmatprep.subr.bf16.mxu0 0
    %1040 = vmatpush1.bf16.msra.mxu0 0
    %1041 = vmatprep.subr.bf16.mxu0 0
    %1042 = vmatpush1.bf16.msra.mxu0 0
    %1043 = vmatprep.subr.bf16.mxu0 0
    %1044 = vmatpush1.bf16.msra.mxu0 0
    %1045 = vmatprep.subr.bf16.mxu0 0
    %1046 = vmatpush1.bf16.msra.mxu0 0
    %1047 = vmatprep.subr.bf16.mxu0 0
    %1048 = vmatpush1.bf16.msra.mxu0 0
    %1049 = vmatprep.subr.bf16.mxu0 0
    %1050 = vmatpush1.bf16.msra.mxu0 0
    %1051 = vmatprep.subr.bf16.mxu0 0
    %1052 = vmatpush1.bf16.msra.mxu0 0
    %1053 = vmatprep.subr.bf16.mxu0 0
    %1054 = vmatpush1.bf16.msra.mxu0 0
    %1055 = vmatprep.subr.bf16.mxu0 0
    %1056 = vmatpush1.bf16.msra.mxu0 0
    %1057 = vmatprep.mubr.bf16.mxu0 0
    %1058 = vmatmul.mubr.bf16.gmra.mrb[0].mxu0 %v841
    %v1059 = vpop.f32.mrb[0].mxu0
    %v1060 = vadd.f32 %v838, %v1059
    %v1061 = vpop.f32.mrb[0].mxu0
    %v1062 = vpop.f32.mrb[0].mxu0
    %v1063 = vpop.f32.mrb[0].mxu0
    %1064 = vdwg.mxu0
    %vm1065 = vcmp.ge.f32.partialorder %v1060, 0.0
    %v1066 = vmul.f32 %v1060, 0.05
    %v1067 = vsel %vm1065, %v1060, %v1066
    %v1068 = vpack.c.bf16 %v1067, %v1067
    %v1070 = vsel %vm938, %v1068, 0
    %1072 = vmatprep.subr.bf16.mxu0 %v923
    %1073 = vmatpush1.bf16.msra.mxu0 %v922
    %1074 = vmatprep.subr.bf16.mxu0 %v925
    %1075 = vmatpush1.bf16.msra.mxu0 %v924
    %1076 = vmatprep.subr.bf16.mxu0 %v927
    %1077 = vmatpush1.bf16.msra.mxu0 %v926
    %1078 = vmatprep.subr.bf16.mxu0 %v929
    %1079 = vmatpush1.bf16.msra.mxu0 %v928
    %1080 = vmatprep.subr.bf16.mxu0 0
    %1081 = vmatpush1.bf16.msra.mxu0 0
    %1082 = vmatprep.subr.bf16.mxu0 0
    %1083 = vmatpush1.bf16.msra.mxu0 0
    %1084 = vmatprep.subr.bf16.mxu0 0
    %1085 = vmatpush1.bf16.msra.mxu0 0
    %1086 = vmatprep.subr.bf16.mxu0 0
    %1087 = vmatpush1.bf16.msra.mxu0 0
    %1088 = vmatprep.subr.bf16.mxu0 0
    %1089 = vmatpush1.bf16.msra.mxu0 0
    %1090 = vmatprep.subr.bf16.mxu0 0
    %1091 = vmatpush1.bf16.msra.mxu0 0
    %1092 = vmatprep.subr.bf16.mxu0 0
    %1093 = vmatpush1.bf16.msra.mxu0 0
    %1094 = vmatprep.subr.bf16.mxu0 0
    %1095 = vmatpush1.bf16.msra.mxu0 0
    %1096 = vmatprep.subr.bf16.mxu0 0
    %1097 = vmatpush1.bf16.msra.mxu0 0
    %1098 = vmatprep.subr.bf16.mxu0 0
    %1099 = vmatpush1.bf16.msra.mxu0 0
    %1100 = vmatprep.subr.bf16.mxu0 0
    %1101 = vmatpush1.bf16.msra.mxu0 0
    %1102 = vmatprep.subr.bf16.mxu0 0
    %1103 = vmatpush1.bf16.msra.mxu0 0
    %1104 = vmatprep.mubr.bf16.mxu0 0
    %1105 = vmatmul.mubr.bf16.gmra.mrb[0].mxu0 %v1070
    %v1106 = vpop.f32.mrb[0].mxu0
    %v1107 = vadd.f32 0.0, %v1106
    %v1108 = vpop.f32.mrb[0].mxu0
    %v1109 = vadd.f32 0.0, %v1108
    %v1110 = vpop.f32.mrb[0].mxu0
    %v1111 = vpop.f32.mrb[0].mxu0
    %1112 = vdwg.mxu0
    %v1113 = vadd.f32 %v549, %v1107
    %v1114 = vadd.f32 %v550, %v1109
    %v1115 = vld [vmem:[%s4] sm:$0xf]
    %v1116 = vld [vmem:[%s4 + $0x4] sm:$0xf]
    %v1117 = vld [vmem:[%s4 + $0x8] sm:$0xf]
    %v1118 = vld [vmem:[%s4 + $0xc] sm:$0xf]
    %v1119 = vld [vmem:[%s4 + $0x10] sm:$0xf]
    %v1120 = vld [vmem:[%s4 + $0x14] sm:$0xf]
    %v1121 = vld [vmem:[%s4 + $0x18] sm:$0xf]
    %v1122 = vld [vmem:[%s4 + $0x1c] sm:$0xf]
    %v1123 = vld [vmem:[%s4 + $0x20] sm:$0xf]
    %v1124 = vld [vmem:[%s4 + $0x24] sm:$0xf]
    %v1125 = vld [vmem:[%s4 + $0x28] sm:$0xf]
    %v1126 = vld [vmem:[%s4 + $0x2c] sm:$0xf]
    %v1127 = vld [vmem:[%s4 + $0x30] sm:$0xf]
    %v1128 = vld [vmem:[%s4 + $0x34] sm:$0xf]
    %v1129 = vld [vmem:[%s4 + $0x38] sm:$0xf]
    %v1130 = vld [vmem:[%s4 + $0x3c] sm:$0xf]
    %v1131 = vld [vmem:[%s4 + $0x40] sm:$0xf]
    %v1132 = vld [vmem:[%s4 + $0x44] sm:$0xf]
    %v1133 = vld [vmem:[%s4 + $0x48] sm:$0xf]
    %v1134 = vld [vmem:[%s4 + $0x4c] sm:$0xf]
    %v1135 = vld [vmem:[%s4 + $0x50] sm:$0xf]
    %v1136 = vld [vmem:[%s4 + $0x54] sm:$0xf]
    %v1137 = vld [vmem:[%s4 + $0x58] sm:$0xf]
    %v1138 = vld [vmem:[%s4 + $0x5c] sm:$0xf]
    %v1139 = vld [vmem:[%s4 + $0x60] sm:$0xf]
    %v1140 = vld [vmem:[%s4 + $0x64] sm:$0xf]
    %v1141 = vld [vmem:[%s4 + $0x68] sm:$0xf]
    %v1142 = vld [vmem:[%s4 + $0x6c] sm:$0xf]
    %v1143 = vld [vmem:[%s4 + $0x70] sm:$0xf]
    %v1144 = vld [vmem:[%s4 + $0x74] sm:$0xf]
    %v1145 = vld [vmem:[%s4 + $0x78] sm:$0xf]
    %v1146 = vld [vmem:[%s4 + $0x7c] sm:$0xf]
    %v1179 = vunpack.c.l.b16 %v1115
    %v1180 = vunpack.c.l.b16 %v1116
    %v1181 = vunpack.c.l.b16 %v1117
    %v1182 = vunpack.c.l.b16 %v1118
    %v1183 = vunpack.c.l.b16 %v1119
    %v1184 = vunpack.c.l.b16 %v1120
    %v1185 = vunpack.c.l.b16 %v1121
    %v1186 = vunpack.c.l.b16 %v1122
    %v1187 = vunpack.c.l.b16 %v1123
    %v1188 = vunpack.c.l.b16 %v1124
    %v1189 = vunpack.c.l.b16 %v1125
    %v1190 = vunpack.c.l.b16 %v1126
    %v1191 = vunpack.c.l.b16 %v1127
    %v1192 = vunpack.c.l.b16 %v1128
    %v1193 = vunpack.c.l.b16 %v1129
    %v1194 = vunpack.c.l.b16 %v1130
    %v1195 = vunpack.c.l.b16 %v1131
    %v1196 = vunpack.c.l.b16 %v1132
    %v1197 = vunpack.c.l.b16 %v1133
    %v1198 = vunpack.c.l.b16 %v1134
    %v1199 = vunpack.c.l.b16 %v1135
    %v1200 = vunpack.c.l.b16 %v1136
    %v1201 = vunpack.c.l.b16 %v1137
    %v1202 = vunpack.c.l.b16 %v1138
    %v1203 = vunpack.c.l.b16 %v1139
    %v1204 = vunpack.c.l.b16 %v1140
    %v1205 = vunpack.c.l.b16 %v1141
    %v1206 = vunpack.c.l.b16 %v1142
    %v1207 = vunpack.c.l.b16 %v1143
    %v1208 = vunpack.c.l.b16 %v1144
    %v1209 = vunpack.c.l.b16 %v1145
    %v1210 = vunpack.c.l.b16 %v1146
    %v1211 = vpack.c.b16 %v1180, %v1179
    %v1212 = vpack.c.b16 %v1182, %v1181
    %v1213 = vpack.c.b16 %v1184, %v1183
    %v1214 = vpack.c.b16 %v1186, %v1185
    %v1215 = vpack.c.b16 %v1188, %v1187
    %v1216 = vpack.c.b16 %v1190, %v1189
    %v1217 = vpack.c.b16 %v1192, %v1191
    %v1218 = vpack.c.b16 %v1194, %v1193
    %v1219 = vpack.c.b16 %v1196, %v1195
    %v1220 = vpack.c.b16 %v1198, %v1197
    %v1221 = vpack.c.b16 %v1200, %v1199
    %v1222 = vpack.c.b16 %v1202, %v1201
    %v1223 = vpack.c.b16 %v1204, %v1203
    %v1224 = vpack.c.b16 %v1206, %v1205
    %v1225 = vpack.c.b16 %v1208, %v1207
    %v1226 = vpack.c.b16 %v1210, %v1209
    %1243 = vmatprep.subr.bf16.mxu0 0
    %1244 = vmatpush1.bf16.msra.mxu0 %v1211
    %1245 = vmatprep.subr.bf16.mxu0 0
    %1246 = vmatpush1.bf16.msra.mxu0 %v1212
    %1247 = vmatprep.subr.bf16.mxu0 0
    %1248 = vmatpush1.bf16.msra.mxu0 %v1213
    %1249 = vmatprep.subr.bf16.mxu0 0
    %1250 = vmatpush1.bf16.msra.mxu0 %v1214
    %1251 = vmatprep.subr.bf16.mxu0 0
    %1252 = vmatpush1.bf16.msra.mxu0 %v1215
    %1253 = vmatprep.subr.bf16.mxu0 0
    %1254 = vmatpush1.bf16.msra.mxu0 %v1216
    %1255 = vmatprep.subr.bf16.mxu0 0
    %1256 = vmatpush1.bf16.msra.mxu0 %v1217
    %1257 = vmatprep.subr.bf16.mxu0 0
    %1258 = vmatpush1.bf16.msra.mxu0 %v1218
    %1259 = vmatprep.subr.bf16.mxu0 0
    %1260 = vmatpush1.bf16.msra.mxu0 %v1219
    %1261 = vmatprep.subr.bf16.mxu0 0
    %1262 = vmatpush1.bf16.msra.mxu0 %v1220
    %1263 = vmatprep.subr.bf16.mxu0 0
    %1264 = vmatpush1.bf16.msra.mxu0 %v1221
    %1265 = vmatprep.subr.bf16.mxu0 0
    %1266 = vmatpush1.bf16.msra.mxu0 %v1222
    %1267 = vmatprep.subr.bf16.mxu0 0
    %1268 = vmatpush1.bf16.msra.mxu0 %v1223
    %1269 = vmatprep.subr.bf16.mxu0 0
    %1270 = vmatpush1.bf16.msra.mxu0 %v1224
    %1271 = vmatprep.subr.bf16.mxu0 0
    %1272 = vmatpush1.bf16.msra.mxu0 %v1225
    %1273 = vmatprep.subr.bf16.mxu0 0
    %1274 = vmatpush1.bf16.msra.mxu0 %v1226
    %1275 = vmatprep.mubr.bf16.mxu0 %v39
    %1276 = vmatmul.mubr.bf16.gmra.mrb[0].mxu0 %v38
    %v1277 = vpop.f32.mrb[0].mxu0
    %v1278 = vadd.f32 0.0, %v1277
    %v1279 = vpop.f32.mrb[0].mxu0
    %v1280 = vpop.f32.mrb[0].mxu0
    %v1281 = vadd.f32 0.0, %v1280
    %v1282 = vpop.f32.mrb[0].mxu0
    %1283 = vdwg.mxu0
    %v1284 = vpack.c.bf16 %v1281, %v1278
    %1286 = vrot.lane.b32.xlu0 %v1284, 5
    %v1287 = vpop.permute.xlu0 %1286
    %vm1288 = vcmask 39936
    %v1290 = vsel %vm1288, 0, %v1287
    %vm1291 = vcmask 171008
    %v1292 = vsel %vm1291, %v1290, 0
    %vm1294 = vcmp.lt.s32.totalorder %v56, 0
    %v1295 = vsub.s32 0, %v56
    %v1296 = vsel %vm1294, %v1295, %v56
    %v1297 = vshrl.u32 %v1296, 2
    %v1298 = vand.u32 %v1296, 3
    %v1299 = vsub.s32 0, %v1298
    %v1300 = vsel %vm1294, %v1299, %v1298
    %vm1301 = vcmp.ne.s32.totalorder %v1300, 0
    %vm1302 = vcmp.lt.s32.totalorder %v1300, 0
    %vm1303 = vmand %vm1302, %vm1301
    %v1304 = vadd.s32 %v1300, 4
    %v1305 = vsel %vm1303, %v1304, %v1300
    %v1306 = vadd.s32 %v1305, 4294967295
    %vm1307 = vcmp.ge.s32.totalorder %v1306, 0
    %vm1308 = vcmp.lt.s32.totalorder %v1306, 4
    %vm1309 = vmand %vm1307, %vm1308
    %v1310 = vadd.s32 %v1305, 1
    %vm1311 = vcmp.ge.s32.totalorder %v1310, 0
    %vm1312 = vcmp.lt.s32.totalorder %v1310, 4
    %vm1313 = vmand %vm1311, %vm1312
    %v1314 = vsel %vm1309, 1, 0
    %vm1315 = vcmp.eq.s32.totalorder %v1314, 1
    %vm1316 = vmpackc.low %vm1315, %vm1315
    %v1317 = vsel %vm1316, 65537, 0
    %v1318 = vlaneseq
    %v1319 = vshrl.u32 %v1318, 7
    %v1320 = vsub.s32 0, %v1319
    %v1321 = vrot.slane %v1317, %v1320
    %vm1322 = vcmp.ne.s16.totalorder %v1321, 0
    %v1323 = vsel %vm1322, %v1292, 0
    %v1324 = vsel %vm1313, 1, 0
    %vm1325 = vcmp.eq.s32.totalorder %v1324, 1
    %vm1326 = vmpackc.low %vm1325, %vm1325
    %v1327 = vsel %vm1326, 65537, 0
    %v1328 = vlaneseq
    %v1329 = vshrl.u32 %v1328, 7
    %v1330 = vsub.s32 0, %v1329
    %v1331 = vrot.slane %v1327, %v1330
    %1332 = vrot.lane.b32.xlu0 %v1331, 2
    %v1333 = vpop.permute.xlu0 %1332
    %vm1334 = vcmp.ne.s16.totalorder %v1333, 0
    %v1335 = vsel %vm1334, %v1292, 0
    %1336 = vrot.lane.b32.xlu0 %v1321, 4
    %v1337 = vpop.permute.xlu0 %1336
    %vm1338 = vcmp.ne.s16.totalorder %v1337, 0
    %v1339 = vsel %vm1338, %v1292, 0
    %1340 = vrot.lane.b32.xlu0 %v1331, 6
    %v1341 = vpop.permute.xlu0 %1340
    %vm1342 = vcmp.ne.s16.totalorder %v1341, 0
    %v1343 = vsel %vm1342, %v1292, 0
    %1344 = vrot.lane.b32.xlu0 %v1321, 8
    %v1345 = vpop.permute.xlu0 %1344
    %vm1346 = vcmp.ne.s16.totalorder %v1345, 0
    %v1347 = vsel %vm1346, %v1292, 0
    %1348 = vrot.lane.b32.xlu0 %v1331, 10
    %v1349 = vpop.permute.xlu0 %1348
    %vm1350 = vcmp.ne.s16.totalorder %v1349, 0
    %v1351 = vsel %vm1350, %v1292, 0
    %s1352 = scalar_lea.vmem %s1, 4
    %v1353 = vld [vmem:[%s1352] sm:$0x3]
    %s1354 = scalar_lea.vmem %s2, 8
    %v1355 = vld [vmem:[%s1354] sm:$0xf]
    %v1357 = vrot.slane %v1292, 4
    %1358 = vrot.lane.b32.xlu0 %v1357, 127
    %v1359 = vpop.permute.xlu0 %1358
    %1361 = vrot.lane.b32.xlu0 %v1335, 126
    %v1362 = vpop.permute.xlu0 %1361
    %v1364 = vrot.slane %v1339, 4
    %1365 = vrot.lane.b32.xlu0 %v1364, 124
    %v1366 = vpop.permute.xlu0 %1365
    %1367 = vrot.lane.b32.xlu0 %v1292, 123
    %v1368 = vpop.permute.xlu0 %1367
    %v1370 = vrot.slane %v1343, 4
    %1371 = vrot.lane.b32.xlu0 %v1370, 122
    %v1372 = vpop.permute.xlu0 %1371
    %1374 = vrot.lane.b32.xlu0 %v1347, 120
    %v1375 = vpop.permute.xlu0 %1374
    %1376 = vrot.lane.b32.xlu0 %v1357, 119
    %v1377 = vpop.permute.xlu0 %1376
    %1379 = vrot.lane.b32.xlu0 %v1351, 118
    %v1380 = vpop.permute.xlu0 %1379
    %v1383 = vsel %vm290, %v1323, %v1359
    %v1387 = vsel %vm290, %v1362, %v1366
    %v1391 = vsel %vm290, %v1368, %v1372
    %v1395 = vsel %vm290, %v1375, %v1377
    %1398 = vset.pattern.permute.xlu0 0
    %1399 = vperm.xlu0 %1398, %v1355
    %v1400 = vpop.permute.xlu0 %1399
    %v1403 = vsel %vm328, %v1353, 0
    %v1406 = vsel %vm290, %v1380, 0
    %1408 = vmatprep.subr.bf16.mxu0 0
    %1409 = vmatpush1.bf16.msra.mxu0 %v1383
    %1410 = vmatprep.subr.bf16.mxu0 0
    %1411 = vmatpush1.bf16.msra.mxu0 %v1387
    %1412 = vmatprep.subr.bf16.mxu0 0
    %1413 = vmatpush1.bf16.msra.mxu0 %v1391
    %1414 = vmatprep.subr.bf16.mxu0 0
    %1415 = vmatpush1.bf16.msra.mxu0 %v1395
    %1416 = vmatprep.subr.bf16.mxu0 0
    %1417 = vmatpush1.bf16.msra.mxu0 %v1406
    %1418 = vmatprep.subr.bf16.mxu0 0
    %1419 = vmatpush1.bf16.msra.mxu0 0
    %1420 = vmatprep.subr.bf16.mxu0 0
    %1421 = vmatpush1.bf16.msra.mxu0 0
    %1422 = vmatprep.subr.bf16.mxu0 0
    %1423 = vmatpush1.bf16.msra.mxu0 0
    %1424 = vmatprep.subr.bf16.mxu0 0
    %1425 = vmatpush1.bf16.msra.mxu0 0
    %1426 = vmatprep.subr.bf16.mxu0 0
    %1427 = vmatpush1.bf16.msra.mxu0 0
    %1428 = vmatprep.subr.bf16.mxu0 0
    %1429 = vmatpush1.bf16.msra.mxu0 0
    %1430 = vmatprep.subr.bf16.mxu0 0
    %1431 = vmatpush1.bf16.msra.mxu0 0
    %1432 = vmatprep.subr.bf16.mxu0 0
    %1433 = vmatpush1.bf16.msra.mxu0 0
    %1434 = vmatprep.subr.bf16.mxu0 0
    %1435 = vmatpush1.bf16.msra.mxu0 0
    %1436 = vmatprep.subr.bf16.mxu0 0
    %1437 = vmatpush1.bf16.msra.mxu0 0
    %1438 = vmatprep.subr.bf16.mxu0 0
    %1439 = vmatpush1.bf16.msra.mxu0 0
    %1440 = vmatprep.mubr.bf16.mxu0 0
    %1441 = vmatmul.mubr.bf16.gmra.mrb[0].mxu0 %v1403
    %v1442 = vpop.f32.mrb[0].mxu0
    %v1443 = vadd.f32 %v1400, %v1442
    %v1444 = vpop.f32.mrb[0].mxu0
    %v1445 = vpop.f32.mrb[0].mxu0
    %v1446 = vpop.f32.mrb[0].mxu0
    %1447 = vdwg.mxu0
    %vm1448 = vcmp.ge.f32.partialorder %v1443, 0.0
    %v1449 = vmul.f32 %v1443, 0.05
    %v1450 = vsel %vm1448, %v1443, %v1449
    %v1451 = vpack.c.bf16 %v1450, %v1450
    %v1452 = vld [vmem:[%s6] sm:$0xff]
    %v1453 = vld [vmem:[%s6 + $0x8] sm:$0xff]
    %v1456 = vunpack.c.l.b16 %v1452
    %v1457 = vunpack.c.h.b16 %v1452
    %v1458 = vunpack.c.l.b16 %v1453
    %v1459 = vunpack.c.h.b16 %v1453
    %v1460 = vpack.c.b16 %v1458, %v1456
    %v1461 = vpack.c.b16 %v1459, %v1457
    %vm1464 = vcmask 130048
    %v1466 = vsel %vm1464, %v1451, 0
    %1468 = vmatprep.subr.bf16.mxu0 %v1461
    %1469 = vmatpush1.bf16.msra.mxu0 %v1460
    %1470 = vmatprep.subr.bf16.mxu0 0
    %1471 = vmatpush1.bf16.msra.mxu0 0
    %1472 = vmatprep.subr.bf16.mxu0 0
    %1473 = vmatpush1.bf16.msra.mxu0 0
    %1474 = vmatprep.subr.bf16.mxu0 0
    %1475 = vmatpush1.bf16.msra.mxu0 0
    %1476 = vmatprep.subr.bf16.mxu0 0
    %1477 = vmatpush1.bf16.msra.mxu0 0
    %1478 = vmatprep.subr.bf16.mxu0 0
    %1479 = vmatpush1.bf16.msra.mxu0 0
    %1480 = vmatprep.subr.bf16.mxu0 0
    %1481 = vmatpush1.bf16.msra.mxu0 0
    %1482 = vmatprep.subr.bf16.mxu0 0
    %1483 = vmatpush1.bf16.msra.mxu0 0
    %1484 = vmatprep.subr.bf16.mxu0 0
    %1485 = vmatpush1.bf16.msra.mxu0 0
    %1486 = vmatprep.subr.bf16.mxu0 0
    %1487 = vmatpush1.bf16.msra.mxu0 0
    %1488 = vmatprep.subr.bf16.mxu0 0
    %1489 = vmatpush1.bf16.msra.mxu0 0
    %1490 = vmatprep.subr.bf16.mxu0 0
    %1491 = vmatpush1.bf16.msra.mxu0 0
    %1492 = vmatprep.subr.bf16.mxu0 0
    %1493 = vmatpush1.bf16.msra.mxu0 0
    %1494 = vmatprep.subr.bf16.mxu0 0
    %1495 = vmatpush1.bf16.msra.mxu0 0
    %1496 = vmatprep.subr.bf16.mxu0 0
    %1497 = vmatpush1.bf16.msra.mxu0 0
    %1498 = vmatprep.subr.bf16.mxu0 0
    %1499 = vmatpush1.bf16.msra.mxu0 0
    %1500 = vmatprep.mubr.bf16.mxu0 0
    %1501 = vmatmul.mubr.bf16.gmra.mrb[0].mxu0 %v1466
    %v1502 = vpop.f32.mrb[0].mxu0
    %v1503 = vadd.f32 0.0, %v1502
    %v1504 = vpop.f32.mrb[0].mxu0
    %v1505 = vadd.f32 0.0, %v1504
    %v1506 = vpop.f32.mrb[0].mxu0
    %v1507 = vpop.f32.mrb[0].mxu0
    %1508 = vdwg.mxu0
    %v1509 = vadd.f32 %v983, %v1503
    %v1510 = vadd.f32 %v984, %v1505
    %v1512 = vrot.slane %v1323, 4
    %1513 = vrot.lane.b32.xlu0 %v1292, 127
    %v1514 = vpop.permute.xlu0 %1513
    %v1515 = vrot.slane %v1335, 4
    %1516 = vrot.lane.b32.xlu0 %v1515, 126
    %v1517 = vpop.permute.xlu0 %1516
    %1518 = vrot.lane.b32.xlu0 %v1339, 124
    %v1519 = vpop.permute.xlu0 %1518
    %1520 = vrot.lane.b32.xlu0 %v1357, 123
    %v1521 = vpop.permute.xlu0 %1520
    %1522 = vrot.lane.b32.xlu0 %v1343, 122
    %v1523 = vpop.permute.xlu0 %1522
    %v1524 = vrot.slane %v1347, 4
    %1525 = vrot.lane.b32.xlu0 %v1524, 120
    %v1526 = vpop.permute.xlu0 %1525
    %1527 = vrot.lane.b32.xlu0 %v1292, 119
    %v1528 = vpop.permute.xlu0 %1527
    %v1529 = vrot.slane %v1351, 4
    %1530 = vrot.lane.b32.xlu0 %v1529, 118
    %v1531 = vpop.permute.xlu0 %1530
    %v1534 = vsel %vm290, %v1512, %v1514
    %v1538 = vsel %vm290, %v1517, %v1519
    %v1542 = vsel %vm290, %v1521, %v1523
    %v1546 = vsel %vm290, %v1526, %v1528
    %v1549 = vsel %vm290, %v1531, 0
    %1551 = vmatprep.subr.bf16.mxu0 0
    %1552 = vmatpush1.bf16.msra.mxu0 %v1534
    %1553 = vmatprep.subr.bf16.mxu0 0
    %1554 = vmatpush1.bf16.msra.mxu0 %v1538
    %1555 = vmatprep.subr.bf16.mxu0 0
    %1556 = vmatpush1.bf16.msra.mxu0 %v1542
    %1557 = vmatprep.subr.bf16.mxu0 0
    %1558 = vmatpush1.bf16.msra.mxu0 %v1546
    %1559 = vmatprep.subr.bf16.mxu0 0
    %1560 = vmatpush1.bf16.msra.mxu0 %v1549
    %1561 = vmatprep.subr.bf16.mxu0 0
    %1562 = vmatpush1.bf16.msra.mxu0 0
    %1563 = vmatprep.subr.bf16.mxu0 0
    %1564 = vmatpush1.bf16.msra.mxu0 0
    %1565 = vmatprep.subr.bf16.mxu0 0
    %1566 = vmatpush1.bf16.msra.mxu0 0
    %1567 = vmatprep.subr.bf16.mxu0 0
    %1568 = vmatpush1.bf16.msra.mxu0 0
    %1569 = vmatprep.subr.bf16.mxu0 0
    %1570 = vmatpush1.bf16.msra.mxu0 0
    %1571 = vmatprep.subr.bf16.mxu0 0
    %1572 = vmatpush1.bf16.msra.mxu0 0
    %1573 = vmatprep.subr.bf16.mxu0 0
    %1574 = vmatpush1.bf16.msra.mxu0 0
    %1575 = vmatprep.subr.bf16.mxu0 0
    %1576 = vmatpush1.bf16.msra.mxu0 0
    %1577 = vmatprep.subr.bf16.mxu0 0
    %1578 = vmatpush1.bf16.msra.mxu0 0
    %1579 = vmatprep.subr.bf16.mxu0 0
    %1580 = vmatpush1.bf16.msra.mxu0 0
    %1581 = vmatprep.subr.bf16.mxu0 0
    %1582 = vmatpush1.bf16.msra.mxu0 0
    %1583 = vmatprep.mubr.bf16.mxu0 0
    %1584 = vmatmul.mubr.bf16.gmra.mrb[0].mxu0 %v1403
    %v1585 = vpop.f32.mrb[0].mxu0
    %v1586 = vadd.f32 %v1400, %v1585
    %v1587 = vpop.f32.mrb[0].mxu0
    %v1588 = vpop.f32.mrb[0].mxu0
    %v1589 = vpop.f32.mrb[0].mxu0
    %1590 = vdwg.mxu0
    %vm1591 = vcmp.ge.f32.partialorder %v1586, 0.0
    %v1592 = vmul.f32 %v1586, 0.05
    %v1593 = vsel %vm1591, %v1586, %v1592
    %v1594 = vpack.c.bf16 %v1593, %v1593
    %v1596 = vsel %vm1464, %v1594, 0
    %1598 = vmatprep.subr.bf16.mxu0 %v1461
    %1599 = vmatpush1.bf16.msra.mxu0 %v1460
    %1600 = vmatprep.subr.bf16.mxu0 0
    %1601 = vmatpush1.bf16.msra.mxu0 0
    %1602 = vmatprep.subr.bf16.mxu0 0
    %1603 = vmatpush1.bf16.msra.mxu0 0
    %1604 = vmatprep.subr.bf16.mxu0 0
    %1605 = vmatpush1.bf16.msra.mxu0 0
    %1606 = vmatprep.subr.bf16.mxu0 0
    %1607 = vmatpush1.bf16.msra.mxu0 0
    %1608 = vmatprep.subr.bf16.mxu0 0
    %1609 = vmatpush1.bf16.msra.mxu0 0
    %1610 = vmatprep.subr.bf16.mxu0 0
    %1611 = vmatpush1.bf16.msra.mxu0 0
    %1612 = vmatprep.subr.bf16.mxu0 0
    %1613 = vmatpush1.bf16.msra.mxu0 0
    %1614 = vmatprep.subr.bf16.mxu0 0
    %1615 = vmatpush1.bf16.msra.mxu0 0
    %1616 = vmatprep.subr.bf16.mxu0 0
    %1617 = vmatpush1.bf16.msra.mxu0 0
    %1618 = vmatprep.subr.bf16.mxu0 0
    %1619 = vmatpush1.bf16.msra.mxu0 0
    %1620 = vmatprep.subr.bf16.mxu0 0
    %1621 = vmatpush1.bf16.msra.mxu0 0
    %1622 = vmatprep.subr.bf16.mxu0 0
    %1623 = vmatpush1.bf16.msra.mxu0 0
    %1624 = vmatprep.subr.bf16.mxu0 0
    %1625 = vmatpush1.bf16.msra.mxu0 0
    %1626 = vmatprep.subr.bf16.mxu0 0
    %1627 = vmatpush1.bf16.msra.mxu0 0
    %1628 = vmatprep.subr.bf16.mxu0 0
    %1629 = vmatpush1.bf16.msra.mxu0 0
    %1630 = vmatprep.mubr.bf16.mxu0 0
    %1631 = vmatmul.mubr.bf16.gmra.mrb[0].mxu0 %v1596
    %v1632 = vpop.f32.mrb[0].mxu0
    %v1633 = vadd.f32 0.0, %v1632
    %v1634 = vpop.f32.mrb[0].mxu0
    %v1635 = vadd.f32 0.0, %v1634
    %v1636 = vpop.f32.mrb[0].mxu0
    %v1637 = vpop.f32.mrb[0].mxu0
    %1638 = vdwg.mxu0
    %v1639 = vadd.f32 %v1113, %v1633
    %v1640 = vadd.f32 %v1114, %v1635
    %v1643 = vrot.slane %v1639, 4
    %v1644 = vrot.slane %v1640, 4
    %v1647 = vsel %vm290, %v1509, %v1643
    %v1648 = vsel %vm290, %v1510, %v1644
    %1649 = vst [vmem:[#allocation2] sm:$0xff] %v1647
    %1650 = vst [vmem:[#allocation2 + $0x8] sm:$0xff] %v1648
    // Predicated region
    $region30: #{tpu_custom_call.1} parent=1 // pred_check
      _
    $region31: #{tpu_custom_call.1} parent=1 // pred_check_branch
      %1652 = sbr.rel (0) target = $region33
    $region32: #{tpu_custom_call.1} parent=1 // pred_region
      %s1654 = ssub.s32 256, 256
      %1655 = vsyncadd [#allocation3], %s1654
      %s1657 = sshll.u32 [#allocation2], 4
      %s1658 = int_to_ptr.vmem [resolvable:$true] %s1657
      %1660 = dma.vmem_to_hbm [thread:$0]  %s1658, 256, %s7, [#allocation3]
    $region33: #{tpu_custom_call.1} parent=1 // pred_fallthru
      _
    // Predicated region
    $region34: #{tpu_custom_call.1} parent=1 // pred_check
      _
    $region35: #{tpu_custom_call.1} parent=1 // pred_check_branch
      %1662 = sbr.rel (0) target = $region37
    $region36: #{tpu_custom_call.1} parent=1 // pred_region
      %1663 = dma.done [#allocation3], 256
    $region37: #{tpu_custom_call.1} parent=1 // pred_fallthru
      _
    %1664 = vsyncpa [#allocation3], 1

</llo_original>
